<compile_context>
chip_gen: v7x
topology: tpu7x:2x2x1
jax: 0.10.0
libtpu: 0.0.40
codegen_flags: <defaults>
</compile_context>

<pallas_src>
import functools

import jax
import jax.numpy as jnp
from jax.experimental import pallas as pl
from jax.experimental.pallas import tpu as pltpu

_LRELU_SLOPE = 0.1
# Extra mel frames fetched per time tile (16 each side).  The fused receptive
# field only needs 9 (3+2+1+1+2); 16 keeps every block 8-row aligned and lets
# the halo be an ordinary Blocked BlockSpec of 32 rows.
_HALO = 32
_HALF_HALO = _HALO // 2


def _round_up(x, m):
    return ((x + m - 1) // m) * m


# -----------------------------------------------------------------------------
# Fused kernel: conv_pre -> (x2 upsample + up conv) -> resblock -> residual
#               -> conv_post -> tanh, one (batch, time-tile) grid cell each.
# -----------------------------------------------------------------------------
def _evagan_fused_kernel(mel_ref, halo_ref,
                         wpre_ref, bpre_ref, wup_ref, bup_ref,
                         wr1_ref, br1_ref, wr2_ref, br2_ref,
                         wpo_ref, bpo_ref, out_ref,
                         *, t_tile, t_total, neg_slope):
    base = pl.program_id(1) * t_tile           # first output mel frame of tile
    # window row w  <->  mel frame (base - 16 + w),  w in [0, t_tile + 32)
    win = jnp.concatenate([mel_ref[0], halo_ref[0]], axis=0)

    def conv(x, w_ref, b_ref, k, leaky):
        # "valid" conv as ONE im2col matmul: (L-k+1, k*Cin) @ (k*Cin, Cout).
        lo = x.shape[0] - (k - 1)
        xim = jnp.concatenate([x[i:i + lo, :] for i in range(k)], axis=1)
        acc = jnp.dot(xim, w_ref[...], preferred_element_type=jnp.float32)
        acc = acc + b_ref[...].astype(jnp.float32)   # bias added once, hoisted
        if leaky:
            acc = jnp.where(acc >= 0, acc, neg_slope * acc)
        return acc                                   # f32

    def mask(x, frame_off):
        # Zero rows whose mel frame lies outside [0, t_total): reproduces the
        # zero 'same'-padding each stage of the reference network sees.
        rows = x.shape[0]
        frame = base + frame_off + jax.lax.broadcasted_iota(jnp.int32, (rows, 1), 0)
        return jnp.where((frame >= 0) & (frame < t_total), x, 0.0)

    # conv_pre (K=7) + leaky            ; row i <-> mel frame base - 13 + i
    h = mask(conv(win, wpre_ref, bpre_ref, 7, True), -13).astype(jnp.bfloat16)
    # x2 nearest upsample + up conv (K=7) + leaky, folded into a packed 5-tap
    # conv producing [even, odd] sample channels     ; frame base - 11 + i
    p1 = mask(conv(h, wup_ref, bup_ref, 5, True), -11).astype(jnp.bfloat16)
    # resblock conv1 (K=3) + leaky (packed 3-tap)     ; frame base - 10 + i
    p2 = mask(conv(p1, wr1_ref, br1_ref, 3, True), -10).astype(jnp.bfloat16)
    # resblock conv2 (K=3), no activation             ; frame base -  9 + i
    p3 = conv(p2, wr2_ref, br2_ref, 3, False)
    # residual add + leaky (f32)
    x4 = p1[2:2 + p3.shape[0], :].astype(jnp.float32) + p3
    x4 = jnp.where(x4 >= 0, x4, neg_slope * x4)
    x4 = mask(x4, -9).astype(jnp.bfloat16)
    # conv_post (K=7) folded to a packed 5-tap conv with 2 outputs
    # (audio[2t], audio[2t+1]) + tanh                 ; frame base -  7 + i
    a = conv(x4, wpo_ref, bpo_ref, 5, False)
    out_ref[0] = jnp.tanh(a[7:7 + t_tile, :]).astype(out_ref.dtype)


# -----------------------------------------------------------------------------
# Polyphase weight packing: fold the x2 nearest upsample into the weights so
# every stage after conv_pre is a mel-rate conv on packed [even, odd] channels.
# -----------------------------------------------------------------------------
def _pack_up(w, b):
    """x2-nearest-upsample + K=7 'same' conv -> 5-tap packed conv."""
    W = [w[k] for k in range(7)]
    z = jnp.zeros_like(W[0])
    even = [W[0], W[1] + W[2], W[3] + W[4], W[5] + W[6]]   # taps t-2 .. t+1
    odd = [W[0] + W[1], W[2] + W[3], W[4] + W[5], W[6]]    # taps t-1 .. t+2
    taps = [jnp.concatenate([even[0], z], axis=1),
            jnp.concatenate([even[1], odd[0]], axis=1),
            jnp.concatenate([even[2], odd[1]], axis=1),
            jnp.concatenate([even[3], odd[2]], axis=1),
            jnp.concatenate([z, odd[3]], axis=1)]
    return jnp.stack(taps, axis=0), jnp.concatenate([b, b], axis=1)


def _blk(ee, eo, oe, oo):
    # rows = [even-phase in ; odd-phase in], cols = [even out, odd out]
    return jnp.concatenate([jnp.concatenate([ee, eo], axis=1),
                            jnp.concatenate([oe, oo], axis=1)], axis=0)


def _pack_res(w, b):
    """K=3 'same' conv at the upsampled rate -> 3-tap conv on packed channels."""
    r0, r1, r2 = w[0], w[1], w[2]
    z = jnp.zeros_like(r0)
    taps = [_blk(z, z, r0, z), _blk(r1, r0, r2, r1), _blk(z, r2, z, z)]
    return jnp.stack(taps, axis=0), jnp.concatenate([b, b], axis=1)


def _pack_post(w, b):
    """K=7, Cout=1 conv at the upsampled rate -> 5-tap packed conv with the
    2 outputs (audio[2t], audio[2t+1])."""
    p = [w[k] for k in range(7)]
    z = jnp.zeros_like(p[0])
    taps = [_blk(z, z, p[0], z),
            _blk(p[1], p[0], p[2], p[1]),
            _blk(p[3], p[2], p[4], p[3]),
            _blk(p[5], p[4], p[6], p[5]),
            _blk(z, p[6], z, z)]
    return jnp.stack(taps, axis=0), jnp.concatenate([b, b], axis=1)


def _prepare_params(params):
    """Pad channels to 128-lane multiples, fold the upsample into the weights,
    flatten (K, Cin, Cout) -> (K*Cin, Cout) for the im2col matmuls, cast
    weights to bf16 (MXU native); biases stay f32 (accumulation dtype)."""
    w_pre, b_pre = params["conv_pre_w"], params["conv_pre_b"]
    w_up, b_up = params["up_w"], params["up_b"]
    w_r1, b_r1 = params["res_w1"], params["res_b1"]
    w_r2, b_r2 = params["res_w2"], params["res_b2"]
    w_po, b_po = params["post_w"], params["post_b"]

    n_mels, hidden, h2 = w_pre.shape[1], w_pre.shape[2], w_up.shape[2]
    cmel, c1, c2 = _round_up(n_mels, 128), _round_up(hidden, 128), _round_up(h2, 128)

    pad_w = lambda w, ci, co: jnp.pad(
        w, ((0, 0), (0, ci - w.shape[1]), (0, co - w.shape[2])))
    pad_b = lambda b, c: jnp.pad(b, ((0, 0), (0, c - b.shape[1])))

    w_up_p, b_up_p = _pack_up(pad_w(w_up, c1, c2), pad_b(b_up, c2))
    w_r1_p, b_r1_p = _pack_res(pad_w(w_r1, c2, c2), pad_b(b_r1, c2))
    w_r2_p, b_r2_p = _pack_res(pad_w(w_r2, c2, c2), pad_b(b_r2, c2))
    w_po_p, b_po_p = _pack_post(pad_w(w_po, c2, 1), b_po)

    flat = lambda w: w.reshape(w.shape[0] * w.shape[1], w.shape[2]).astype(jnp.bfloat16)
    return dict(
        w_pre=flat(pad_w(w_pre, cmel, c1)), b_pre=pad_b(b_pre, c1),
        w_up=flat(w_up_p), b_up=b_up_p,
        w_r1=flat(w_r1_p), b_r1=b_r1_p,
        w_r2=flat(w_r2_p), b_r2=b_r2_p,
        w_po=flat(w_po_p), b_po=b_po_p,
        cmel=cmel,
    )


# -----------------------------------------------------------------------------
# Forward
# -----------------------------------------------------------------------------
def evagan_forward(params, mel, *, t_tile=256):
    """EVAGANBase.forward(mel): mel (B, T, num_mels) -> audio (B, 1, 2*T).

    t_tile: mel frames per grid step (multiple of 32 dividing T).  256 keeps
    the per-tile VMEM footprint to a few MiB; on v7x (64 MiB VMEM) there is
    still ample headroom for double buffering.
    """
    B, T, _ = mel.shape
    if t_tile % _HALO or T % t_tile:
        raise ValueError(
            f"t_tile must be a multiple of {_HALO} dividing T "
            f"(got t_tile={t_tile}, T={T})")
    n_t = T // t_tile

    p = _prepare_params(params)
    cmel = p["cmel"]

    # ONE pad at the top of the network (time halo + channel padding to 128
    # lanes), stored bf16 to halve HBM/VMEM traffic.
    mel_p = jnp.pad(mel, ((0, 0), (_HALF_HALO, _HALF_HALO), (0, cmel - mel.shape[2])))
    mel_p = mel_p.astype(jnp.bfloat16)

    kernel = functools.partial(
        _evagan_fused_kernel, t_tile=t_tile, t_total=T, neg_slope=_LRELU_SLOPE)

    full = lambda a: pl.BlockSpec(a.shape, lambda b, j: (0,) * a.ndim)
    in_specs = [
        # main tile: padded rows [j*t_tile, (j+1)*t_tile)
        pl.BlockSpec((1, t_tile, cmel), lambda b, j: (b, j, 0)),
        # 32-row halo: padded rows [(j+1)*t_tile, (j+1)*t_tile + 32)
        pl.BlockSpec((1, _HALO, cmel),
                     lambda b, j: (b, (j + 1) * (t_tile // _HALO), 0)),
        full(p["w_pre"]), full(p["b_pre"]),
        full(p["w_up"]), full(p["b_up"]),
        full(p["w_r1"]), full(p["b_r1"]),
        full(p["w_r2"]), full(p["b_r2"]),
        full(p["w_po"]), full(p["b_po"]),
    ]

    out = pl.pallas_call(
        kernel,
        out_shape=jax.ShapeDtypeStruct((B, T, 2), jnp.float32),
        grid_spec=pltpu.PrefetchScalarGridSpec(
            num_scalar_prefetch=0,
            grid=(B, n_t),
            in_specs=in_specs,
            out_specs=pl.BlockSpec((1, t_tile, 2), lambda b, j: (b, j, 0)),
        ),
        compiler_params=pltpu.CompilerParams(
            dimension_semantics=("parallel", "parallel"),
            vmem_limit_bytes=32 * 1024 * 1024,
        ),
    )(mel_p, mel_p,
      p["w_pre"], p["b_pre"], p["w_up"], p["b_up"],
      p["w_r1"], p["b_r1"], p["w_r2"], p["b_r2"], p["w_po"], p["b_po"])

    # (B, T, 2) holds (audio[2t], audio[2t+1]) pairs: a free row-major reshape
    # interleaves them into the NCW waveform -- no extra HBM transpose pass.
    return out.reshape(B, 1, 2 * T)


# -----------------------------------------------------------------------------
# Deterministic synthetic weights + pure-JAX f32 reference (validation only)
# -----------------------------------------------------------------------------
def init_params(key, num_mels, hidden):
    h2 = hidden // 2
    ks = jax.random.split(key, 10)
    s = 0.05
    w = lambda k, shape: (s * jax.random.normal(k, shape)).astype(jnp.float32)
    return {
        "conv_pre_w": w(ks[0], (7, num_mels, hidden)), "conv_pre_b": w(ks[1], (1, hidden)),
        "up_w": w(ks[2], (7, hidden, h2)), "up_b": w(ks[3], (1, h2)),
        "res_w1": w(ks[4], (3, h2, h2)), "res_b1": w(ks[5], (1, h2)),
        "res_w2": w(ks[6], (3, h2, h2)), "res_b2": w(ks[7], (1, h2)),
        "post_w": w(ks[8], (7, h2, 1)), "post_b": w(ks[9], (1, 1)),
    }


def reference_forward(params, mel):
    leaky = lambda x: jnp.where(x >= 0, x, _LRELU_SLOPE * x)

    def conv(x, w, b):
        y = jax.lax.conv_general_dilated(
            x, w, window_strides=(1,), padding="SAME",
            dimension_numbers=("NWC", "WIO", "NWC"))
        return y + b

    h = leaky(conv(mel, params["conv_pre_w"], params["conv_pre_b"]))
    u = jnp.repeat(h, 2, axis=1)                       # x2 nearest upsample
    x = leaky(conv(u, params["up_w"], params["up_b"]))
    r = leaky(conv(x, params["res_w1"], params["res_b1"]))
    r = conv(r, params["res_w2"], params["res_b2"])
    x = leaky(x + r)
    a = jnp.tanh(conv(x, params["post_w"], params["post_b"]))
    return jnp.transpose(a, (0, 2, 1))                 # (B, 1, 2T) NCW


if __name__ == "__main__":
    B, T, NUM_MELS, HIDDEN = 2, 64, 32, 64             # small demo shapes

    key = jax.random.PRNGKey(0)
    k_param, k_mel = jax.random.split(key)
    params = init_params(k_param, NUM_MELS, HIDDEN)
    mel = jax.random.normal(k_mel, (B, T, NUM_MELS), dtype=jnp.float32)

    fwd = jax.jit(functools.partial(evagan_forward, t_tile=32))   # 2 time tiles
    audio = fwd(params, mel)
    jax.block_until_ready(audio)

    assert audio.shape == (B, 1, 2 * T), audio.shape
    assert audio.dtype == jnp.float32
    assert bool(jnp.all(jnp.isfinite(audio)))

    ref = reference_forward(params, mel)
    err = float(jnp.max(jnp.abs(audio - ref)))
    assert err < 5e-2, f"mismatch vs pure-JAX reference, max abs err = {err}"

    print("KERNEL_OK")
</pallas_src>

<mosaic_0001>
module attributes {stable_mosaic.version = 11 : i64} {
  func.func @_evagan_fused_kernel(%arg0: i32, %arg1: i32, %arg2: memref<1x32x128xbf16, #tpu.memory_space<vmem>>, %arg3: memref<1x32x128xbf16, #tpu.memory_space<vmem>>, %arg4: memref<896x128xbf16, #tpu.memory_space<vmem>>, %arg5: memref<1x128xf32, #tpu.memory_space<vmem>>, %arg6: memref<640x256xbf16, #tpu.memory_space<vmem>>, %arg7: memref<1x256xf32, #tpu.memory_space<vmem>>, %arg8: memref<768x256xbf16, #tpu.memory_space<vmem>>, %arg9: memref<1x256xf32, #tpu.memory_space<vmem>>, %arg10: memref<768x256xbf16, #tpu.memory_space<vmem>>, %arg11: memref<1x256xf32, #tpu.memory_space<vmem>>, %arg12: memref<1280x2xbf16, #tpu.memory_space<vmem>>, %arg13: memref<1x2xf32, #tpu.memory_space<vmem>>, %arg14: memref<1x32x2xf32, #tpu.memory_space<vmem>>) attributes {dimension_semantics = [#tpu.dimension_semantics<parallel>, #tpu.dimension_semantics<parallel>], iteration_bounds = array<i64: 2, 2>, scalar_prefetch = 0 : i64, scratch_operands = 0 : i64, tpu.core_type = #tpu.core_type<tc>, window_params = [{transform_indices = @transform_0, window_bounds = array<i64: 1, 32, 128>}, {transform_indices = @transform_1, window_bounds = array<i64: 1, 32, 128>}, {pipeline_mode = #tpu.pipeline_mode<synchronous>, transform_indices = @transform_2, window_bounds = array<i64: 896, 128>}, {pipeline_mode = #tpu.pipeline_mode<synchronous>, transform_indices = @transform_3, window_bounds = array<i64: 1, 128>}, {pipeline_mode = #tpu.pipeline_mode<synchronous>, transform_indices = @transform_4, window_bounds = array<i64: 640, 256>}, {pipeline_mode = #tpu.pipeline_mode<synchronous>, transform_indices = @transform_5, window_bounds = array<i64: 1, 256>}, {pipeline_mode = #tpu.pipeline_mode<synchronous>, transform_indices = @transform_6, window_bounds = array<i64: 768, 256>}, {pipeline_mode = #tpu.pipeline_mode<synchronous>, transform_indices = @transform_7, window_bounds = array<i64: 1, 256>}, {pipeline_mode = #tpu.pipeline_mode<synchronous>, transform_indices = @transform_8, window_bounds = array<i64: 768, 256>}, {pipeline_mode = #tpu.pipeline_mode<synchronous>, transform_indices = @transform_9, window_bounds = array<i64: 1, 256>}, {pipeline_mode = #tpu.pipeline_mode<synchronous>, transform_indices = @transform_10, window_bounds = array<i64: 1280, 2>}, {pipeline_mode = #tpu.pipeline_mode<synchronous>, transform_indices = @transform_11, window_bounds = array<i64: 1, 2>}, {transform_indices = @transform_12, window_bounds = array<i64: 1, 32, 2>}]} {
    %c32_i32 = arith.constant 32 : i32
    %0 = arith.muli %arg1, %c32_i32 : i32
    %c0 = arith.constant 0 : index
    %c0_0 = arith.constant 0 : index
    %c0_1 = arith.constant 0 : index
    %1 = vector.load %arg2[%c0, %c0_0, %c0_1] : memref<1x32x128xbf16, #tpu.memory_space<vmem>>, vector<1x32x128xbf16>
    %2 = vector.shape_cast %1 : vector<1x32x128xbf16> to vector<32x128xbf16>
    %c0_2 = arith.constant 0 : index
    %c0_3 = arith.constant 0 : index
    %c0_4 = arith.constant 0 : index
    %3 = vector.load %arg3[%c0_2, %c0_3, %c0_4] : memref<1x32x128xbf16, #tpu.memory_space<vmem>>, vector<1x32x128xbf16>
    %4 = vector.shape_cast %3 : vector<1x32x128xbf16> to vector<32x128xbf16>
    %5 = tpu.concatenate %2, %4 in 0 : vector<32x128xbf16>, vector<32x128xbf16> -> vector<64x128xbf16>
    %6 = vector.extract_strided_slice %5 {offsets = [0, 0], sizes = [58, 128], strides = [1, 1]} : vector<64x128xbf16> to vector<58x128xbf16>
    %7 = vector.extract_strided_slice %5 {offsets = [1, 0], sizes = [58, 128], strides = [1, 1]} : vector<64x128xbf16> to vector<58x128xbf16>
    %8 = vector.extract_strided_slice %5 {offsets = [2, 0], sizes = [58, 128], strides = [1, 1]} : vector<64x128xbf16> to vector<58x128xbf16>
    %9 = vector.extract_strided_slice %5 {offsets = [3, 0], sizes = [58, 128], strides = [1, 1]} : vector<64x128xbf16> to vector<58x128xbf16>
    %10 = vector.extract_strided_slice %5 {offsets = [4, 0], sizes = [58, 128], strides = [1, 1]} : vector<64x128xbf16> to vector<58x128xbf16>
    %11 = vector.extract_strided_slice %5 {offsets = [5, 0], sizes = [58, 128], strides = [1, 1]} : vector<64x128xbf16> to vector<58x128xbf16>
    %12 = vector.extract_strided_slice %5 {offsets = [6, 0], sizes = [58, 128], strides = [1, 1]} : vector<64x128xbf16> to vector<58x128xbf16>
    %13 = tpu.concatenate %6, %7, %8, %9, %10, %11, %12 in 1 : vector<58x128xbf16>, vector<58x128xbf16>, vector<58x128xbf16>, vector<58x128xbf16>, vector<58x128xbf16>, vector<58x128xbf16>, vector<58x128xbf16> -> vector<58x896xbf16>
    %c0_5 = arith.constant 0 : index
    %c0_6 = arith.constant 0 : index
    %14 = vector.load %arg4[%c0_5, %c0_6] : memref<896x128xbf16, #tpu.memory_space<vmem>>, vector<896x128xbf16>
    %cst = arith.constant dense<0.000000e+00> : vector<58x128xf32>
    %15 = tpu.matmul %13, %14, %cst {dimension_numbers = #tpu.dot_dimension_numbers<[1], [0], [0], [1], [0, 0, 1, 1], [], []>} : vector<58x896xbf16>, vector<896x128xbf16>, vector<58x128xf32> -> vector<58x128xf32>
    %c0_7 = arith.constant 0 : index
    %c0_8 = arith.constant 0 : index
    %16 = vector.load %arg5[%c0_7, %c0_8] : memref<1x128xf32, #tpu.memory_space<vmem>>, vector<1x128xf32>
    %17 = vector.broadcast %16 : vector<1x128xf32> to vector<58x128xf32>
    %18 = arith.addf %15, %17 : vector<58x128xf32>
    %cst_9 = arith.constant 0.000000e+00 : f32
    %19 = vector.broadcast %cst_9 : f32 to vector<58x128xf32>
    %20 = arith.cmpf oge, %18, %19 : vector<58x128xf32>
    %cst_10 = arith.constant 1.000000e-01 : f32
    %21 = vector.broadcast %cst_10 : f32 to vector<58x128xf32>
    %22 = arith.mulf %21, %18 : vector<58x128xf32>
    %23 = arith.select %20, %18, %22 : vector<58x128xi1>, vector<58x128xf32>
    %c-13_i32 = arith.constant -13 : i32
    %24 = arith.addi %0, %c-13_i32 : i32
    %25 = tpu.iota {dimensions = array<i32: 0>} : vector<58x1xi32>
    %26 = vector.broadcast %24 : i32 to vector<58x1xi32>
    %27 = arith.addi %26, %25 : vector<58x1xi32>
    %c0_i32 = arith.constant 0 : i32
    %28 = vector.broadcast %c0_i32 : i32 to vector<58x1xi32>
    %29 = arith.cmpi sge, %27, %28 : vector<58x1xi32>
    %c64_i32 = arith.constant 64 : i32
    %30 = vector.broadcast %c64_i32 : i32 to vector<58x1xi32>
    %31 = arith.cmpi slt, %27, %30 : vector<58x1xi32>
    %32 = arith.andi %29, %31 : vector<58x1xi1>
    %cst_11 = arith.constant 0.000000e+00 : f32
    %33 = vector.shape_cast %32 : vector<58x1xi1> to vector<58x1xi1>
    %34 = vector.broadcast %33 : vector<58x1xi1> to vector<58x128xi1>
    %35 = vector.broadcast %cst_11 : f32 to vector<58x128xf32>
    %36 = arith.select %34, %23, %35 : vector<58x128xi1>, vector<58x128xf32>
    %37 = arith.truncf %36 : vector<58x128xf32> to vector<58x128xbf16>
    %38 = vector.extract_strided_slice %37 {offsets = [0, 0], sizes = [54, 128], strides = [1, 1]} : vector<58x128xbf16> to vector<54x128xbf16>
    %39 = vector.extract_strided_slice %37 {offsets = [1, 0], sizes = [54, 128], strides = [1, 1]} : vector<58x128xbf16> to vector<54x128xbf16>
    %40 = vector.extract_strided_slice %37 {offsets = [2, 0], sizes = [54, 128], strides = [1, 1]} : vector<58x128xbf16> to vector<54x128xbf16>
    %41 = vector.extract_strided_slice %37 {offsets = [3, 0], sizes = [54, 128], strides = [1, 1]} : vector<58x128xbf16> to vector<54x128xbf16>
    %42 = vector.extract_strided_slice %37 {offsets = [4, 0], sizes = [54, 128], strides = [1, 1]} : vector<58x128xbf16> to vector<54x128xbf16>
    %43 = tpu.concatenate %38, %39, %40, %41, %42 in 1 : vector<54x128xbf16>, vector<54x128xbf16>, vector<54x128xbf16>, vector<54x128xbf16>, vector<54x128xbf16> -> vector<54x640xbf16>
    %c0_12 = arith.constant 0 : index
    %c0_13 = arith.constant 0 : index
    %44 = vector.load %arg6[%c0_12, %c0_13] : memref<640x256xbf16, #tpu.memory_space<vmem>>, vector<640x256xbf16>
    %cst_14 = arith.constant dense<0.000000e+00> : vector<54x256xf32>
    %45 = tpu.matmul %43, %44, %cst_14 {dimension_numbers = #tpu.dot_dimension_numbers<[1], [0], [0], [1], [0, 0, 1, 1], [], []>} : vector<54x640xbf16>, vector<640x256xbf16>, vector<54x256xf32> -> vector<54x256xf32>
    %c0_15 = arith.constant 0 : index
    %c0_16 = arith.constant 0 : index
    %46 = vector.load %arg7[%c0_15, %c0_16] : memref<1x256xf32, #tpu.memory_space<vmem>>, vector<1x256xf32>
    %47 = vector.broadcast %46 : vector<1x256xf32> to vector<54x256xf32>
    %48 = arith.addf %45, %47 : vector<54x256xf32>
    %cst_17 = arith.constant 0.000000e+00 : f32
    %49 = vector.broadcast %cst_17 : f32 to vector<54x256xf32>
    %50 = arith.cmpf oge, %48, %49 : vector<54x256xf32>
    %cst_18 = arith.constant 1.000000e-01 : f32
    %51 = vector.broadcast %cst_18 : f32 to vector<54x256xf32>
    %52 = arith.mulf %51, %48 : vector<54x256xf32>
    %53 = arith.select %50, %48, %52 : vector<54x256xi1>, vector<54x256xf32>
    %c-11_i32 = arith.constant -11 : i32
    %54 = arith.addi %0, %c-11_i32 : i32
    %55 = tpu.iota {dimensions = array<i32: 0>} : vector<54x1xi32>
    %56 = vector.broadcast %54 : i32 to vector<54x1xi32>
    %57 = arith.addi %56, %55 : vector<54x1xi32>
    %c0_i32_19 = arith.constant 0 : i32
    %58 = vector.broadcast %c0_i32_19 : i32 to vector<54x1xi32>
    %59 = arith.cmpi sge, %57, %58 : vector<54x1xi32>
    %c64_i32_20 = arith.constant 64 : i32
    %60 = vector.broadcast %c64_i32_20 : i32 to vector<54x1xi32>
    %61 = arith.cmpi slt, %57, %60 : vector<54x1xi32>
    %62 = arith.andi %59, %61 : vector<54x1xi1>
    %cst_21 = arith.constant 0.000000e+00 : f32
    %63 = vector.shape_cast %62 : vector<54x1xi1> to vector<54x1xi1>
    %64 = vector.broadcast %63 : vector<54x1xi1> to vector<54x256xi1>
    %65 = vector.broadcast %cst_21 : f32 to vector<54x256xf32>
    %66 = arith.select %64, %53, %65 : vector<54x256xi1>, vector<54x256xf32>
    %67 = arith.truncf %66 : vector<54x256xf32> to vector<54x256xbf16>
    %68 = vector.extract_strided_slice %67 {offsets = [0, 0], sizes = [52, 256], strides = [1, 1]} : vector<54x256xbf16> to vector<52x256xbf16>
    %69 = vector.extract_strided_slice %67 {offsets = [1, 0], sizes = [52, 256], strides = [1, 1]} : vector<54x256xbf16> to vector<52x256xbf16>
    %70 = vector.extract_strided_slice %67 {offsets = [2, 0], sizes = [52, 256], strides = [1, 1]} : vector<54x256xbf16> to vector<52x256xbf16>
    %71 = tpu.concatenate %68, %69, %70 in 1 : vector<52x256xbf16>, vector<52x256xbf16>, vector<52x256xbf16> -> vector<52x768xbf16>
    %c0_22 = arith.constant 0 : index
    %c0_23 = arith.constant 0 : index
    %72 = vector.load %arg8[%c0_22, %c0_23] : memref<768x256xbf16, #tpu.memory_space<vmem>>, vector<768x256xbf16>
    %cst_24 = arith.constant dense<0.000000e+00> : vector<52x256xf32>
    %73 = tpu.matmul %71, %72, %cst_24 {dimension_numbers = #tpu.dot_dimension_numbers<[1], [0], [0], [1], [0, 0, 1, 1], [], []>} : vector<52x768xbf16>, vector<768x256xbf16>, vector<52x256xf32> -> vector<52x256xf32>
    %c0_25 = arith.constant 0 : index
    %c0_26 = arith.constant 0 : index
    %74 = vector.load %arg9[%c0_25, %c0_26] : memref<1x256xf32, #tpu.memory_space<vmem>>, vector<1x256xf32>
    %75 = vector.broadcast %74 : vector<1x256xf32> to vector<52x256xf32>
    %76 = arith.addf %73, %75 : vector<52x256xf32>
    %cst_27 = arith.constant 0.000000e+00 : f32
    %77 = vector.broadcast %cst_27 : f32 to vector<52x256xf32>
    %78 = arith.cmpf oge, %76, %77 : vector<52x256xf32>
    %cst_28 = arith.constant 1.000000e-01 : f32
    %79 = vector.broadcast %cst_28 : f32 to vector<52x256xf32>
    %80 = arith.mulf %79, %76 : vector<52x256xf32>
    %81 = arith.select %78, %76, %80 : vector<52x256xi1>, vector<52x256xf32>
    %c-10_i32 = arith.constant -10 : i32
    %82 = arith.addi %0, %c-10_i32 : i32
    %83 = tpu.iota {dimensions = array<i32: 0>} : vector<52x1xi32>
    %84 = vector.broadcast %82 : i32 to vector<52x1xi32>
    %85 = arith.addi %84, %83 : vector<52x1xi32>
    %c0_i32_29 = arith.constant 0 : i32
    %86 = vector.broadcast %c0_i32_29 : i32 to vector<52x1xi32>
    %87 = arith.cmpi sge, %85, %86 : vector<52x1xi32>
    %c64_i32_30 = arith.constant 64 : i32
    %88 = vector.broadcast %c64_i32_30 : i32 to vector<52x1xi32>
    %89 = arith.cmpi slt, %85, %88 : vector<52x1xi32>
    %90 = arith.andi %87, %89 : vector<52x1xi1>
    %cst_31 = arith.constant 0.000000e+00 : f32
    %91 = vector.shape_cast %90 : vector<52x1xi1> to vector<52x1xi1>
    %92 = vector.broadcast %91 : vector<52x1xi1> to vector<52x256xi1>
    %93 = vector.broadcast %cst_31 : f32 to vector<52x256xf32>
    %94 = arith.select %92, %81, %93 : vector<52x256xi1>, vector<52x256xf32>
    %95 = arith.truncf %94 : vector<52x256xf32> to vector<52x256xbf16>
    %96 = vector.extract_strided_slice %95 {offsets = [0, 0], sizes = [50, 256], strides = [1, 1]} : vector<52x256xbf16> to vector<50x256xbf16>
    %97 = vector.extract_strided_slice %95 {offsets = [1, 0], sizes = [50, 256], strides = [1, 1]} : vector<52x256xbf16> to vector<50x256xbf16>
    %98 = vector.extract_strided_slice %95 {offsets = [2, 0], sizes = [50, 256], strides = [1, 1]} : vector<52x256xbf16> to vector<50x256xbf16>
    %99 = tpu.concatenate %96, %97, %98 in 1 : vector<50x256xbf16>, vector<50x256xbf16>, vector<50x256xbf16> -> vector<50x768xbf16>
    %c0_32 = arith.constant 0 : index
    %c0_33 = arith.constant 0 : index
    %100 = vector.load %arg10[%c0_32, %c0_33] : memref<768x256xbf16, #tpu.memory_space<vmem>>, vector<768x256xbf16>
    %cst_34 = arith.constant dense<0.000000e+00> : vector<50x256xf32>
    %101 = tpu.matmul %99, %100, %cst_34 {dimension_numbers = #tpu.dot_dimension_numbers<[1], [0], [0], [1], [0, 0, 1, 1], [], []>} : vector<50x768xbf16>, vector<768x256xbf16>, vector<50x256xf32> -> vector<50x256xf32>
    %c0_35 = arith.constant 0 : index
    %c0_36 = arith.constant 0 : index
    %102 = vector.load %arg11[%c0_35, %c0_36] : memref<1x256xf32, #tpu.memory_space<vmem>>, vector<1x256xf32>
    %103 = vector.broadcast %102 : vector<1x256xf32> to vector<50x256xf32>
    %104 = arith.addf %101, %103 : vector<50x256xf32>
    %105 = vector.extract_strided_slice %67 {offsets = [2, 0], sizes = [50, 256], strides = [1, 1]} : vector<54x256xbf16> to vector<50x256xbf16>
    %106 = arith.extf %105 : vector<50x256xbf16> to vector<50x256xf32>
    %107 = arith.addf %106, %104 : vector<50x256xf32>
    %cst_37 = arith.constant 0.000000e+00 : f32
    %108 = vector.broadcast %cst_37 : f32 to vector<50x256xf32>
    %109 = arith.cmpf oge, %107, %108 : vector<50x256xf32>
    %cst_38 = arith.constant 1.000000e-01 : f32
    %110 = vector.broadcast %cst_38 : f32 to vector<50x256xf32>
    %111 = arith.mulf %110, %107 : vector<50x256xf32>
    %112 = arith.select %109, %107, %111 : vector<50x256xi1>, vector<50x256xf32>
    %c-9_i32 = arith.constant -9 : i32
    %113 = arith.addi %0, %c-9_i32 : i32
    %114 = tpu.iota {dimensions = array<i32: 0>} : vector<50x1xi32>
    %115 = vector.broadcast %113 : i32 to vector<50x1xi32>
    %116 = arith.addi %115, %114 : vector<50x1xi32>
    %c0_i32_39 = arith.constant 0 : i32
    %117 = vector.broadcast %c0_i32_39 : i32 to vector<50x1xi32>
    %118 = arith.cmpi sge, %116, %117 : vector<50x1xi32>
    %c64_i32_40 = arith.constant 64 : i32
    %119 = vector.broadcast %c64_i32_40 : i32 to vector<50x1xi32>
    %120 = arith.cmpi slt, %116, %119 : vector<50x1xi32>
    %121 = arith.andi %118, %120 : vector<50x1xi1>
    %cst_41 = arith.constant 0.000000e+00 : f32
    %122 = vector.shape_cast %121 : vector<50x1xi1> to vector<50x1xi1>
    %123 = vector.broadcast %122 : vector<50x1xi1> to vector<50x256xi1>
    %124 = vector.broadcast %cst_41 : f32 to vector<50x256xf32>
    %125 = arith.select %123, %112, %124 : vector<50x256xi1>, vector<50x256xf32>
    %126 = arith.truncf %125 : vector<50x256xf32> to vector<50x256xbf16>
    %127 = vector.extract_strided_slice %126 {offsets = [0, 0], sizes = [46, 256], strides = [1, 1]} : vector<50x256xbf16> to vector<46x256xbf16>
    %128 = vector.extract_strided_slice %126 {offsets = [1, 0], sizes = [46, 256], strides = [1, 1]} : vector<50x256xbf16> to vector<46x256xbf16>
    %129 = vector.extract_strided_slice %126 {offsets = [2, 0], sizes = [46, 256], strides = [1, 1]} : vector<50x256xbf16> to vector<46x256xbf16>
    %130 = vector.extract_strided_slice %126 {offsets = [3, 0], sizes = [46, 256], strides = [1, 1]} : vector<50x256xbf16> to vector<46x256xbf16>
    %131 = vector.extract_strided_slice %126 {offsets = [4, 0], sizes = [46, 256], strides = [1, 1]} : vector<50x256xbf16> to vector<46x256xbf16>
    %132 = tpu.concatenate %127, %128, %129, %130, %131 in 1 : vector<46x256xbf16>, vector<46x256xbf16>, vector<46x256xbf16>, vector<46x256xbf16>, vector<46x256xbf16> -> vector<46x1280xbf16>
    %c0_42 = arith.constant 0 : index
    %c0_43 = arith.constant 0 : index
    %133 = vector.load %arg12[%c0_42, %c0_43] : memref<1280x2xbf16, #tpu.memory_space<vmem>>, vector<1280x2xbf16>
    %cst_44 = arith.constant dense<0.000000e+00> : vector<46x2xf32>
    %134 = tpu.matmul %132, %133, %cst_44 {dimension_numbers = #tpu.dot_dimension_numbers<[1], [0], [0], [1], [0, 0, 1, 1], [], []>} : vector<46x1280xbf16>, vector<1280x2xbf16>, vector<46x2xf32> -> vector<46x2xf32>
    %c0_45 = arith.constant 0 : index
    %c0_46 = arith.constant 0 : index
    %135 = vector.load %arg13[%c0_45, %c0_46] : memref<1x2xf32, #tpu.memory_space<vmem>>, vector<1x2xf32>
    %136 = vector.broadcast %135 : vector<1x2xf32> to vector<46x2xf32>
    %137 = arith.addf %134, %136 : vector<46x2xf32>
    %138 = vector.extract_strided_slice %137 {offsets = [7, 0], sizes = [32, 2], strides = [1, 1]} : vector<46x2xf32> to vector<32x2xf32>
    %139 = math.tanh %138 : vector<32x2xf32>
    %c0_47 = arith.constant 0 : index
    %c0_48 = arith.constant 0 : index
    %c0_49 = arith.constant 0 : index
    %140 = vector.load %arg14[%c0_47, %c0_48, %c0_49] : memref<1x32x2xf32, #tpu.memory_space<vmem>>, vector<1x32x2xf32>
    %141 = vector.shape_cast %140 : vector<1x32x2xf32> to vector<32x2xf32>
    %142 = vector.shape_cast %139 : vector<32x2xf32> to vector<1x32x2xf32>
    tpu.vector_store %arg14[%c0_47, %c0_48, %c0_49], %142 {strides = array<i32>} : memref<1x32x2xf32, #tpu.memory_space<vmem>>, vector<1x32x2xf32>,
    return
  }
  func.func @transform_0(%arg0: i32, %arg1: i32) -> (i32, i32, i32) {
    %c0_i32 = arith.constant 0 : i32
    %c0_i32_0 = arith.constant 0 : i32
    return %arg0, %arg1, %c0_i32 : i32, i32, i32
  }
  func.func @transform_1(%arg0: i32, %arg1: i32) -> (i32, i32, i32) {
    %c1_i32 = arith.constant 1 : i32
    %0 = arith.addi %arg1, %c1_i32 : i32
    %c1_i32_0 = arith.constant 1 : i32
    %1 = arith.muli %0, %c1_i32_0 : i32
    %c0_i32 = arith.constant 0 : i32
    %c0_i32_1 = arith.constant 0 : i32
    return %arg0, %1, %c0_i32 : i32, i32, i32
  }
  func.func @transform_2(%arg0: i32, %arg1: i32) -> (i32, i32) {
    %c0_i32 = arith.constant 0 : i32
    %c0_i32_0 = arith.constant 0 : i32
    %c0_i32_1 = arith.constant 0 : i32
    return %c0_i32, %c0_i32_0 : i32, i32
  }
  func.func @transform_3(%arg0: i32, %arg1: i32) -> (i32, i32) {
    %c0_i32 = arith.constant 0 : i32
    %c0_i32_0 = arith.constant 0 : i32
    %c0_i32_1 = arith.constant 0 : i32
    return %c0_i32, %c0_i32_0 : i32, i32
  }
  func.func @transform_4(%arg0: i32, %arg1: i32) -> (i32, i32) {
    %c0_i32 = arith.constant 0 : i32
    %c0_i32_0 = arith.constant 0 : i32
    %c0_i32_1 = arith.constant 0 : i32
    return %c0_i32, %c0_i32_0 : i32, i32
  }
  func.func @transform_5(%arg0: i32, %arg1: i32) -> (i32, i32) {
    %c0_i32 = arith.constant 0 : i32
    %c0_i32_0 = arith.constant 0 : i32
    %c0_i32_1 = arith.constant 0 : i32
    return %c0_i32, %c0_i32_0 : i32, i32
  }
  func.func @transform_6(%arg0: i32, %arg1: i32) -> (i32, i32) {
    %c0_i32 = arith.constant 0 : i32
    %c0_i32_0 = arith.constant 0 : i32
    %c0_i32_1 = arith.constant 0 : i32
    return %c0_i32, %c0_i32_0 : i32, i32
  }
  func.func @transform_7(%arg0: i32, %arg1: i32) -> (i32, i32) {
    %c0_i32 = arith.constant 0 : i32
    %c0_i32_0 = arith.constant 0 : i32
    %c0_i32_1 = arith.constant 0 : i32
    return %c0_i32, %c0_i32_0 : i32, i32
  }
  func.func @transform_8(%arg0: i32, %arg1: i32) -> (i32, i32) {
    %c0_i32 = arith.constant 0 : i32
    %c0_i32_0 = arith.constant 0 : i32
    %c0_i32_1 = arith.constant 0 : i32
    return %c0_i32, %c0_i32_0 : i32, i32
  }
  func.func @transform_9(%arg0: i32, %arg1: i32) -> (i32, i32) {
    %c0_i32 = arith.constant 0 : i32
    %c0_i32_0 = arith.constant 0 : i32
    %c0_i32_1 = arith.constant 0 : i32
    return %c0_i32, %c0_i32_0 : i32, i32
  }
  func.func @transform_10(%arg0: i32, %arg1: i32) -> (i32, i32) {
    %c0_i32 = arith.constant 0 : i32
    %c0_i32_0 = arith.constant 0 : i32
    %c0_i32_1 = arith.constant 0 : i32
    return %c0_i32, %c0_i32_0 : i32, i32
  }
  func.func @transform_11(%arg0: i32, %arg1: i32) -> (i32, i32) {
    %c0_i32 = arith.constant 0 : i32
    %c0_i32_0 = arith.constant 0 : i32
    %c0_i32_1 = arith.constant 0 : i32
    return %c0_i32, %c0_i32_0 : i32, i32
  }
  func.func @transform_12(%arg0: i32, %arg1: i32) -> (i32, i32, i32) {
    %c0_i32 = arith.constant 0 : i32
    %c0_i32_0 = arith.constant 0 : i32
    return %arg0, %arg1, %c0_i32 : i32, i32, i32
  }
}

</mosaic_0001>

<llo_original>
// kernel: evagan_forward.1
$region0: #{evagan_forward.1}
  #allocation0 [shape = 'u32[]', space=smem, size = 0x4, offset = 0x4, fixed_abs, tag = 'smem constant byte address 0x4 - core index']
  #allocation1 [shape = 'u32[144,128]{1,0:T(1,128)}', space=vmem, size = 0x12000, scoped, tag = 'internal scratch']
  %s0 = inlined_call_operand.vmem [shape: bf16[2,96,128], index: 0, kind: input, shape index: {}, may-alias: {0,1}]
  %s1 = inlined_call_operand.vmem [shape: bf16[2,96,128], index: 1, kind: input, shape index: {}, may-alias: {0,1}]
  %s2 = inlined_call_operand.vmem [shape: bf16[896,128], index: 2, kind: input, shape index: {}]
  %s3 = inlined_call_operand.vmem [shape: f32[1,128], index: 3, kind: input, shape index: {}]
  %s4 = inlined_call_operand.vmem [shape: bf16[640,256], index: 4, kind: input, shape index: {}]
  %s5 = inlined_call_operand.vmem [shape: f32[1,256], index: 5, kind: input, shape index: {}]
  %s6 = inlined_call_operand.vmem [shape: bf16[768,256], index: 6, kind: input, shape index: {}]
  %s7 = inlined_call_operand.vmem [shape: f32[1,256], index: 7, kind: input, shape index: {}]
  %s8 = inlined_call_operand.vmem [shape: bf16[768,256], index: 8, kind: input, shape index: {}]
  %s9 = inlined_call_operand.vmem [shape: f32[1,256], index: 9, kind: input, shape index: {}]
  %s10 = inlined_call_operand.vmem [shape: bf16[1280,2], index: 10, kind: input, shape index: {}]
  %s11 = inlined_call_operand.vmem [shape: f32[1,2], index: 11, kind: input, shape index: {}]
  %s12 = inlined_call_operand.vmem [shape: f32[2,64,2], index: 12, kind: output, shape index: {}]
  %s13 = sld [smem:[#allocation0]]
  $region81: #{evagan_forward.1} parent=0
    _
  %s15 = ssub.s32 1, %s13
  %s16 = scalar_select 0, %s15, %s13
  loop: start=0, step=1, limit=6
  $region2: #{evagan_forward.1} parent=0 // loop_pre_header
    _
  $region3: #{evagan_forward.1} parent=0 // loop_header
    %s18 = sphi 0, %s22
    %p19 = scmp.ge.s32.totalorder %s18, 6
    %s25 = sphi 0, %s37
    %s26 = sphi 0, %s33
    %s27 = sphi 0, %s25
    %s28 = sphi 0, %s26
    %s29 = sphi 0, %s27
    %s30 = sphi 0, %s28
    %s42 = sphi 0, %s44
    %s45 = sphi 0, %s42
    %s46 = sphi 0, %s45
    %s62 = sphi 0, %s46
    %s72 = sphi 0, %s74
    %s75 = sphi 0, %s72
    %s76 = sphi 0, %s75
    %s92 = sphi 0, %s76
    %s96 = sphi 0, %s96
    %s98 = sphi 0, %s96
    %s99 = sphi 0, %s98
    %s113 = sphi 0, %s99
    %s117 = sphi 0, %s117
    %s119 = sphi 0, %s117
    %s120 = sphi 0, %s119
    %s134 = sphi 0, %s120
    %s138 = sphi 0, %s138
    %s140 = sphi 0, %s138
    %s141 = sphi 0, %s140
    %s155 = sphi 0, %s141
    %s159 = sphi 0, %s159
    %s161 = sphi 0, %s159
    %s162 = sphi 0, %s161
    %s176 = sphi 0, %s162
    %s180 = sphi 0, %s180
    %s182 = sphi 0, %s180
    %s183 = sphi 0, %s182
    %s197 = sphi 0, %s183
    %s201 = sphi 0, %s201
    %s203 = sphi 0, %s201
    %s204 = sphi 0, %s203
    %s218 = sphi 0, %s204
    %s222 = sphi 0, %s222
    %s224 = sphi 0, %s222
    %s225 = sphi 0, %s224
    %s239 = sphi 0, %s225
    %s243 = sphi 0, %s243
    %s245 = sphi 0, %s243
    %s246 = sphi 0, %s245
    %s260 = sphi 0, %s246
    %s264 = sphi 0, %s264
    %s266 = sphi 0, %s264
    %s267 = sphi 0, %s266
    %s281 = sphi 0, %s267
    %s285 = sphi 0, %s285
    %s287 = sphi 0, %s285
    %s288 = sphi 0, %s287
    %s302 = sphi 0, %s288
    %s310 = sphi 0, %s312
    %s313 = sphi 0, %s310
    %s314 = sphi 0, %s313
    %s330 = sphi 0, %s314
  $region4: #{evagan_forward.1} parent=0 // loop_header_branch
    %21 = sbr.rel (%p19) target = $region8
  $region5: #{evagan_forward.1} parent=0 // loop_body
    %s23 = ssub.s32 %s18, 1
    %s24 = ssub.s32 %s18, 2
    %s31 = sadd.s32 1, %s26
    %p32 = scmp.ge.s32.totalorder %s31, 2
    %s33 = scalar_select %p32, 0, %s31
    %s34 = sadd.s32 1, %s25
    %s35 = scalar_select %p32, %s34, %s25
    %p36 = scmp.ge.s32.totalorder %s35, 2
    %s37 = scalar_select %p36, 0, %s35
    %s38 = ssub.s32 %s25, %s37
    %s39 = ssub.s32 %s26, %s33
    %s40 = sor.u32 %s38, %s39
    %p41 = scmp.eq.s32.totalorder %s40, 0
    %s43 = sadd.s32 %s42, 1
    %s44 = scalar_select %p41, %s42, %s43
    %p47 = pneg %p41
    %p48 = scmp.eq.s32.totalorder %s18, 3
    %p49 = por %p47, %p48
    %p50 = scmp.ne.s32.totalorder %s42, %s45
    %p51 = scmp.eq.s32.totalorder %s18, 0
    %p52 = por %p50, %p51
    %p53 = scmp.ne.s32.totalorder %s42, %s45
    %p54 = scmp.eq.s32.totalorder %s23, 3
    %p55 = por %p53, %p54
    %p56 = scmp.ne.s32.totalorder %s45, %s46
    %p57 = scmp.eq.s32.totalorder %s23, 0
    %p58 = por %p56, %p57
    %p59 = scmp.ne.s32.totalorder %s45, %s46
    %p60 = scmp.eq.s32.totalorder %s24, 3
    %p61 = por %p59, %p60
    %p63 = scmp.ne.s32.totalorder %s46, %s62
    %p64 = scmp.eq.s32.totalorder %s24, 0
    %p65 = por %p63, %p64
    %s66 = sadd.s32 %s26, 1
    %s67 = sadd.s32 %s33, 1
    %s68 = ssub.s32 %s25, %s37
    %s69 = ssub.s32 %s66, %s67
    %s70 = sor.u32 %s68, %s69
    %p71 = scmp.eq.s32.totalorder %s70, 0
    %s73 = sadd.s32 %s72, 1
    %s74 = scalar_select %p71, %s72, %s73
    %p77 = pneg %p71
    %p78 = scmp.eq.s32.totalorder %s18, 3
    %p79 = por %p77, %p78
    %p80 = scmp.ne.s32.totalorder %s72, %s75
    %p81 = scmp.eq.s32.totalorder %s18, 0
    %p82 = por %p80, %p81
    %p83 = scmp.ne.s32.totalorder %s72, %s75
    %p84 = scmp.eq.s32.totalorder %s23, 3
    %p85 = por %p83, %p84
    %p86 = scmp.ne.s32.totalorder %s75, %s76
    %p87 = scmp.eq.s32.totalorder %s23, 0
    %p88 = por %p86, %p87
    %p89 = scmp.ne.s32.totalorder %s75, %s76
    %p90 = scmp.eq.s32.totalorder %s24, 3
    %p91 = por %p89, %p90
    %p93 = scmp.ne.s32.totalorder %s76, %s92
    %p94 = scmp.eq.s32.totalorder %s24, 0
    %p95 = por %p93, %p94
    %s97 = sadd.s32 %s96, 1
    %p100 = scmp.eq.s32.totalorder %s18, 3
    %p101 = scmp.ne.s32.totalorder %s96, %s98
    %p102 = scmp.eq.s32.totalorder %s18, 0
    %p103 = por %p101, %p102
    %p104 = scmp.ne.s32.totalorder %s96, %s98
    %p105 = scmp.eq.s32.totalorder %s23, 3
    %p106 = por %p104, %p105
    %p107 = scmp.ne.s32.totalorder %s98, %s99
    %p108 = scmp.eq.s32.totalorder %s23, 0
    %p109 = por %p107, %p108
    %p110 = scmp.ne.s32.totalorder %s98, %s99
    %p111 = scmp.eq.s32.totalorder %s24, 3
    %p112 = por %p110, %p111
    %p114 = scmp.ne.s32.totalorder %s99, %s113
    %p115 = scmp.eq.s32.totalorder %s24, 0
    %p116 = por %p114, %p115
    %s118 = sadd.s32 %s117, 1
    %p121 = scmp.eq.s32.totalorder %s18, 3
    %p122 = scmp.ne.s32.totalorder %s117, %s119
    %p123 = scmp.eq.s32.totalorder %s18, 0
    %p124 = por %p122, %p123
    %p125 = scmp.ne.s32.totalorder %s117, %s119
    %p126 = scmp.eq.s32.totalorder %s23, 3
    %p127 = por %p125, %p126
    %p128 = scmp.ne.s32.totalorder %s119, %s120
    %p129 = scmp.eq.s32.totalorder %s23, 0
    %p130 = por %p128, %p129
    %p131 = scmp.ne.s32.totalorder %s119, %s120
    %p132 = scmp.eq.s32.totalorder %s24, 3
    %p133 = por %p131, %p132
    %p135 = scmp.ne.s32.totalorder %s120, %s134
    %p136 = scmp.eq.s32.totalorder %s24, 0
    %p137 = por %p135, %p136
    %s139 = sadd.s32 %s138, 1
    %p142 = scmp.eq.s32.totalorder %s18, 3
    %p143 = scmp.ne.s32.totalorder %s138, %s140
    %p144 = scmp.eq.s32.totalorder %s18, 0
    %p145 = por %p143, %p144
    %p146 = scmp.ne.s32.totalorder %s138, %s140
    %p147 = scmp.eq.s32.totalorder %s23, 3
    %p148 = por %p146, %p147
    %p149 = scmp.ne.s32.totalorder %s140, %s141
    %p150 = scmp.eq.s32.totalorder %s23, 0
    %p151 = por %p149, %p150
    %p152 = scmp.ne.s32.totalorder %s140, %s141
    %p153 = scmp.eq.s32.totalorder %s24, 3
    %p154 = por %p152, %p153
    %p156 = scmp.ne.s32.totalorder %s141, %s155
    %p157 = scmp.eq.s32.totalorder %s24, 0
    %p158 = por %p156, %p157
    %s160 = sadd.s32 %s159, 1
    %p163 = scmp.eq.s32.totalorder %s18, 3
    %p164 = scmp.ne.s32.totalorder %s159, %s161
    %p165 = scmp.eq.s32.totalorder %s18, 0
    %p166 = por %p164, %p165
    %p167 = scmp.ne.s32.totalorder %s159, %s161
    %p168 = scmp.eq.s32.totalorder %s23, 3
    %p169 = por %p167, %p168
    %p170 = scmp.ne.s32.totalorder %s161, %s162
    %p171 = scmp.eq.s32.totalorder %s23, 0
    %p172 = por %p170, %p171
    %p173 = scmp.ne.s32.totalorder %s161, %s162
    %p174 = scmp.eq.s32.totalorder %s24, 3
    %p175 = por %p173, %p174
    %p177 = scmp.ne.s32.totalorder %s162, %s176
    %p178 = scmp.eq.s32.totalorder %s24, 0
    %p179 = por %p177, %p178
    %s181 = sadd.s32 %s180, 1
    %p184 = scmp.eq.s32.totalorder %s18, 3
    %p185 = scmp.ne.s32.totalorder %s180, %s182
    %p186 = scmp.eq.s32.totalorder %s18, 0
    %p187 = por %p185, %p186
    %p188 = scmp.ne.s32.totalorder %s180, %s182
    %p189 = scmp.eq.s32.totalorder %s23, 3
    %p190 = por %p188, %p189
    %p191 = scmp.ne.s32.totalorder %s182, %s183
    %p192 = scmp.eq.s32.totalorder %s23, 0
    %p193 = por %p191, %p192
    %p194 = scmp.ne.s32.totalorder %s182, %s183
    %p195 = scmp.eq.s32.totalorder %s24, 3
    %p196 = por %p194, %p195
    %p198 = scmp.ne.s32.totalorder %s183, %s197
    %p199 = scmp.eq.s32.totalorder %s24, 0
    %p200 = por %p198, %p199
    %s202 = sadd.s32 %s201, 1
    %p205 = scmp.eq.s32.totalorder %s18, 3
    %p206 = scmp.ne.s32.totalorder %s201, %s203
    %p207 = scmp.eq.s32.totalorder %s18, 0
    %p208 = por %p206, %p207
    %p209 = scmp.ne.s32.totalorder %s201, %s203
    %p210 = scmp.eq.s32.totalorder %s23, 3
    %p211 = por %p209, %p210
    %p212 = scmp.ne.s32.totalorder %s203, %s204
    %p213 = scmp.eq.s32.totalorder %s23, 0
    %p214 = por %p212, %p213
    %p215 = scmp.ne.s32.totalorder %s203, %s204
    %p216 = scmp.eq.s32.totalorder %s24, 3
    %p217 = por %p215, %p216
    %p219 = scmp.ne.s32.totalorder %s204, %s218
    %p220 = scmp.eq.s32.totalorder %s24, 0
    %p221 = por %p219, %p220
    %s223 = sadd.s32 %s222, 1
    %p226 = scmp.eq.s32.totalorder %s18, 3
    %p227 = scmp.ne.s32.totalorder %s222, %s224
    %p228 = scmp.eq.s32.totalorder %s18, 0
    %p229 = por %p227, %p228
    %p230 = scmp.ne.s32.totalorder %s222, %s224
    %p231 = scmp.eq.s32.totalorder %s23, 3
    %p232 = por %p230, %p231
    %p233 = scmp.ne.s32.totalorder %s224, %s225
    %p234 = scmp.eq.s32.totalorder %s23, 0
    %p235 = por %p233, %p234
    %p236 = scmp.ne.s32.totalorder %s224, %s225
    %p237 = scmp.eq.s32.totalorder %s24, 3
    %p238 = por %p236, %p237
    %p240 = scmp.ne.s32.totalorder %s225, %s239
    %p241 = scmp.eq.s32.totalorder %s24, 0
    %p242 = por %p240, %p241
    %s244 = sadd.s32 %s243, 1
    %p247 = scmp.eq.s32.totalorder %s18, 3
    %p248 = scmp.ne.s32.totalorder %s243, %s245
    %p249 = scmp.eq.s32.totalorder %s18, 0
    %p250 = por %p248, %p249
    %p251 = scmp.ne.s32.totalorder %s243, %s245
    %p252 = scmp.eq.s32.totalorder %s23, 3
    %p253 = por %p251, %p252
    %p254 = scmp.ne.s32.totalorder %s245, %s246
    %p255 = scmp.eq.s32.totalorder %s23, 0
    %p256 = por %p254, %p255
    %p257 = scmp.ne.s32.totalorder %s245, %s246
    %p258 = scmp.eq.s32.totalorder %s24, 3
    %p259 = por %p257, %p258
    %p261 = scmp.ne.s32.totalorder %s246, %s260
    %p262 = scmp.eq.s32.totalorder %s24, 0
    %p263 = por %p261, %p262
    %s265 = sadd.s32 %s264, 1
    %p268 = scmp.eq.s32.totalorder %s18, 3
    %p269 = scmp.ne.s32.totalorder %s264, %s266
    %p270 = scmp.eq.s32.totalorder %s18, 0
    %p271 = por %p269, %p270
    %p272 = scmp.ne.s32.totalorder %s264, %s266
    %p273 = scmp.eq.s32.totalorder %s23, 3
    %p274 = por %p272, %p273
    %p275 = scmp.ne.s32.totalorder %s266, %s267
    %p276 = scmp.eq.s32.totalorder %s23, 0
    %p277 = por %p275, %p276
    %p278 = scmp.ne.s32.totalorder %s266, %s267
    %p279 = scmp.eq.s32.totalorder %s24, 3
    %p280 = por %p278, %p279
    %p282 = scmp.ne.s32.totalorder %s267, %s281
    %p283 = scmp.eq.s32.totalorder %s24, 0
    %p284 = por %p282, %p283
    %s286 = sadd.s32 %s285, 1
    %p289 = scmp.eq.s32.totalorder %s18, 3
    %p290 = scmp.ne.s32.totalorder %s285, %s287
    %p291 = scmp.eq.s32.totalorder %s18, 0
    %p292 = por %p290, %p291
    %p293 = scmp.ne.s32.totalorder %s285, %s287
    %p294 = scmp.eq.s32.totalorder %s23, 3
    %p295 = por %p293, %p294
    %p296 = scmp.ne.s32.totalorder %s287, %s288
    %p297 = scmp.eq.s32.totalorder %s23, 0
    %p298 = por %p296, %p297
    %p299 = scmp.ne.s32.totalorder %s287, %s288
    %p300 = scmp.eq.s32.totalorder %s24, 3
    %p301 = por %p299, %p300
    %p303 = scmp.ne.s32.totalorder %s288, %s302
    %p304 = scmp.eq.s32.totalorder %s24, 0
    %p305 = por %p303, %p304
    %s306 = ssub.s32 %s25, %s37
    %s307 = ssub.s32 %s26, %s33
    %s308 = sor.u32 %s306, %s307
    %p309 = scmp.eq.s32.totalorder %s308, 0
    %s311 = sadd.s32 %s310, 1
    %s312 = scalar_select %p309, %s310, %s311
    %p315 = pneg %p309
    %p316 = scmp.eq.s32.totalorder %s18, 3
    %p317 = por %p315, %p316
    %p318 = scmp.ne.s32.totalorder %s310, %s313
    %p319 = scmp.eq.s32.totalorder %s18, 0
    %p320 = por %p318, %p319
    %p321 = scmp.ne.s32.totalorder %s310, %s313
    %p322 = scmp.eq.s32.totalorder %s23, 3
    %p323 = por %p321, %p322
    %p324 = scmp.ne.s32.totalorder %s313, %s314
    %p325 = scmp.eq.s32.totalorder %s23, 0
    %p326 = por %p324, %p325
    %p327 = scmp.ne.s32.totalorder %s313, %s314
    %p328 = scmp.eq.s32.totalorder %s24, 3
    %p329 = por %p327, %p328
    %p331 = scmp.ne.s32.totalorder %s314, %s330
    %p332 = scmp.eq.s32.totalorder %s24, 0
    %p333 = por %p331, %p332
    %p334 = scmp.le.s32.totalorder 1, %s18
    %p335 = scmp.lt.s32.totalorder %s18, 5
    %p336 = pnand %p334, %p335
    %p337 = pneg %p336
    // Predicated region
    $region9: #{evagan_forward.1} parent=5 // pred_check
      _
    $region10: #{evagan_forward.1} parent=5 // pred_check_branch
      %339 = sbr.rel (%p336) target = $region12
    $region11: #{evagan_forward.1} parent=5 // pred_region
      %s340 = ssub.s32 %s18, 1
      // Predicated region
      $region13: #{evagan_forward.1} parent=11 // pred_check
        %p341 = pneg %p109
      $region14: #{evagan_forward.1} parent=11 // pred_check_branch
        %343 = sbr.rel (%p341) target = $region16
      $region15: #{evagan_forward.1} parent=11 // pred_region
        _
      $region16: #{evagan_forward.1} parent=11 // pred_fallthru
        _
      // Predicated region
      $region17: #{evagan_forward.1} parent=11 // pred_check
        %p344 = pneg %p130
      $region18: #{evagan_forward.1} parent=11 // pred_check_branch
        %346 = sbr.rel (%p344) target = $region20
      $region19: #{evagan_forward.1} parent=11 // pred_region
        _
      $region20: #{evagan_forward.1} parent=11 // pred_fallthru
        _
      // Predicated region
      $region21: #{evagan_forward.1} parent=11 // pred_check
        %p347 = pneg %p151
      $region22: #{evagan_forward.1} parent=11 // pred_check_branch
        %349 = sbr.rel (%p347) target = $region24
      $region23: #{evagan_forward.1} parent=11 // pred_region
        _
      $region24: #{evagan_forward.1} parent=11 // pred_fallthru
        _
      // Predicated region
      $region25: #{evagan_forward.1} parent=11 // pred_check
        %p350 = pneg %p172
      $region26: #{evagan_forward.1} parent=11 // pred_check_branch
        %352 = sbr.rel (%p350) target = $region28
      $region27: #{evagan_forward.1} parent=11 // pred_region
        _
      $region28: #{evagan_forward.1} parent=11 // pred_fallthru
        _
      // Predicated region
      $region29: #{evagan_forward.1} parent=11 // pred_check
        %p353 = pneg %p193
      $region30: #{evagan_forward.1} parent=11 // pred_check_branch
        %355 = sbr.rel (%p353) target = $region32
      $region31: #{evagan_forward.1} parent=11 // pred_region
        _
      $region32: #{evagan_forward.1} parent=11 // pred_fallthru
        _
      // Predicated region
      $region33: #{evagan_forward.1} parent=11 // pred_check
        %p356 = pneg %p214
      $region34: #{evagan_forward.1} parent=11 // pred_check_branch
        %358 = sbr.rel (%p356) target = $region36
      $region35: #{evagan_forward.1} parent=11 // pred_region
        _
      $region36: #{evagan_forward.1} parent=11 // pred_fallthru
        _
      // Predicated region
      $region37: #{evagan_forward.1} parent=11 // pred_check
        %p359 = pneg %p235
      $region38: #{evagan_forward.1} parent=11 // pred_check_branch
        %361 = sbr.rel (%p359) target = $region40
      $region39: #{evagan_forward.1} parent=11 // pred_region
        _
      $region40: #{evagan_forward.1} parent=11 // pred_fallthru
        _
      // Predicated region
      $region41: #{evagan_forward.1} parent=11 // pred_check
        %p362 = pneg %p256
      $region42: #{evagan_forward.1} parent=11 // pred_check_branch
        %364 = sbr.rel (%p362) target = $region44
      $region43: #{evagan_forward.1} parent=11 // pred_region
        _
      $region44: #{evagan_forward.1} parent=11 // pred_fallthru
        _
      // Predicated region
      $region45: #{evagan_forward.1} parent=11 // pred_check
        %p365 = pneg %p277
      $region46: #{evagan_forward.1} parent=11 // pred_check_branch
        %367 = sbr.rel (%p365) target = $region48
      $region47: #{evagan_forward.1} parent=11 // pred_region
        _
      $region48: #{evagan_forward.1} parent=11 // pred_fallthru
        _
      // Predicated region
      $region49: #{evagan_forward.1} parent=11 // pred_check
        %p368 = pneg %p298
      $region50: #{evagan_forward.1} parent=11 // pred_check_branch
        %370 = sbr.rel (%p368) target = $region52
      $region51: #{evagan_forward.1} parent=11 // pred_region
        _
      $region52: #{evagan_forward.1} parent=11 // pred_fallthru
        _
    $region12: #{evagan_forward.1} parent=5 // pred_fallthru
      _
    %p371 = scmp.lt.s32.totalorder %s18, 4
    // Predicated region
    $region53: #{evagan_forward.1} parent=5 // pred_check
      %p372 = pneg %p371
    $region54: #{evagan_forward.1} parent=5 // pred_check_branch
      %374 = sbr.rel (%p372) target = $region56
    $region55: #{evagan_forward.1} parent=5 // pred_region
      // Predicated region
      $region57: #{evagan_forward.1} parent=55 // pred_check
        %p375 = pneg %p52
      $region58: #{evagan_forward.1} parent=55 // pred_check_branch
        %377 = sbr.rel (%p375) target = $region60
      $region59: #{evagan_forward.1} parent=55 // pred_region
        %s378 = smul.u32 4, %s26
        %p379 = scmp.lt.s32.totalorder %s25, 1
        %s380 = scalar_select %p379, %s25, 1
        %p381 = scmp.lt.s32.totalorder %s378, 11
        %s382 = scalar_select %p381, %s378, 11
        %s383 = smul.addr %s380, 12
        %s384 = sadd.s32 %s382, %s383
        %s385 = smul.addr %s384, 4
        %s386 = scalar_lea.vmem %s0, %s385
        %s387 = smul.u32 4, %s26
      $region60: #{evagan_forward.1} parent=55 // pred_fallthru
        _
      // Predicated region
      $region61: #{evagan_forward.1} parent=55 // pred_check
        %p388 = pneg %p82
      $region62: #{evagan_forward.1} parent=55 // pred_check_branch
        %390 = sbr.rel (%p388) target = $region64
      $region63: #{evagan_forward.1} parent=55 // pred_region
        %s391 = sadd.s32 %s26, 1
        %s392 = smul.u32 4, %s391
        %p393 = scmp.lt.s32.totalorder %s25, 1
        %s394 = scalar_select %p393, %s25, 1
        %p395 = scmp.lt.s32.totalorder %s392, 11
        %s396 = scalar_select %p395, %s392, 11
        %s397 = smul.addr %s394, 12
        %s398 = sadd.s32 %s396, %s397
        %s399 = smul.addr %s398, 4
        %s400 = scalar_lea.vmem %s1, %s399
        %s401 = sadd.s32 %s26, 1
        %s402 = smul.u32 4, %s401
      $region64: #{evagan_forward.1} parent=55 // pred_fallthru
        _
    $region56: #{evagan_forward.1} parent=5 // pred_fallthru
      _
    %p403 = scmp.le.s32.totalorder 1, %s18
    %p404 = scmp.lt.s32.totalorder %s18, 5
    %p405 = pnand %p403, %p404
    %p406 = pneg %p405
    // Predicated region
    $region65: #{evagan_forward.1} parent=5 // pred_check
      _
    $region66: #{evagan_forward.1} parent=5 // pred_check_branch
      %408 = sbr.rel (%p405) target = $region68
    $region67: #{evagan_forward.1} parent=5 // pred_region
      %s409 = ssub.s32 %s18, 1
      %s410 = smul.u32 4, %s28
      %p411 = scmp.lt.s32.totalorder %s27, 1
      %s412 = scalar_select %p411, %s27, 1
      %p413 = scmp.lt.s32.totalorder %s410, 11
      %s414 = scalar_select %p413, %s410, 11
      %s415 = smul.addr %s412, 12
      %s416 = sadd.s32 %s414, %s415
      %s417 = smul.addr %s416, 4
      %s418 = scalar_lea.vmem %s0, %s417
      %p419 = pneg %p58
      %p420 = pneg %p55
      %s421 = sadd.s32 %s28, 1
      %s422 = smul.u32 4, %s421
      %p423 = scmp.lt.s32.totalorder %s27, 1
      %s424 = scalar_select %p423, %s27, 1
      %p425 = scmp.lt.s32.totalorder %s422, 11
      %s426 = scalar_select %p425, %s422, 11
      %s427 = smul.addr %s424, 12
      %s428 = sadd.s32 %s426, %s427
      %s429 = smul.addr %s428, 4
      %s430 = scalar_lea.vmem %s1, %s429
      %p431 = pneg %p88
      %p432 = pneg %p85
      %p433 = pneg %p109
      %p434 = pneg %p106
      %p435 = pneg %p130
      %p436 = pneg %p127
      %p437 = pneg %p151
      %p438 = pneg %p148
      %p439 = pneg %p172
      %p440 = pneg %p169
      %p441 = pneg %p193
      %p442 = pneg %p190
      %p443 = pneg %p214
      %p444 = pneg %p211
      %p445 = pneg %p235
      %p446 = pneg %p232
      %p447 = pneg %p256
      %p448 = pneg %p253
      %p449 = pneg %p277
      %p450 = pneg %p274
      %p451 = pneg %p298
      %p452 = pneg %p295
      %p453 = pneg %p326
      %p454 = pneg %p323
      %s455 = smul.u32 4, %s28
      %p456 = scmp.lt.s32.totalorder %s27, 1
      %s457 = scalar_select %p456, %s27, 1
      %p458 = scmp.lt.s32.totalorder %s455, 7
      %s459 = scalar_select %p458, %s455, 7
      %s460 = smul.addr %s457, 8
      %s461 = sadd.s32 %s459, %s460
      %s462 = smul.addr %s461, 8
      %s463 = scalar_lea.vmem %s12, %s462
      %s464 = smul.u32 4, %s28
      %p465 = scmp.lt.s32.totalorder %s27, 1
      %s466 = scalar_select %p465, %s27, 1
      %p467 = scmp.lt.s32.totalorder %s464, 11
      %s468 = scalar_select %p467, %s464, 11
      %s469 = smul.addr %s466, 12
      %s470 = sadd.s32 %s468, %s469
      %s471 = smul.addr %s470, 4
      %s472 = scalar_lea.vmem %s0, %s471
      %s473 = smul.u32 4, %s28
      %s474 = sadd.s32 %s28, 1
      %s475 = smul.u32 4, %s474
      %p476 = scmp.lt.s32.totalorder %s27, 1
      %s477 = scalar_select %p476, %s27, 1
      %p478 = scmp.lt.s32.totalorder %s475, 11
      %s479 = scalar_select %p478, %s475, 11
      %s480 = smul.addr %s477, 12
      %s481 = sadd.s32 %s479, %s480
      %s482 = smul.addr %s481, 4
      %s483 = scalar_lea.vmem %s1, %s482
      %s484 = sadd.s32 %s28, 1
      %s485 = smul.u32 4, %s484
      %s486 = smul.u32 4, %s28
      %p487 = scmp.lt.s32.totalorder %s27, 1
      %s488 = scalar_select %p487, %s27, 1
      %p489 = scmp.lt.s32.totalorder %s486, 7
      %s490 = scalar_select %p489, %s486, 7
      %s491 = smul.addr %s488, 8
      %s492 = sadd.s32 %s490, %s491
      %s493 = smul.addr %s492, 8
      %s494 = scalar_lea.vmem %s12, %s493
      %s495 = smul.u32 4, %s28
      %s497 = smul.u32 %s28, 32
      %v498 = vld [vmem:[%s472] sm:$0xf]
      %v499 = vld [vmem:[%s472 + $0x4] sm:$0xf]
      %v500 = vld [vmem:[%s472 + $0x8] sm:$0xf]
      %v501 = vld [vmem:[%s472 + $0xc] sm:$0xf]
      %v502 = vld [vmem:[%s483] sm:$0xf]
      %v503 = vld [vmem:[%s483 + $0x4] sm:$0xf]
      %v504 = vld [vmem:[%s483 + $0x8] sm:$0xf]
      %v505 = vld [vmem:[%s483 + $0xc] sm:$0xf]
      %v510 = vunpack.c.l.b16 %v498
      %v511 = vunpack.c.l.b16 %v499
      %v512 = vunpack.c.l.b16 %v500
      %v513 = vunpack.c.l.b16 %v501
      %v514 = vpack.c.b16 %v511, %v510
      %v515 = vpack.c.b16 %v513, %v512
      %v522 = vunpack.c.l.b16 %v502
      %v523 = vunpack.c.l.b16 %v503
      %v524 = vunpack.c.l.b16 %v504
      %v525 = vunpack.c.l.b16 %v505
      %v526 = vpack.c.b16 %v523, %v522
      %v527 = vpack.c.b16 %v525, %v524
      %vm530 = vsmask.f32 7424
      %v532 = vshrl.u32 %v514, 16
      %v534 = vshll.u32 %v514, 16
      %v536 = vrot.slane %v534, 1
      %v537 = vor.u32 %v532, %v536
      %v539 = vshll.u32 %v515, 16
      %v541 = vrot.slane %v539, 1
      %v542 = vsel %vm530, %v537, %v541
      %v543 = vshrl.u32 %v515, 16
      %v545 = vor.u32 %v543, %v541
      %v547 = vshll.u32 %v526, 16
      %v549 = vrot.slane %v547, 1
      %v550 = vsel %vm530, %v545, %v549
      %v551 = vshrl.u32 %v526, 16
      %v553 = vor.u32 %v551, %v549
      %v555 = vshll.u32 %v527, 16
      %v557 = vrot.slane %v555, 1
      %v558 = vsel %vm530, %v553, %v557
      %v559 = vshrl.u32 %v527, 16
      %v561 = vor.u32 %v559, %v557
      %vm566 = vcmask 1046528
      %v567 = vrot.slane %v514, 1
      %v568 = vrot.slane %v515, 1
      %v569 = vsel %vm566, %v567, %v568
      %v570 = vrot.slane %v526, 1
      %v571 = vsel %vm566, %v568, %v570
      %v572 = vrot.slane %v527, 1
      %v573 = vsel %vm566, %v570, %v572
      %vm578 = vsmask.f32 6400
      %v579 = vrot.slane %v532, 1
      %v580 = vrot.slane %v534, 2
      %v581 = vor.u32 %v579, %v580
      %v582 = vrot.slane %v543, 1
      %v583 = vrot.slane %v539, 2
      %v584 = vor.u32 %v582, %v583
      %v585 = vsel %vm578, %v581, %v584
      %v586 = vrot.slane %v551, 1
      %v587 = vrot.slane %v547, 2
      %v588 = vor.u32 %v586, %v587
      %v589 = vsel %vm578, %v584, %v588
      %v590 = vrot.slane %v559, 1
      %v591 = vrot.slane %v555, 2
      %v592 = vor.u32 %v590, %v591
      %v593 = vsel %vm578, %v588, %v592
      %vm598 = vcmask 1045504
      %v599 = vrot.slane %v514, 2
      %v600 = vrot.slane %v515, 2
      %v601 = vsel %vm598, %v599, %v600
      %v602 = vrot.slane %v526, 2
      %v603 = vsel %vm598, %v600, %v602
      %v604 = vrot.slane %v527, 2
      %v605 = vsel %vm598, %v602, %v604
      %vm610 = vsmask.f32 5376
      %v611 = vrot.slane %v532, 2
      %v612 = vrot.slane %v534, 3
      %v613 = vor.u32 %v611, %v612
      %v614 = vrot.slane %v543, 2
      %v615 = vrot.slane %v539, 3
      %v616 = vor.u32 %v614, %v615
      %v617 = vsel %vm610, %v613, %v616
      %v618 = vrot.slane %v551, 2
      %v619 = vrot.slane %v547, 3
      %v620 = vor.u32 %v618, %v619
      %v621 = vsel %vm610, %v616, %v620
      %v622 = vrot.slane %v559, 2
      %v623 = vrot.slane %v555, 3
      %v624 = vor.u32 %v622, %v623
      %v625 = vsel %vm610, %v620, %v624
      %vm630 = vcmask 1044480
      %v631 = vrot.slane %v514, 3
      %v632 = vrot.slane %v515, 3
      %v633 = vsel %vm630, %v631, %v632
      %v634 = vrot.slane %v526, 3
      %v635 = vsel %vm630, %v632, %v634
      %v636 = vrot.slane %v527, 3
      %v637 = vsel %vm630, %v634, %v636
      %v642 = vld [vmem:[%s2] sm:$0xf]
      %v643 = vld [vmem:[%s2 + $0x4] sm:$0xf]
      %v644 = vld [vmem:[%s2 + $0x8] sm:$0xf]
      %v645 = vld [vmem:[%s2 + $0xc] sm:$0xf]
      %v646 = vld [vmem:[%s2 + $0x10] sm:$0xf]
      %v647 = vld [vmem:[%s2 + $0x14] sm:$0xf]
      %v648 = vld [vmem:[%s2 + $0x18] sm:$0xf]
      %v649 = vld [vmem:[%s2 + $0x1c] sm:$0xf]
      %v650 = vld [vmem:[%s2 + $0x20] sm:$0xf]
      %v651 = vld [vmem:[%s2 + $0x24] sm:$0xf]
      %v652 = vld [vmem:[%s2 + $0x28] sm:$0xf]
      %v653 = vld [vmem:[%s2 + $0x2c] sm:$0xf]
      %v654 = vld [vmem:[%s2 + $0x30] sm:$0xf]
      %v655 = vld [vmem:[%s2 + $0x34] sm:$0xf]
      %v656 = vld [vmem:[%s2 + $0x38] sm:$0xf]
      %v657 = vld [vmem:[%s2 + $0x3c] sm:$0xf]
      %v658 = vld [vmem:[%s2 + $0x40] sm:$0xf]
      %v659 = vld [vmem:[%s2 + $0x44] sm:$0xf]
      %v660 = vld [vmem:[%s2 + $0x48] sm:$0xf]
      %v661 = vld [vmem:[%s2 + $0x4c] sm:$0xf]
      %v662 = vld [vmem:[%s2 + $0x50] sm:$0xf]
      %v663 = vld [vmem:[%s2 + $0x54] sm:$0xf]
      %v664 = vld [vmem:[%s2 + $0x58] sm:$0xf]
      %v665 = vld [vmem:[%s2 + $0x5c] sm:$0xf]
      %v666 = vld [vmem:[%s2 + $0x60] sm:$0xf]
      %v667 = vld [vmem:[%s2 + $0x64] sm:$0xf]
      %v668 = vld [vmem:[%s2 + $0x68] sm:$0xf]
      %v669 = vld [vmem:[%s2 + $0x6c] sm:$0xf]
      %v670 = vld [vmem:[%s2 + $0x70] sm:$0xf]
      %v671 = vld [vmem:[%s2 + $0x74] sm:$0xf]
      %v672 = vld [vmem:[%s2 + $0x78] sm:$0xf]
      %v673 = vld [vmem:[%s2 + $0x7c] sm:$0xf]
      %v674 = vld [vmem:[%s2 + $0x80] sm:$0xf]
      %v675 = vld [vmem:[%s2 + $0x84] sm:$0xf]
      %v676 = vld [vmem:[%s2 + $0x88] sm:$0xf]
      %v677 = vld [vmem:[%s2 + $0x8c] sm:$0xf]
      %v678 = vld [vmem:[%s2 + $0x90] sm:$0xf]
      %v679 = vld [vmem:[%s2 + $0x94] sm:$0xf]
      %v680 = vld [vmem:[%s2 + $0x98] sm:$0xf]
      %v681 = vld [vmem:[%s2 + $0x9c] sm:$0xf]
      %v682 = vld [vmem:[%s2 + $0xa0] sm:$0xf]
      %v683 = vld [vmem:[%s2 + $0xa4] sm:$0xf]
      %v684 = vld [vmem:[%s2 + $0xa8] sm:$0xf]
      %v685 = vld [vmem:[%s2 + $0xac] sm:$0xf]
      %v686 = vld [vmem:[%s2 + $0xb0] sm:$0xf]
      %v687 = vld [vmem:[%s2 + $0xb4] sm:$0xf]
      %v688 = vld [vmem:[%s2 + $0xb8] sm:$0xf]
      %v689 = vld [vmem:[%s2 + $0xbc] sm:$0xf]
      %v690 = vld [vmem:[%s2 + $0xc0] sm:$0xf]
      %v691 = vld [vmem:[%s2 + $0xc4] sm:$0xf]
      %v692 = vld [vmem:[%s2 + $0xc8] sm:$0xf]
      %v693 = vld [vmem:[%s2 + $0xcc] sm:$0xf]
      %v694 = vld [vmem:[%s2 + $0xd0] sm:$0xf]
      %v695 = vld [vmem:[%s2 + $0xd4] sm:$0xf]
      %v696 = vld [vmem:[%s2 + $0xd8] sm:$0xf]
      %v697 = vld [vmem:[%s2 + $0xdc] sm:$0xf]
      %v698 = vld [vmem:[%s2 + $0xe0] sm:$0xf]
      %v699 = vld [vmem:[%s2 + $0xe4] sm:$0xf]
      %v700 = vld [vmem:[%s2 + $0xe8] sm:$0xf]
      %v701 = vld [vmem:[%s2 + $0xec] sm:$0xf]
      %v702 = vld [vmem:[%s2 + $0xf0] sm:$0xf]
      %v703 = vld [vmem:[%s2 + $0xf4] sm:$0xf]
      %v704 = vld [vmem:[%s2 + $0xf8] sm:$0xf]
      %v705 = vld [vmem:[%s2 + $0xfc] sm:$0xf]
      %v706 = vld [vmem:[%s2 + $0x100] sm:$0xf]
      %v707 = vld [vmem:[%s2 + $0x104] sm:$0xf]
      %v708 = vld [vmem:[%s2 + $0x108] sm:$0xf]
      %v709 = vld [vmem:[%s2 + $0x10c] sm:$0xf]
      %v710 = vld [vmem:[%s2 + $0x110] sm:$0xf]
      %v711 = vld [vmem:[%s2 + $0x114] sm:$0xf]
      %v712 = vld [vmem:[%s2 + $0x118] sm:$0xf]
      %v713 = vld [vmem:[%s2 + $0x11c] sm:$0xf]
      %v714 = vld [vmem:[%s2 + $0x120] sm:$0xf]
      %v715 = vld [vmem:[%s2 + $0x124] sm:$0xf]
      %v716 = vld [vmem:[%s2 + $0x128] sm:$0xf]
      %v717 = vld [vmem:[%s2 + $0x12c] sm:$0xf]
      %v718 = vld [vmem:[%s2 + $0x130] sm:$0xf]
      %v719 = vld [vmem:[%s2 + $0x134] sm:$0xf]
      %v720 = vld [vmem:[%s2 + $0x138] sm:$0xf]
      %v721 = vld [vmem:[%s2 + $0x13c] sm:$0xf]
      %v722 = vld [vmem:[%s2 + $0x140] sm:$0xf]
      %v723 = vld [vmem:[%s2 + $0x144] sm:$0xf]
      %v724 = vld [vmem:[%s2 + $0x148] sm:$0xf]
      %v725 = vld [vmem:[%s2 + $0x14c] sm:$0xf]
      %v726 = vld [vmem:[%s2 + $0x150] sm:$0xf]
      %v727 = vld [vmem:[%s2 + $0x154] sm:$0xf]
      %v728 = vld [vmem:[%s2 + $0x158] sm:$0xf]
      %v729 = vld [vmem:[%s2 + $0x15c] sm:$0xf]
      %v730 = vld [vmem:[%s2 + $0x160] sm:$0xf]
      %v731 = vld [vmem:[%s2 + $0x164] sm:$0xf]
      %v732 = vld [vmem:[%s2 + $0x168] sm:$0xf]
      %v733 = vld [vmem:[%s2 + $0x16c] sm:$0xf]
      %v734 = vld [vmem:[%s2 + $0x170] sm:$0xf]
      %v735 = vld [vmem:[%s2 + $0x174] sm:$0xf]
      %v736 = vld [vmem:[%s2 + $0x178] sm:$0xf]
      %v737 = vld [vmem:[%s2 + $0x17c] sm:$0xf]
      %v738 = vld [vmem:[%s2 + $0x180] sm:$0xf]
      %v739 = vld [vmem:[%s2 + $0x184] sm:$0xf]
      %v740 = vld [vmem:[%s2 + $0x188] sm:$0xf]
      %v741 = vld [vmem:[%s2 + $0x18c] sm:$0xf]
      %v742 = vld [vmem:[%s2 + $0x190] sm:$0xf]
      %v743 = vld [vmem:[%s2 + $0x194] sm:$0xf]
      %v744 = vld [vmem:[%s2 + $0x198] sm:$0xf]
      %v745 = vld [vmem:[%s2 + $0x19c] sm:$0xf]
      %v746 = vld [vmem:[%s2 + $0x1a0] sm:$0xf]
      %v747 = vld [vmem:[%s2 + $0x1a4] sm:$0xf]
      %v748 = vld [vmem:[%s2 + $0x1a8] sm:$0xf]
      %v749 = vld [vmem:[%s2 + $0x1ac] sm:$0xf]
      %v750 = vld [vmem:[%s2 + $0x1b0] sm:$0xf]
      %v751 = vld [vmem:[%s2 + $0x1b4] sm:$0xf]
      %v752 = vld [vmem:[%s2 + $0x1b8] sm:$0xf]
      %v753 = vld [vmem:[%s2 + $0x1bc] sm:$0xf]
      %v754 = vld [vmem:[%s3] sm:$0x1]
      %v756 = vlaneseq
      %v757 = vshrl.u32 %v756, 7
      %v758 = vsub.s32 0, %v757
      %v759 = vrot.slane %v754, %v758
      %v873 = vunpack.c.l.b16 %v642
      %v874 = vunpack.c.l.b16 %v643
      %v875 = vunpack.c.l.b16 %v644
      %v876 = vunpack.c.l.b16 %v645
      %v877 = vunpack.c.l.b16 %v646
      %v878 = vunpack.c.l.b16 %v647
      %v879 = vunpack.c.l.b16 %v648
      %v880 = vunpack.c.l.b16 %v649
      %v881 = vunpack.c.l.b16 %v650
      %v882 = vunpack.c.l.b16 %v651
      %v883 = vunpack.c.l.b16 %v652
      %v884 = vunpack.c.l.b16 %v653
      %v885 = vunpack.c.l.b16 %v654
      %v886 = vunpack.c.l.b16 %v655
      %v887 = vunpack.c.l.b16 %v656
      %v888 = vunpack.c.l.b16 %v657
      %v889 = vunpack.c.l.b16 %v658
      %v890 = vunpack.c.l.b16 %v659
      %v891 = vunpack.c.l.b16 %v660
      %v892 = vunpack.c.l.b16 %v661
      %v893 = vunpack.c.l.b16 %v662
      %v894 = vunpack.c.l.b16 %v663
      %v895 = vunpack.c.l.b16 %v664
      %v896 = vunpack.c.l.b16 %v665
      %v897 = vunpack.c.l.b16 %v666
      %v898 = vunpack.c.l.b16 %v667
      %v899 = vunpack.c.l.b16 %v668
      %v900 = vunpack.c.l.b16 %v669
      %v901 = vunpack.c.l.b16 %v670
      %v902 = vunpack.c.l.b16 %v671
      %v903 = vunpack.c.l.b16 %v672
      %v904 = vunpack.c.l.b16 %v673
      %v905 = vunpack.c.l.b16 %v674
      %v906 = vunpack.c.l.b16 %v675
      %v907 = vunpack.c.l.b16 %v676
      %v908 = vunpack.c.l.b16 %v677
      %v909 = vunpack.c.l.b16 %v678
      %v910 = vunpack.c.l.b16 %v679
      %v911 = vunpack.c.l.b16 %v680
      %v912 = vunpack.c.l.b16 %v681
      %v913 = vunpack.c.l.b16 %v682
      %v914 = vunpack.c.l.b16 %v683
      %v915 = vunpack.c.l.b16 %v684
      %v916 = vunpack.c.l.b16 %v685
      %v917 = vunpack.c.l.b16 %v686
      %v918 = vunpack.c.l.b16 %v687
      %v919 = vunpack.c.l.b16 %v688
      %v920 = vunpack.c.l.b16 %v689
      %v921 = vunpack.c.l.b16 %v690
      %v922 = vunpack.c.l.b16 %v691
      %v923 = vunpack.c.l.b16 %v692
      %v924 = vunpack.c.l.b16 %v693
      %v925 = vunpack.c.l.b16 %v694
      %v926 = vunpack.c.l.b16 %v695
      %v927 = vunpack.c.l.b16 %v696
      %v928 = vunpack.c.l.b16 %v697
      %v929 = vunpack.c.l.b16 %v698
      %v930 = vunpack.c.l.b16 %v699
      %v931 = vunpack.c.l.b16 %v700
      %v932 = vunpack.c.l.b16 %v701
      %v933 = vunpack.c.l.b16 %v702
      %v934 = vunpack.c.l.b16 %v703
      %v935 = vunpack.c.l.b16 %v704
      %v936 = vunpack.c.l.b16 %v705
      %v937 = vunpack.c.l.b16 %v706
      %v938 = vunpack.c.l.b16 %v707
      %v939 = vunpack.c.l.b16 %v708
      %v940 = vunpack.c.l.b16 %v709
      %v941 = vunpack.c.l.b16 %v710
      %v942 = vunpack.c.l.b16 %v711
      %v943 = vunpack.c.l.b16 %v712
      %v944 = vunpack.c.l.b16 %v713
      %v945 = vunpack.c.l.b16 %v714
      %v946 = vunpack.c.l.b16 %v715
      %v947 = vunpack.c.l.b16 %v716
      %v948 = vunpack.c.l.b16 %v717
      %v949 = vunpack.c.l.b16 %v718
      %v950 = vunpack.c.l.b16 %v719
      %v951 = vunpack.c.l.b16 %v720
      %v952 = vunpack.c.l.b16 %v721
      %v953 = vunpack.c.l.b16 %v722
      %v954 = vunpack.c.l.b16 %v723
      %v955 = vunpack.c.l.b16 %v724
      %v956 = vunpack.c.l.b16 %v725
      %v957 = vunpack.c.l.b16 %v726
      %v958 = vunpack.c.l.b16 %v727
      %v959 = vunpack.c.l.b16 %v728
      %v960 = vunpack.c.l.b16 %v729
      %v961 = vunpack.c.l.b16 %v730
      %v962 = vunpack.c.l.b16 %v731
      %v963 = vunpack.c.l.b16 %v732
      %v964 = vunpack.c.l.b16 %v733
      %v965 = vunpack.c.l.b16 %v734
      %v966 = vunpack.c.l.b16 %v735
      %v967 = vunpack.c.l.b16 %v736
      %v968 = vunpack.c.l.b16 %v737
      %v969 = vunpack.c.l.b16 %v738
      %v970 = vunpack.c.l.b16 %v739
      %v971 = vunpack.c.l.b16 %v740
      %v972 = vunpack.c.l.b16 %v741
      %v973 = vunpack.c.l.b16 %v742
      %v974 = vunpack.c.l.b16 %v743
      %v975 = vunpack.c.l.b16 %v744
      %v976 = vunpack.c.l.b16 %v745
      %v977 = vunpack.c.l.b16 %v746
      %v978 = vunpack.c.l.b16 %v747
      %v979 = vunpack.c.l.b16 %v748
      %v980 = vunpack.c.l.b16 %v749
      %v981 = vunpack.c.l.b16 %v750
      %v982 = vunpack.c.l.b16 %v751
      %v983 = vunpack.c.l.b16 %v752
      %v984 = vunpack.c.l.b16 %v753
      %v985 = vpack.c.b16 %v874, %v873
      %v986 = vpack.c.b16 %v876, %v875
      %v987 = vpack.c.b16 %v878, %v877
      %v988 = vpack.c.b16 %v880, %v879
      %v989 = vpack.c.b16 %v882, %v881
      %v990 = vpack.c.b16 %v884, %v883
      %v991 = vpack.c.b16 %v886, %v885
      %v992 = vpack.c.b16 %v888, %v887
      %v993 = vpack.c.b16 %v890, %v889
      %v994 = vpack.c.b16 %v892, %v891
      %v995 = vpack.c.b16 %v894, %v893
      %v996 = vpack.c.b16 %v896, %v895
      %v997 = vpack.c.b16 %v898, %v897
      %v998 = vpack.c.b16 %v900, %v899
      %v999 = vpack.c.b16 %v902, %v901
      %v1000 = vpack.c.b16 %v904, %v903
      %v1001 = vpack.c.b16 %v906, %v905
      %v1002 = vpack.c.b16 %v908, %v907
      %v1003 = vpack.c.b16 %v910, %v909
      %v1004 = vpack.c.b16 %v912, %v911
      %v1005 = vpack.c.b16 %v914, %v913
      %v1006 = vpack.c.b16 %v916, %v915
      %v1007 = vpack.c.b16 %v918, %v917
      %v1008 = vpack.c.b16 %v920, %v919
      %v1009 = vpack.c.b16 %v922, %v921
      %v1010 = vpack.c.b16 %v924, %v923
      %v1011 = vpack.c.b16 %v926, %v925
      %v1012 = vpack.c.b16 %v928, %v927
      %v1013 = vpack.c.b16 %v930, %v929
      %v1014 = vpack.c.b16 %v932, %v931
      %v1015 = vpack.c.b16 %v934, %v933
      %v1016 = vpack.c.b16 %v936, %v935
      %v1017 = vpack.c.b16 %v938, %v937
      %v1018 = vpack.c.b16 %v940, %v939
      %v1019 = vpack.c.b16 %v942, %v941
      %v1020 = vpack.c.b16 %v944, %v943
      %v1021 = vpack.c.b16 %v946, %v945
      %v1022 = vpack.c.b16 %v948, %v947
      %v1023 = vpack.c.b16 %v950, %v949
      %v1024 = vpack.c.b16 %v952, %v951
      %v1025 = vpack.c.b16 %v954, %v953
      %v1026 = vpack.c.b16 %v956, %v955
      %v1027 = vpack.c.b16 %v958, %v957
      %v1028 = vpack.c.b16 %v960, %v959
      %v1029 = vpack.c.b16 %v962, %v961
      %v1030 = vpack.c.b16 %v964, %v963
      %v1031 = vpack.c.b16 %v966, %v965
      %v1032 = vpack.c.b16 %v968, %v967
      %v1033 = vpack.c.b16 %v970, %v969
      %v1034 = vpack.c.b16 %v972, %v971
      %v1035 = vpack.c.b16 %v974, %v973
      %v1036 = vpack.c.b16 %v976, %v975
      %v1037 = vpack.c.b16 %v978, %v977
      %v1038 = vpack.c.b16 %v980, %v979
      %v1039 = vpack.c.b16 %v982, %v981
      %v1040 = vpack.c.b16 %v984, %v983
      %1097 = vmatprep.subr.bf16.mxu0 0
      %1098 = vmatpush1.bf16.msra.mxu0 %v985
      %1099 = vmatprep.subr.bf16.mxu0 0
      %1100 = vmatpush1.bf16.msra.mxu0 %v986
      %1101 = vmatprep.subr.bf16.mxu0 0
      %1102 = vmatpush1.bf16.msra.mxu0 %v987
      %1103 = vmatprep.subr.bf16.mxu0 0
      %1104 = vmatpush1.bf16.msra.mxu0 %v988
      %1105 = vmatprep.subr.bf16.mxu0 0
      %1106 = vmatpush1.bf16.msra.mxu0 %v989
      %1107 = vmatprep.subr.bf16.mxu0 0
      %1108 = vmatpush1.bf16.msra.mxu0 %v990
      %1109 = vmatprep.subr.bf16.mxu0 0
      %1110 = vmatpush1.bf16.msra.mxu0 %v991
      %1111 = vmatprep.subr.bf16.mxu0 0
      %1112 = vmatpush1.bf16.msra.mxu0 %v992
      %1113 = vmatprep.subr.bf16.mxu0 0
      %1114 = vmatpush1.bf16.msra.mxu0 %v993
      %1115 = vmatprep.subr.bf16.mxu0 0
      %1116 = vmatpush1.bf16.msra.mxu0 %v994
      %1117 = vmatprep.subr.bf16.mxu0 0
      %1118 = vmatpush1.bf16.msra.mxu0 %v995
      %1119 = vmatprep.subr.bf16.mxu0 0
      %1120 = vmatpush1.bf16.msra.mxu0 %v996
      %1121 = vmatprep.subr.bf16.mxu0 0
      %1122 = vmatpush1.bf16.msra.mxu0 %v997
      %1123 = vmatprep.subr.bf16.mxu0 0
      %1124 = vmatpush1.bf16.msra.mxu0 %v998
      %1125 = vmatprep.subr.bf16.mxu0 0
      %1126 = vmatpush1.bf16.msra.mxu0 %v999
      %1127 = vmatprep.subr.bf16.mxu0 0
      %1128 = vmatpush1.bf16.msra.mxu0 %v1000
      %1129 = vmatprep.mubr.bf16.mxu0 %v542
      %1130 = vmatmul.mubr.bf16.gmra.mrb[0].mxu0 %v514
      %v1131 = vpop.f32.mrb[0].mxu0
      %v1132 = vadd.f32 %v759, %v1131
      %v1133 = vpop.f32.mrb[0].mxu0
      %v1134 = vpop.f32.mrb[0].mxu0
      %v1135 = vadd.f32 %v759, %v1134
      %v1136 = vpop.f32.mrb[0].mxu0
      %1137 = vmatprep.mubr.bf16.mxu0 %v550
      %1138 = vmatmul.mubr.bf16.gmra.mrb[0].mxu0 %v515
      %v1139 = vpop.f32.mrb[0].mxu0
      %v1140 = vadd.f32 %v759, %v1139
      %v1141 = vpop.f32.mrb[0].mxu0
      %v1142 = vpop.f32.mrb[0].mxu0
      %v1143 = vadd.f32 %v759, %v1142
      %v1144 = vpop.f32.mrb[0].mxu0
      %1145 = vmatprep.mubr.bf16.mxu0 %v558
      %1146 = vmatmul.mubr.bf16.gmra.mrb[0].mxu0 %v526
      %v1147 = vpop.f32.mrb[0].mxu0
      %v1148 = vadd.f32 %v759, %v1147
      %v1149 = vpop.f32.mrb[0].mxu0
      %v1150 = vpop.f32.mrb[0].mxu0
      %v1151 = vadd.f32 %v759, %v1150
      %v1152 = vpop.f32.mrb[0].mxu0
      %1153 = vmatprep.mubr.bf16.mxu0 %v561
      %1154 = vmatmul.mubr.bf16.gmra.mrb[0].mxu0 %v527
      %v1155 = vpop.f32.mrb[0].mxu0
      %v1156 = vadd.f32 %v759, %v1155
      %v1157 = vpop.f32.mrb[0].mxu0
      %v1158 = vpop.f32.mrb[0].mxu0
      %v1159 = vadd.f32 %v759, %v1158
      %v1160 = vpop.f32.mrb[0].mxu0
      %1161 = vdwg.mxu0
      %1162 = vmatprep.subr.bf16.mxu0 0
      %1163 = vmatpush1.bf16.msra.mxu0 %v1001
      %1164 = vmatprep.subr.bf16.mxu0 0
      %1165 = vmatpush1.bf16.msra.mxu0 %v1002
      %1166 = vmatprep.subr.bf16.mxu0 0
      %1167 = vmatpush1.bf16.msra.mxu0 %v1003
      %1168 = vmatprep.subr.bf16.mxu0 0
      %1169 = vmatpush1.bf16.msra.mxu0 %v1004
      %1170 = vmatprep.subr.bf16.mxu0 0
      %1171 = vmatpush1.bf16.msra.mxu0 %v1005
      %1172 = vmatprep.subr.bf16.mxu0 0
      %1173 = vmatpush1.bf16.msra.mxu0 %v1006
      %1174 = vmatprep.subr.bf16.mxu0 0
      %1175 = vmatpush1.bf16.msra.mxu0 %v1007
      %1176 = vmatprep.subr.bf16.mxu0 0
      %1177 = vmatpush1.bf16.msra.mxu0 %v1008
      %1178 = vmatprep.subr.bf16.mxu0 0
      %1179 = vmatpush1.bf16.msra.mxu0 %v1009
      %1180 = vmatprep.subr.bf16.mxu0 0
      %1181 = vmatpush1.bf16.msra.mxu0 %v1010
      %1182 = vmatprep.subr.bf16.mxu0 0
      %1183 = vmatpush1.bf16.msra.mxu0 %v1011
      %1184 = vmatprep.subr.bf16.mxu0 0
      %1185 = vmatpush1.bf16.msra.mxu0 %v1012
      %1186 = vmatprep.subr.bf16.mxu0 0
      %1187 = vmatpush1.bf16.msra.mxu0 %v1013
      %1188 = vmatprep.subr.bf16.mxu0 0
      %1189 = vmatpush1.bf16.msra.mxu0 %v1014
      %1190 = vmatprep.subr.bf16.mxu0 0
      %1191 = vmatpush1.bf16.msra.mxu0 %v1015
      %1192 = vmatprep.subr.bf16.mxu0 0
      %1193 = vmatpush1.bf16.msra.mxu0 %v1016
      %1194 = vmatprep.mubr.bf16.mxu0 %v585
      %1195 = vmatmul.mubr.bf16.gmra.mrb[0].mxu0 %v569
      %v1196 = vpop.f32.mrb[0].mxu0
      %v1197 = vadd.f32 %v1132, %v1196
      %v1198 = vpop.f32.mrb[0].mxu0
      %v1199 = vpop.f32.mrb[0].mxu0
      %v1200 = vadd.f32 %v1135, %v1199
      %v1201 = vpop.f32.mrb[0].mxu0
      %1202 = vmatprep.mubr.bf16.mxu0 %v589
      %1203 = vmatmul.mubr.bf16.gmra.mrb[0].mxu0 %v571
      %v1204 = vpop.f32.mrb[0].mxu0
      %v1205 = vadd.f32 %v1140, %v1204
      %v1206 = vpop.f32.mrb[0].mxu0
      %v1207 = vpop.f32.mrb[0].mxu0
      %v1208 = vadd.f32 %v1143, %v1207
      %v1209 = vpop.f32.mrb[0].mxu0
      %1210 = vmatprep.mubr.bf16.mxu0 %v593
      %1211 = vmatmul.mubr.bf16.gmra.mrb[0].mxu0 %v573
      %v1212 = vpop.f32.mrb[0].mxu0
      %v1213 = vadd.f32 %v1148, %v1212
      %v1214 = vpop.f32.mrb[0].mxu0
      %v1215 = vpop.f32.mrb[0].mxu0
      %v1216 = vadd.f32 %v1151, %v1215
      %v1217 = vpop.f32.mrb[0].mxu0
      %1218 = vmatprep.mubr.bf16.mxu0 %v592
      %1219 = vmatmul.mubr.bf16.gmra.mrb[0].mxu0 %v572
      %v1220 = vpop.f32.mrb[0].mxu0
      %v1221 = vadd.f32 %v1156, %v1220
      %v1222 = vpop.f32.mrb[0].mxu0
      %v1223 = vpop.f32.mrb[0].mxu0
      %v1224 = vadd.f32 %v1159, %v1223
      %v1225 = vpop.f32.mrb[0].mxu0
      %1226 = vdwg.mxu0
      %1227 = vmatprep.subr.bf16.mxu0 0
      %1228 = vmatpush1.bf16.msra.mxu0 %v1017
      %1229 = vmatprep.subr.bf16.mxu0 0
      %1230 = vmatpush1.bf16.msra.mxu0 %v1018
      %1231 = vmatprep.subr.bf16.mxu0 0
      %1232 = vmatpush1.bf16.msra.mxu0 %v1019
      %1233 = vmatprep.subr.bf16.mxu0 0
      %1234 = vmatpush1.bf16.msra.mxu0 %v1020
      %1235 = vmatprep.subr.bf16.mxu0 0
      %1236 = vmatpush1.bf16.msra.mxu0 %v1021
      %1237 = vmatprep.subr.bf16.mxu0 0
      %1238 = vmatpush1.bf16.msra.mxu0 %v1022
      %1239 = vmatprep.subr.bf16.mxu0 0
      %1240 = vmatpush1.bf16.msra.mxu0 %v1023
      %1241 = vmatprep.subr.bf16.mxu0 0
      %1242 = vmatpush1.bf16.msra.mxu0 %v1024
      %1243 = vmatprep.subr.bf16.mxu0 0
      %1244 = vmatpush1.bf16.msra.mxu0 %v1025
      %1245 = vmatprep.subr.bf16.mxu0 0
      %1246 = vmatpush1.bf16.msra.mxu0 %v1026
      %1247 = vmatprep.subr.bf16.mxu0 0
      %1248 = vmatpush1.bf16.msra.mxu0 %v1027
      %1249 = vmatprep.subr.bf16.mxu0 0
      %1250 = vmatpush1.bf16.msra.mxu0 %v1028
      %1251 = vmatprep.subr.bf16.mxu0 0
      %1252 = vmatpush1.bf16.msra.mxu0 %v1029
      %1253 = vmatprep.subr.bf16.mxu0 0
      %1254 = vmatpush1.bf16.msra.mxu0 %v1030
      %1255 = vmatprep.subr.bf16.mxu0 0
      %1256 = vmatpush1.bf16.msra.mxu0 %v1031
      %1257 = vmatprep.subr.bf16.mxu0 0
      %1258 = vmatpush1.bf16.msra.mxu0 %v1032
      %1259 = vmatprep.mubr.bf16.mxu0 %v617
      %1260 = vmatmul.mubr.bf16.gmra.mrb[0].mxu0 %v601
      %v1261 = vpop.f32.mrb[0].mxu0
      %v1262 = vadd.f32 %v1197, %v1261
      %v1263 = vpop.f32.mrb[0].mxu0
      %v1264 = vpop.f32.mrb[0].mxu0
      %v1265 = vadd.f32 %v1200, %v1264
      %v1266 = vpop.f32.mrb[0].mxu0
      %1267 = vmatprep.mubr.bf16.mxu0 %v621
      %1268 = vmatmul.mubr.bf16.gmra.mrb[0].mxu0 %v603
      %v1269 = vpop.f32.mrb[0].mxu0
      %v1270 = vadd.f32 %v1205, %v1269
      %v1271 = vpop.f32.mrb[0].mxu0
      %v1272 = vpop.f32.mrb[0].mxu0
      %v1273 = vadd.f32 %v1208, %v1272
      %v1274 = vpop.f32.mrb[0].mxu0
      %1275 = vmatprep.mubr.bf16.mxu0 %v625
      %1276 = vmatmul.mubr.bf16.gmra.mrb[0].mxu0 %v605
      %v1277 = vpop.f32.mrb[0].mxu0
      %v1278 = vadd.f32 %v1213, %v1277
      %v1279 = vpop.f32.mrb[0].mxu0
      %v1280 = vpop.f32.mrb[0].mxu0
      %v1281 = vadd.f32 %v1216, %v1280
      %v1282 = vpop.f32.mrb[0].mxu0
      %1283 = vmatprep.mubr.bf16.mxu0 %v624
      %1284 = vmatmul.mubr.bf16.gmra.mrb[0].mxu0 %v604
      %v1285 = vpop.f32.mrb[0].mxu0
      %v1286 = vadd.f32 %v1221, %v1285
      %v1287 = vpop.f32.mrb[0].mxu0
      %v1288 = vpop.f32.mrb[0].mxu0
      %v1289 = vadd.f32 %v1224, %v1288
      %v1290 = vpop.f32.mrb[0].mxu0
      %1291 = vdwg.mxu0
      %1292 = vmatprep.subr.bf16.mxu0 0
      %1293 = vmatpush1.bf16.msra.mxu0 %v1033
      %1294 = vmatprep.subr.bf16.mxu0 0
      %1295 = vmatpush1.bf16.msra.mxu0 %v1034
      %1296 = vmatprep.subr.bf16.mxu0 0
      %1297 = vmatpush1.bf16.msra.mxu0 %v1035
      %1298 = vmatprep.subr.bf16.mxu0 0
      %1299 = vmatpush1.bf16.msra.mxu0 %v1036
      %1300 = vmatprep.subr.bf16.mxu0 0
      %1301 = vmatpush1.bf16.msra.mxu0 %v1037
      %1302 = vmatprep.subr.bf16.mxu0 0
      %1303 = vmatpush1.bf16.msra.mxu0 %v1038
      %1304 = vmatprep.subr.bf16.mxu0 0
      %1305 = vmatpush1.bf16.msra.mxu0 %v1039
      %1306 = vmatprep.subr.bf16.mxu0 0
      %1307 = vmatpush1.bf16.msra.mxu0 %v1040
      %1308 = vmatprep.subr.bf16.mxu0 0
      %1309 = vmatpush1.bf16.msra.mxu0 0
      %1310 = vmatprep.subr.bf16.mxu0 0
      %1311 = vmatpush1.bf16.msra.mxu0 0
      %1312 = vmatprep.subr.bf16.mxu0 0
      %1313 = vmatpush1.bf16.msra.mxu0 0
      %1314 = vmatprep.subr.bf16.mxu0 0
      %1315 = vmatpush1.bf16.msra.mxu0 0
      %1316 = vmatprep.subr.bf16.mxu0 0
      %1317 = vmatpush1.bf16.msra.mxu0 0
      %1318 = vmatprep.subr.bf16.mxu0 0
      %1319 = vmatpush1.bf16.msra.mxu0 0
      %1320 = vmatprep.subr.bf16.mxu0 0
      %1321 = vmatpush1.bf16.msra.mxu0 0
      %1322 = vmatprep.subr.bf16.mxu0 0
      %1323 = vmatpush1.bf16.msra.mxu0 0
      %1324 = vmatprep.mubr.bf16.mxu0 0
      %1325 = vmatmul.mubr.bf16.gmra.mrb[0].mxu0 %v633
      %v1326 = vpop.f32.mrb[0].mxu0
      %v1327 = vadd.f32 %v1262, %v1326
      %v1328 = vpop.f32.mrb[0].mxu0
      %v1329 = vpop.f32.mrb[0].mxu0
      %v1330 = vadd.f32 %v1265, %v1329
      %v1331 = vpop.f32.mrb[0].mxu0
      %1332 = vmatprep.mubr.bf16.mxu0 0
      %1333 = vmatmul.mubr.bf16.gmra.mrb[0].mxu0 %v635
      %v1334 = vpop.f32.mrb[0].mxu0
      %v1335 = vadd.f32 %v1270, %v1334
      %v1336 = vpop.f32.mrb[0].mxu0
      %v1337 = vpop.f32.mrb[0].mxu0
      %v1338 = vadd.f32 %v1273, %v1337
      %v1339 = vpop.f32.mrb[0].mxu0
      %1340 = vmatprep.mubr.bf16.mxu0 0
      %1341 = vmatmul.mubr.bf16.gmra.mrb[0].mxu0 %v637
      %v1342 = vpop.f32.mrb[0].mxu0
      %v1343 = vadd.f32 %v1278, %v1342
      %v1344 = vpop.f32.mrb[0].mxu0
      %v1345 = vpop.f32.mrb[0].mxu0
      %v1346 = vadd.f32 %v1281, %v1345
      %v1347 = vpop.f32.mrb[0].mxu0
      %1348 = vmatprep.mubr.bf16.mxu0 0
      %1349 = vmatmul.mubr.bf16.gmra.mrb[0].mxu0 %v636
      %v1350 = vpop.f32.mrb[0].mxu0
      %v1351 = vadd.f32 %v1286, %v1350
      %v1352 = vpop.f32.mrb[0].mxu0
      %v1353 = vpop.f32.mrb[0].mxu0
      %v1354 = vadd.f32 %v1289, %v1353
      %v1355 = vpop.f32.mrb[0].mxu0
      %1356 = vdwg.mxu0
      %vm1357 = vcmp.ge.f32.partialorder %v1327, 0.0
      %vm1358 = vcmp.ge.f32.partialorder %v1330, 0.0
      %vm1359 = vcmp.ge.f32.partialorder %v1335, 0.0
      %vm1360 = vcmp.ge.f32.partialorder %v1338, 0.0
      %vm1361 = vcmp.ge.f32.partialorder %v1343, 0.0
      %vm1362 = vcmp.ge.f32.partialorder %v1346, 0.0
      %vm1363 = vcmp.ge.f32.partialorder %v1351, 0.0
      %vm1364 = vcmp.ge.f32.partialorder %v1354, 0.0
      %v1365 = vmul.f32 %v1327, 0.1
      %v1366 = vmul.f32 %v1330, 0.1
      %v1367 = vmul.f32 %v1335, 0.1
      %v1368 = vmul.f32 %v1338, 0.1
      %v1369 = vmul.f32 %v1343, 0.1
      %v1370 = vmul.f32 %v1346, 0.1
      %v1371 = vmul.f32 %v1351, 0.1
      %v1372 = vmul.f32 %v1354, 0.1
      %v1373 = vsel %vm1357, %v1327, %v1365
      %v1374 = vsel %vm1358, %v1330, %v1366
      %v1375 = vsel %vm1359, %v1335, %v1367
      %v1376 = vsel %vm1360, %v1338, %v1368
      %v1377 = vsel %vm1361, %v1343, %v1369
      %v1378 = vsel %vm1362, %v1346, %v1370
      %v1379 = vsel %vm1363, %v1351, %v1371
      %v1380 = vsel %vm1364, %v1354, %v1372
      %s1381 = sadd.s32 %s497, 4294967283
      %v1382 = vlaneseq
      %v1383 = vshrl.u32 %v1382, 7
      %v1384 = vadd.s32 %v1383, 8
      %v1385 = vadd.s32 %v1383, 16
      %v1386 = vadd.s32 %v1383, 24
      %v1387 = vadd.s32 %v1383, 32
      %v1388 = vadd.s32 %v1383, 40
      %v1389 = vadd.s32 %v1383, 48
      %v1390 = vadd.s32 %v1383, 56
      %v1391 = vstv %s1381
      %v1392 = vadd.s32 %v1391, %v1383
      %v1393 = vadd.s32 %v1391, %v1384
      %v1394 = vadd.s32 %v1391, %v1385
      %v1395 = vadd.s32 %v1391, %v1386
      %v1396 = vadd.s32 %v1391, %v1387
      %v1397 = vadd.s32 %v1391, %v1388
      %v1398 = vadd.s32 %v1391, %v1389
      %v1399 = vadd.s32 %v1391, %v1390
      %vm1400 = vcmp.ge.s32.totalorder %v1392, 0
      %vm1401 = vcmp.ge.s32.totalorder %v1393, 0
      %vm1402 = vcmp.ge.s32.totalorder %v1394, 0
      %vm1403 = vcmp.ge.s32.totalorder %v1395, 0
      %vm1404 = vcmp.ge.s32.totalorder %v1396, 0
      %vm1405 = vcmp.ge.s32.totalorder %v1397, 0
      %vm1406 = vcmp.ge.s32.totalorder %v1398, 0
      %vm1407 = vcmp.ge.s32.totalorder %v1399, 0
      %vm1408 = vcmp.lt.s32.totalorder %v1392, 64
      %vm1409 = vcmp.lt.s32.totalorder %v1393, 64
      %vm1410 = vcmp.lt.s32.totalorder %v1394, 64
      %vm1411 = vcmp.lt.s32.totalorder %v1395, 64
      %vm1412 = vcmp.lt.s32.totalorder %v1396, 64
      %vm1413 = vcmp.lt.s32.totalorder %v1397, 64
      %vm1414 = vcmp.lt.s32.totalorder %v1398, 64
      %vm1415 = vcmp.lt.s32.totalorder %v1399, 64
      %vm1416 = vmand %vm1400, %vm1408
      %vm1417 = vmand %vm1401, %vm1409
      %vm1418 = vmand %vm1402, %vm1410
      %vm1419 = vmand %vm1403, %vm1411
      %vm1420 = vmand %vm1404, %vm1412
      %vm1421 = vmand %vm1405, %vm1413
      %vm1422 = vmand %vm1406, %vm1414
      %vm1423 = vmand %vm1407, %vm1415
      %v1424 = vsel %vm1416, 1, 0
      %v1425 = vsel %vm1417, 1, 0
      %v1426 = vsel %vm1418, 1, 0
      %v1427 = vsel %vm1419, 1, 0
      %v1428 = vsel %vm1420, 1, 0
      %v1429 = vsel %vm1421, 1, 0
      %v1430 = vsel %vm1422, 1, 0
      %v1431 = vsel %vm1423, 1, 0
      %vm1432 = vcmp.eq.s32.totalorder %v1424, 1
      %vm1433 = vcmp.eq.s32.totalorder %v1425, 1
      %vm1434 = vcmp.eq.s32.totalorder %v1426, 1
      %vm1435 = vcmp.eq.s32.totalorder %v1427, 1
      %vm1436 = vcmp.eq.s32.totalorder %v1428, 1
      %vm1437 = vcmp.eq.s32.totalorder %v1429, 1
      %vm1438 = vcmp.eq.s32.totalorder %v1430, 1
      %vm1439 = vcmp.eq.s32.totalorder %v1431, 1
      %v1440 = vsel %vm1432, %v1373, 0.0
      %v1441 = vsel %vm1433, %v1374, 0.0
      %v1442 = vsel %vm1434, %v1375, 0.0
      %v1443 = vsel %vm1435, %v1376, 0.0
      %v1444 = vsel %vm1436, %v1377, 0.0
      %v1445 = vsel %vm1437, %v1378, 0.0
      %v1446 = vsel %vm1438, %v1379, 0.0
      %v1447 = vsel %vm1439, %v1380, 0.0
      %v1448 = vpack.c.bf16 %v1441, %v1440
      %v1449 = vpack.c.bf16 %v1443, %v1442
      %v1450 = vpack.c.bf16 %v1445, %v1444
      %v1451 = vpack.c.bf16 %v1447, %v1446
      %v1453 = vshrl.u32 %v1448, 16
      %v1455 = vshll.u32 %v1448, 16
      %v1457 = vrot.slane %v1455, 1
      %v1458 = vor.u32 %v1453, %v1457
      %v1460 = vshll.u32 %v1449, 16
      %v1462 = vrot.slane %v1460, 1
      %v1463 = vsel %vm530, %v1458, %v1462
      %v1464 = vshrl.u32 %v1449, 16
      %v1466 = vor.u32 %v1464, %v1462
      %v1468 = vshll.u32 %v1450, 16
      %v1470 = vrot.slane %v1468, 1
      %v1471 = vsel %vm530, %v1466, %v1470
      %v1472 = vshrl.u32 %v1450, 16
      %v1474 = vor.u32 %v1472, %v1470
      %v1476 = vshll.u32 %v1451, 16
      %v1478 = vrot.slane %v1476, 1
      %v1479 = vsel %vm530, %v1474, %v1478
      %v1480 = vshrl.u32 %v1451, 16
      %v1482 = vor.u32 %v1480, %v1478
      %v1491 = vrot.slane %v1448, 1
      %v1492 = vrot.slane %v1449, 1
      %v1493 = vsel %vm566, %v1491, %v1492
      %v1494 = vrot.slane %v1450, 1
      %v1495 = vsel %vm566, %v1492, %v1494
      %v1496 = vrot.slane %v1451, 1
      %v1497 = vsel %vm566, %v1494, %v1496
      %v1502 = vrot.slane %v1453, 1
      %v1503 = vrot.slane %v1455, 2
      %v1504 = vor.u32 %v1502, %v1503
      %v1505 = vrot.slane %v1464, 1
      %v1506 = vrot.slane %v1460, 2
      %v1507 = vor.u32 %v1505, %v1506
      %v1508 = vsel %vm578, %v1504, %v1507
      %v1509 = vrot.slane %v1472, 1
      %v1510 = vrot.slane %v1468, 2
      %v1511 = vor.u32 %v1509, %v1510
      %v1512 = vsel %vm578, %v1507, %v1511
      %v1513 = vrot.slane %v1480, 1
      %v1514 = vrot.slane %v1476, 2
      %v1515 = vor.u32 %v1513, %v1514
      %v1516 = vsel %vm578, %v1511, %v1515
      %v1521 = vrot.slane %v1448, 2
      %v1522 = vrot.slane %v1449, 2
      %v1523 = vsel %vm598, %v1521, %v1522
      %v1524 = vrot.slane %v1450, 2
      %v1525 = vsel %vm598, %v1522, %v1524
      %v1526 = vrot.slane %v1451, 2
      %v1527 = vsel %vm598, %v1524, %v1526
      %v1532 = vld [vmem:[%s4] sm:$0xff]
      %v1533 = vld [vmem:[%s4 + $0x8] sm:$0xff]
      %v1534 = vld [vmem:[%s4 + $0x10] sm:$0xff]
      %v1535 = vld [vmem:[%s4 + $0x18] sm:$0xff]
      %v1536 = vld [vmem:[%s4 + $0x20] sm:$0xff]
      %v1537 = vld [vmem:[%s4 + $0x28] sm:$0xff]
      %v1538 = vld [vmem:[%s4 + $0x30] sm:$0xff]
      %v1539 = vld [vmem:[%s4 + $0x38] sm:$0xff]
      %v1540 = vld [vmem:[%s4 + $0x40] sm:$0xff]
      %v1541 = vld [vmem:[%s4 + $0x48] sm:$0xff]
      %v1542 = vld [vmem:[%s4 + $0x50] sm:$0xff]
      %v1543 = vld [vmem:[%s4 + $0x58] sm:$0xff]
      %v1544 = vld [vmem:[%s4 + $0x60] sm:$0xff]
      %v1545 = vld [vmem:[%s4 + $0x68] sm:$0xff]
      %v1546 = vld [vmem:[%s4 + $0x70] sm:$0xff]
      %v1547 = vld [vmem:[%s4 + $0x78] sm:$0xff]
      %v1548 = vld [vmem:[%s4 + $0x80] sm:$0xff]
      %v1549 = vld [vmem:[%s4 + $0x88] sm:$0xff]
      %v1550 = vld [vmem:[%s4 + $0x90] sm:$0xff]
      %v1551 = vld [vmem:[%s4 + $0x98] sm:$0xff]
      %v1552 = vld [vmem:[%s4 + $0xa0] sm:$0xff]
      %v1553 = vld [vmem:[%s4 + $0xa8] sm:$0xff]
      %v1554 = vld [vmem:[%s4 + $0xb0] sm:$0xff]
      %v1555 = vld [vmem:[%s4 + $0xb8] sm:$0xff]
      %v1556 = vld [vmem:[%s4 + $0xc0] sm:$0xff]
      %v1557 = vld [vmem:[%s4 + $0xc8] sm:$0xff]
      %v1558 = vld [vmem:[%s4 + $0xd0] sm:$0xff]
      %v1559 = vld [vmem:[%s4 + $0xd8] sm:$0xff]
      %v1560 = vld [vmem:[%s4 + $0xe0] sm:$0xff]
      %v1561 = vld [vmem:[%s4 + $0xe8] sm:$0xff]
      %v1562 = vld [vmem:[%s4 + $0xf0] sm:$0xff]
      %v1563 = vld [vmem:[%s4 + $0xf8] sm:$0xff]
      %v1564 = vld [vmem:[%s4 + $0x100] sm:$0xff]
      %v1565 = vld [vmem:[%s4 + $0x108] sm:$0xff]
      %v1566 = vld [vmem:[%s4 + $0x110] sm:$0xff]
      %v1567 = vld [vmem:[%s4 + $0x118] sm:$0xff]
      %v1568 = vld [vmem:[%s4 + $0x120] sm:$0xff]
      %v1569 = vld [vmem:[%s4 + $0x128] sm:$0xff]
      %v1570 = vld [vmem:[%s4 + $0x130] sm:$0xff]
      %v1571 = vld [vmem:[%s4 + $0x138] sm:$0xff]
      %v1572 = vld [vmem:[%s4 + $0x140] sm:$0xff]
      %v1573 = vld [vmem:[%s4 + $0x148] sm:$0xff]
      %v1574 = vld [vmem:[%s4 + $0x150] sm:$0xff]
      %v1575 = vld [vmem:[%s4 + $0x158] sm:$0xff]
      %v1576 = vld [vmem:[%s4 + $0x160] sm:$0xff]
      %v1577 = vld [vmem:[%s4 + $0x168] sm:$0xff]
      %v1578 = vld [vmem:[%s4 + $0x170] sm:$0xff]
      %v1579 = vld [vmem:[%s4 + $0x178] sm:$0xff]
      %v1580 = vld [vmem:[%s4 + $0x180] sm:$0xff]
      %v1581 = vld [vmem:[%s4 + $0x188] sm:$0xff]
      %v1582 = vld [vmem:[%s4 + $0x190] sm:$0xff]
      %v1583 = vld [vmem:[%s4 + $0x198] sm:$0xff]
      %v1584 = vld [vmem:[%s4 + $0x1a0] sm:$0xff]
      %v1585 = vld [vmem:[%s4 + $0x1a8] sm:$0xff]
      %v1586 = vld [vmem:[%s4 + $0x1b0] sm:$0xff]
      %v1587 = vld [vmem:[%s4 + $0x1b8] sm:$0xff]
      %v1588 = vld [vmem:[%s4 + $0x1c0] sm:$0xff]
      %v1589 = vld [vmem:[%s4 + $0x1c8] sm:$0xff]
      %v1590 = vld [vmem:[%s4 + $0x1d0] sm:$0xff]
      %v1591 = vld [vmem:[%s4 + $0x1d8] sm:$0xff]
      %v1592 = vld [vmem:[%s4 + $0x1e0] sm:$0xff]
      %v1593 = vld [vmem:[%s4 + $0x1e8] sm:$0xff]
      %v1594 = vld [vmem:[%s4 + $0x1f0] sm:$0xff]
      %v1595 = vld [vmem:[%s4 + $0x1f8] sm:$0xff]
      %v1596 = vld [vmem:[%s4 + $0x200] sm:$0xff]
      %v1597 = vld [vmem:[%s4 + $0x208] sm:$0xff]
      %v1598 = vld [vmem:[%s4 + $0x210] sm:$0xff]
      %v1599 = vld [vmem:[%s4 + $0x218] sm:$0xff]
      %v1600 = vld [vmem:[%s4 + $0x220] sm:$0xff]
      %v1601 = vld [vmem:[%s4 + $0x228] sm:$0xff]
      %v1602 = vld [vmem:[%s4 + $0x230] sm:$0xff]
      %v1603 = vld [vmem:[%s4 + $0x238] sm:$0xff]
      %v1604 = vld [vmem:[%s4 + $0x240] sm:$0xff]
      %v1605 = vld [vmem:[%s4 + $0x248] sm:$0xff]
      %v1606 = vld [vmem:[%s4 + $0x250] sm:$0xff]
      %v1607 = vld [vmem:[%s4 + $0x258] sm:$0xff]
      %v1608 = vld [vmem:[%s4 + $0x260] sm:$0xff]
      %v1609 = vld [vmem:[%s4 + $0x268] sm:$0xff]
      %v1610 = vld [vmem:[%s4 + $0x270] sm:$0xff]
      %v1611 = vld [vmem:[%s4 + $0x278] sm:$0xff]
      %v1612 = vld [vmem:[%s5] sm:$0x3]
      %v1614 = vlaneseq
      %v1615 = vshrl.u32 %v1614, 7
      %v1616 = vsub.s32 0, %v1615
      %v1617 = vrot.slane %v1612, %v1616
      %v1618 = vlaneseq
      %v1619 = vshrl.u32 %v1618, 7
      %v1620 = vsub.s32 1, %v1619
      %v1621 = vrot.slane %v1612, %v1620
      %v1704 = vunpack.c.l.b16 %v1532
      %v1705 = vunpack.c.h.b16 %v1532
      %v1706 = vunpack.c.l.b16 %v1533
      %v1707 = vunpack.c.h.b16 %v1533
      %v1708 = vunpack.c.l.b16 %v1534
      %v1709 = vunpack.c.h.b16 %v1534
      %v1710 = vunpack.c.l.b16 %v1535
      %v1711 = vunpack.c.h.b16 %v1535
      %v1712 = vunpack.c.l.b16 %v1536
      %v1713 = vunpack.c.h.b16 %v1536
      %v1714 = vunpack.c.l.b16 %v1537
      %v1715 = vunpack.c.h.b16 %v1537
      %v1716 = vunpack.c.l.b16 %v1538
      %v1717 = vunpack.c.h.b16 %v1538
      %v1718 = vunpack.c.l.b16 %v1539
      %v1719 = vunpack.c.h.b16 %v1539
      %v1720 = vunpack.c.l.b16 %v1540
      %v1721 = vunpack.c.h.b16 %v1540
      %v1722 = vunpack.c.l.b16 %v1541
      %v1723 = vunpack.c.h.b16 %v1541
      %v1724 = vunpack.c.l.b16 %v1542
      %v1725 = vunpack.c.h.b16 %v1542
      %v1726 = vunpack.c.l.b16 %v1543
      %v1727 = vunpack.c.h.b16 %v1543
      %v1728 = vunpack.c.l.b16 %v1544
      %v1729 = vunpack.c.h.b16 %v1544
      %v1730 = vunpack.c.l.b16 %v1545
      %v1731 = vunpack.c.h.b16 %v1545
      %v1732 = vunpack.c.l.b16 %v1546
      %v1733 = vunpack.c.h.b16 %v1546
      %v1734 = vunpack.c.l.b16 %v1547
      %v1735 = vunpack.c.h.b16 %v1547
      %v1736 = vunpack.c.l.b16 %v1548
      %v1737 = vunpack.c.h.b16 %v1548
      %v1738 = vunpack.c.l.b16 %v1549
      %v1739 = vunpack.c.h.b16 %v1549
      %v1740 = vunpack.c.l.b16 %v1550
      %v1741 = vunpack.c.h.b16 %v1550
      %v1742 = vunpack.c.l.b16 %v1551
      %v1743 = vunpack.c.h.b16 %v1551
      %v1744 = vunpack.c.l.b16 %v1552
      %v1745 = vunpack.c.h.b16 %v1552
      %v1746 = vunpack.c.l.b16 %v1553
      %v1747 = vunpack.c.h.b16 %v1553
      %v1748 = vunpack.c.l.b16 %v1554
      %v1749 = vunpack.c.h.b16 %v1554
      %v1750 = vunpack.c.l.b16 %v1555
      %v1751 = vunpack.c.h.b16 %v1555
      %v1752 = vunpack.c.l.b16 %v1556
      %v1753 = vunpack.c.h.b16 %v1556
      %v1754 = vunpack.c.l.b16 %v1557
      %v1755 = vunpack.c.h.b16 %v1557
      %v1756 = vunpack.c.l.b16 %v1558
      %v1757 = vunpack.c.h.b16 %v1558
      %v1758 = vunpack.c.l.b16 %v1559
      %v1759 = vunpack.c.h.b16 %v1559
      %v1760 = vunpack.c.l.b16 %v1560
      %v1761 = vunpack.c.h.b16 %v1560
      %v1762 = vunpack.c.l.b16 %v1561
      %v1763 = vunpack.c.h.b16 %v1561
      %v1764 = vunpack.c.l.b16 %v1562
      %v1765 = vunpack.c.h.b16 %v1562
      %v1766 = vunpack.c.l.b16 %v1563
      %v1767 = vunpack.c.h.b16 %v1563
      %v1768 = vunpack.c.l.b16 %v1564
      %v1769 = vunpack.c.h.b16 %v1564
      %v1770 = vunpack.c.l.b16 %v1565
      %v1771 = vunpack.c.h.b16 %v1565
      %v1772 = vunpack.c.l.b16 %v1566
      %v1773 = vunpack.c.h.b16 %v1566
      %v1774 = vunpack.c.l.b16 %v1567
      %v1775 = vunpack.c.h.b16 %v1567
      %v1776 = vunpack.c.l.b16 %v1568
      %v1777 = vunpack.c.h.b16 %v1568
      %v1778 = vunpack.c.l.b16 %v1569
      %v1779 = vunpack.c.h.b16 %v1569
      %v1780 = vunpack.c.l.b16 %v1570
      %v1781 = vunpack.c.h.b16 %v1570
      %v1782 = vunpack.c.l.b16 %v1571
      %v1783 = vunpack.c.h.b16 %v1571
      %v1784 = vunpack.c.l.b16 %v1572
      %v1785 = vunpack.c.h.b16 %v1572
      %v1786 = vunpack.c.l.b16 %v1573
      %v1787 = vunpack.c.h.b16 %v1573
      %v1788 = vunpack.c.l.b16 %v1574
      %v1789 = vunpack.c.h.b16 %v1574
      %v1790 = vunpack.c.l.b16 %v1575
      %v1791 = vunpack.c.h.b16 %v1575
      %v1792 = vunpack.c.l.b16 %v1576
      %v1793 = vunpack.c.h.b16 %v1576
      %v1794 = vunpack.c.l.b16 %v1577
      %v1795 = vunpack.c.h.b16 %v1577
      %v1796 = vunpack.c.l.b16 %v1578
      %v1797 = vunpack.c.h.b16 %v1578
      %v1798 = vunpack.c.l.b16 %v1579
      %v1799 = vunpack.c.h.b16 %v1579
      %v1800 = vunpack.c.l.b16 %v1580
      %v1801 = vunpack.c.h.b16 %v1580
      %v1802 = vunpack.c.l.b16 %v1581
      %v1803 = vunpack.c.h.b16 %v1581
      %v1804 = vunpack.c.l.b16 %v1582
      %v1805 = vunpack.c.h.b16 %v1582
      %v1806 = vunpack.c.l.b16 %v1583
      %v1807 = vunpack.c.h.b16 %v1583
      %v1808 = vunpack.c.l.b16 %v1584
      %v1809 = vunpack.c.h.b16 %v1584
      %v1810 = vunpack.c.l.b16 %v1585
      %v1811 = vunpack.c.h.b16 %v1585
      %v1812 = vunpack.c.l.b16 %v1586
      %v1813 = vunpack.c.h.b16 %v1586
      %v1814 = vunpack.c.l.b16 %v1587
      %v1815 = vunpack.c.h.b16 %v1587
      %v1816 = vunpack.c.l.b16 %v1588
      %v1817 = vunpack.c.h.b16 %v1588
      %v1818 = vunpack.c.l.b16 %v1589
      %v1819 = vunpack.c.h.b16 %v1589
      %v1820 = vunpack.c.l.b16 %v1590
      %v1821 = vunpack.c.h.b16 %v1590
      %v1822 = vunpack.c.l.b16 %v1591
      %v1823 = vunpack.c.h.b16 %v1591
      %v1824 = vunpack.c.l.b16 %v1592
      %v1825 = vunpack.c.h.b16 %v1592
      %v1826 = vunpack.c.l.b16 %v1593
      %v1827 = vunpack.c.h.b16 %v1593
      %v1828 = vunpack.c.l.b16 %v1594
      %v1829 = vunpack.c.h.b16 %v1594
      %v1830 = vunpack.c.l.b16 %v1595
      %v1831 = vunpack.c.h.b16 %v1595
      %v1832 = vunpack.c.l.b16 %v1596
      %v1833 = vunpack.c.h.b16 %v1596
      %v1834 = vunpack.c.l.b16 %v1597
      %v1835 = vunpack.c.h.b16 %v1597
      %v1836 = vunpack.c.l.b16 %v1598
      %v1837 = vunpack.c.h.b16 %v1598
      %v1838 = vunpack.c.l.b16 %v1599
      %v1839 = vunpack.c.h.b16 %v1599
      %v1840 = vunpack.c.l.b16 %v1600
      %v1841 = vunpack.c.h.b16 %v1600
      %v1842 = vunpack.c.l.b16 %v1601
      %v1843 = vunpack.c.h.b16 %v1601
      %v1844 = vunpack.c.l.b16 %v1602
      %v1845 = vunpack.c.h.b16 %v1602
      %v1846 = vunpack.c.l.b16 %v1603
      %v1847 = vunpack.c.h.b16 %v1603
      %v1848 = vunpack.c.l.b16 %v1604
      %v1849 = vunpack.c.h.b16 %v1604
      %v1850 = vunpack.c.l.b16 %v1605
      %v1851 = vunpack.c.h.b16 %v1605
      %v1852 = vunpack.c.l.b16 %v1606
      %v1853 = vunpack.c.h.b16 %v1606
      %v1854 = vunpack.c.l.b16 %v1607
      %v1855 = vunpack.c.h.b16 %v1607
      %v1856 = vunpack.c.l.b16 %v1608
      %v1857 = vunpack.c.h.b16 %v1608
      %v1858 = vunpack.c.l.b16 %v1609
      %v1859 = vunpack.c.h.b16 %v1609
      %v1860 = vunpack.c.l.b16 %v1610
      %v1861 = vunpack.c.h.b16 %v1610
      %v1862 = vunpack.c.l.b16 %v1611
      %v1863 = vunpack.c.h.b16 %v1611
      %v1864 = vpack.c.b16 %v1706, %v1704
      %v1865 = vpack.c.b16 %v1707, %v1705
      %v1866 = vpack.c.b16 %v1710, %v1708
      %v1867 = vpack.c.b16 %v1711, %v1709
      %v1868 = vpack.c.b16 %v1714, %v1712
      %v1869 = vpack.c.b16 %v1715, %v1713
      %v1870 = vpack.c.b16 %v1718, %v1716
      %v1871 = vpack.c.b16 %v1719, %v1717
      %v1872 = vpack.c.b16 %v1722, %v1720
      %v1873 = vpack.c.b16 %v1723, %v1721
      %v1874 = vpack.c.b16 %v1726, %v1724
      %v1875 = vpack.c.b16 %v1727, %v1725
      %v1876 = vpack.c.b16 %v1730, %v1728
      %v1877 = vpack.c.b16 %v1731, %v1729
      %v1878 = vpack.c.b16 %v1734, %v1732
      %v1879 = vpack.c.b16 %v1735, %v1733
      %v1880 = vpack.c.b16 %v1738, %v1736
      %v1881 = vpack.c.b16 %v1739, %v1737
      %v1882 = vpack.c.b16 %v1742, %v1740
      %v1883 = vpack.c.b16 %v1743, %v1741
      %v1884 = vpack.c.b16 %v1746, %v1744
      %v1885 = vpack.c.b16 %v1747, %v1745
      %v1886 = vpack.c.b16 %v1750, %v1748
      %v1887 = vpack.c.b16 %v1751, %v1749
      %v1888 = vpack.c.b16 %v1754, %v1752
      %v1889 = vpack.c.b16 %v1755, %v1753
      %v1890 = vpack.c.b16 %v1758, %v1756
      %v1891 = vpack.c.b16 %v1759, %v1757
      %v1892 = vpack.c.b16 %v1762, %v1760
      %v1893 = vpack.c.b16 %v1763, %v1761
      %v1894 = vpack.c.b16 %v1766, %v1764
      %v1895 = vpack.c.b16 %v1767, %v1765
      %v1896 = vpack.c.b16 %v1770, %v1768
      %v1897 = vpack.c.b16 %v1771, %v1769
      %v1898 = vpack.c.b16 %v1774, %v1772
      %v1899 = vpack.c.b16 %v1775, %v1773
      %v1900 = vpack.c.b16 %v1778, %v1776
      %v1901 = vpack.c.b16 %v1779, %v1777
      %v1902 = vpack.c.b16 %v1782, %v1780
      %v1903 = vpack.c.b16 %v1783, %v1781
      %v1904 = vpack.c.b16 %v1786, %v1784
      %v1905 = vpack.c.b16 %v1787, %v1785
      %v1906 = vpack.c.b16 %v1790, %v1788
      %v1907 = vpack.c.b16 %v1791, %v1789
      %v1908 = vpack.c.b16 %v1794, %v1792
      %v1909 = vpack.c.b16 %v1795, %v1793
      %v1910 = vpack.c.b16 %v1798, %v1796
      %v1911 = vpack.c.b16 %v1799, %v1797
      %v1912 = vpack.c.b16 %v1802, %v1800
      %v1913 = vpack.c.b16 %v1803, %v1801
      %v1914 = vpack.c.b16 %v1806, %v1804
      %v1915 = vpack.c.b16 %v1807, %v1805
      %v1916 = vpack.c.b16 %v1810, %v1808
      %v1917 = vpack.c.b16 %v1811, %v1809
      %v1918 = vpack.c.b16 %v1814, %v1812
      %v1919 = vpack.c.b16 %v1815, %v1813
      %v1920 = vpack.c.b16 %v1818, %v1816
      %v1921 = vpack.c.b16 %v1819, %v1817
      %v1922 = vpack.c.b16 %v1822, %v1820
      %v1923 = vpack.c.b16 %v1823, %v1821
      %v1924 = vpack.c.b16 %v1826, %v1824
      %v1925 = vpack.c.b16 %v1827, %v1825
      %v1926 = vpack.c.b16 %v1830, %v1828
      %v1927 = vpack.c.b16 %v1831, %v1829
      %v1928 = vpack.c.b16 %v1834, %v1832
      %v1929 = vpack.c.b16 %v1835, %v1833
      %v1930 = vpack.c.b16 %v1838, %v1836
      %v1931 = vpack.c.b16 %v1839, %v1837
      %v1932 = vpack.c.b16 %v1842, %v1840
      %v1933 = vpack.c.b16 %v1843, %v1841
      %v1934 = vpack.c.b16 %v1846, %v1844
      %v1935 = vpack.c.b16 %v1847, %v1845
      %v1936 = vpack.c.b16 %v1850, %v1848
      %v1937 = vpack.c.b16 %v1851, %v1849
      %v1938 = vpack.c.b16 %v1854, %v1852
      %v1939 = vpack.c.b16 %v1855, %v1853
      %v1940 = vpack.c.b16 %v1858, %v1856
      %v1941 = vpack.c.b16 %v1859, %v1857
      %v1942 = vpack.c.b16 %v1862, %v1860
      %v1943 = vpack.c.b16 %v1863, %v1861
      %2024 = vmatprep.subr.bf16.mxu0 %v1865
      %2025 = vmatpush1.bf16.msra.mxu0 %v1864
      %2026 = vmatprep.subr.bf16.mxu0 %v1867
      %2027 = vmatpush1.bf16.msra.mxu0 %v1866
      %2028 = vmatprep.subr.bf16.mxu0 %v1869
      %2029 = vmatpush1.bf16.msra.mxu0 %v1868
      %2030 = vmatprep.subr.bf16.mxu0 %v1871
      %2031 = vmatpush1.bf16.msra.mxu0 %v1870
      %2032 = vmatprep.subr.bf16.mxu0 %v1873
      %2033 = vmatpush1.bf16.msra.mxu0 %v1872
      %2034 = vmatprep.subr.bf16.mxu0 %v1875
      %2035 = vmatpush1.bf16.msra.mxu0 %v1874
      %2036 = vmatprep.subr.bf16.mxu0 %v1877
      %2037 = vmatpush1.bf16.msra.mxu0 %v1876
      %2038 = vmatprep.subr.bf16.mxu0 %v1879
      %2039 = vmatpush1.bf16.msra.mxu0 %v1878
      %2040 = vmatprep.subr.bf16.mxu0 %v1881
      %2041 = vmatpush1.bf16.msra.mxu0 %v1880
      %2042 = vmatprep.subr.bf16.mxu0 %v1883
      %2043 = vmatpush1.bf16.msra.mxu0 %v1882
      %2044 = vmatprep.subr.bf16.mxu0 %v1885
      %2045 = vmatpush1.bf16.msra.mxu0 %v1884
      %2046 = vmatprep.subr.bf16.mxu0 %v1887
      %2047 = vmatpush1.bf16.msra.mxu0 %v1886
      %2048 = vmatprep.subr.bf16.mxu0 %v1889
      %2049 = vmatpush1.bf16.msra.mxu0 %v1888
      %2050 = vmatprep.subr.bf16.mxu0 %v1891
      %2051 = vmatpush1.bf16.msra.mxu0 %v1890
      %2052 = vmatprep.subr.bf16.mxu0 %v1893
      %2053 = vmatpush1.bf16.msra.mxu0 %v1892
      %2054 = vmatprep.subr.bf16.mxu0 %v1895
      %2055 = vmatpush1.bf16.msra.mxu0 %v1894
      %2056 = vmatprep.mubr.bf16.mxu0 %v1463
      %2057 = vmatmul.mubr.bf16.gmra.mrb[0].mxu0 %v1448
      %v2058 = vpop.f32.mrb[0].mxu0
      %v2059 = vadd.f32 %v1617, %v2058
      %v2060 = vpop.f32.mrb[0].mxu0
      %v2061 = vadd.f32 %v1621, %v2060
      %v2062 = vpop.f32.mrb[0].mxu0
      %v2063 = vadd.f32 %v1617, %v2062
      %v2064 = vpop.f32.mrb[0].mxu0
      %v2065 = vadd.f32 %v1621, %v2064
      %2066 = vmatprep.mubr.bf16.mxu0 %v1471
      %2067 = vmatmul.mubr.bf16.gmra.mrb[0].mxu0 %v1449
      %v2068 = vpop.f32.mrb[0].mxu0
      %v2069 = vadd.f32 %v1617, %v2068
      %v2070 = vpop.f32.mrb[0].mxu0
      %v2071 = vadd.f32 %v1621, %v2070
      %v2072 = vpop.f32.mrb[0].mxu0
      %v2073 = vadd.f32 %v1617, %v2072
      %v2074 = vpop.f32.mrb[0].mxu0
      %v2075 = vadd.f32 %v1621, %v2074
      %2076 = vmatprep.mubr.bf16.mxu0 %v1479
      %2077 = vmatmul.mubr.bf16.gmra.mrb[0].mxu0 %v1450
      %v2078 = vpop.f32.mrb[0].mxu0
      %v2079 = vadd.f32 %v1617, %v2078
      %v2080 = vpop.f32.mrb[0].mxu0
      %v2081 = vadd.f32 %v1621, %v2080
      %v2082 = vpop.f32.mrb[0].mxu0
      %v2083 = vadd.f32 %v1617, %v2082
      %v2084 = vpop.f32.mrb[0].mxu0
      %v2085 = vadd.f32 %v1621, %v2084
      %2086 = vmatprep.mubr.bf16.mxu0 %v1482
      %2087 = vmatmul.mubr.bf16.gmra.mrb[0].mxu0 %v1451
      %v2088 = vpop.f32.mrb[0].mxu0
      %v2089 = vadd.f32 %v1617, %v2088
      %v2090 = vpop.f32.mrb[0].mxu0
      %v2091 = vadd.f32 %v1621, %v2090
      %v2092 = vpop.f32.mrb[0].mxu0
      %v2093 = vpop.f32.mrb[0].mxu0
      %2094 = vdwg.mxu0
      %2095 = vmatprep.subr.bf16.mxu0 %v1897
      %2096 = vmatpush1.bf16.msra.mxu0 %v1896
      %2097 = vmatprep.subr.bf16.mxu0 %v1899
      %2098 = vmatpush1.bf16.msra.mxu0 %v1898
      %2099 = vmatprep.subr.bf16.mxu0 %v1901
      %2100 = vmatpush1.bf16.msra.mxu0 %v1900
      %2101 = vmatprep.subr.bf16.mxu0 %v1903
      %2102 = vmatpush1.bf16.msra.mxu0 %v1902
      %2103 = vmatprep.subr.bf16.mxu0 %v1905
      %2104 = vmatpush1.bf16.msra.mxu0 %v1904
      %2105 = vmatprep.subr.bf16.mxu0 %v1907
      %2106 = vmatpush1.bf16.msra.mxu0 %v1906
      %2107 = vmatprep.subr.bf16.mxu0 %v1909
      %2108 = vmatpush1.bf16.msra.mxu0 %v1908
      %2109 = vmatprep.subr.bf16.mxu0 %v1911
      %2110 = vmatpush1.bf16.msra.mxu0 %v1910
      %2111 = vmatprep.subr.bf16.mxu0 %v1913
      %2112 = vmatpush1.bf16.msra.mxu0 %v1912
      %2113 = vmatprep.subr.bf16.mxu0 %v1915
      %2114 = vmatpush1.bf16.msra.mxu0 %v1914
      %2115 = vmatprep.subr.bf16.mxu0 %v1917
      %2116 = vmatpush1.bf16.msra.mxu0 %v1916
      %2117 = vmatprep.subr.bf16.mxu0 %v1919
      %2118 = vmatpush1.bf16.msra.mxu0 %v1918
      %2119 = vmatprep.subr.bf16.mxu0 %v1921
      %2120 = vmatpush1.bf16.msra.mxu0 %v1920
      %2121 = vmatprep.subr.bf16.mxu0 %v1923
      %2122 = vmatpush1.bf16.msra.mxu0 %v1922
      %2123 = vmatprep.subr.bf16.mxu0 %v1925
      %2124 = vmatpush1.bf16.msra.mxu0 %v1924
      %2125 = vmatprep.subr.bf16.mxu0 %v1927
      %2126 = vmatpush1.bf16.msra.mxu0 %v1926
      %2127 = vmatprep.mubr.bf16.mxu0 %v1508
      %2128 = vmatmul.mubr.bf16.gmra.mrb[0].mxu0 %v1493
      %v2129 = vpop.f32.mrb[0].mxu0
      %v2130 = vadd.f32 %v2059, %v2129
      %v2131 = vpop.f32.mrb[0].mxu0
      %v2132 = vadd.f32 %v2061, %v2131
      %v2133 = vpop.f32.mrb[0].mxu0
      %v2134 = vadd.f32 %v2063, %v2133
      %v2135 = vpop.f32.mrb[0].mxu0
      %v2136 = vadd.f32 %v2065, %v2135
      %2137 = vmatprep.mubr.bf16.mxu0 %v1512
      %2138 = vmatmul.mubr.bf16.gmra.mrb[0].mxu0 %v1495
      %v2139 = vpop.f32.mrb[0].mxu0
      %v2140 = vadd.f32 %v2069, %v2139
      %v2141 = vpop.f32.mrb[0].mxu0
      %v2142 = vadd.f32 %v2071, %v2141
      %v2143 = vpop.f32.mrb[0].mxu0
      %v2144 = vadd.f32 %v2073, %v2143
      %v2145 = vpop.f32.mrb[0].mxu0
      %v2146 = vadd.f32 %v2075, %v2145
      %2147 = vmatprep.mubr.bf16.mxu0 %v1516
      %2148 = vmatmul.mubr.bf16.gmra.mrb[0].mxu0 %v1497
      %v2149 = vpop.f32.mrb[0].mxu0
      %v2150 = vadd.f32 %v2079, %v2149
      %v2151 = vpop.f32.mrb[0].mxu0
      %v2152 = vadd.f32 %v2081, %v2151
      %v2153 = vpop.f32.mrb[0].mxu0
      %v2154 = vadd.f32 %v2083, %v2153
      %v2155 = vpop.f32.mrb[0].mxu0
      %v2156 = vadd.f32 %v2085, %v2155
      %2157 = vmatprep.mubr.bf16.mxu0 %v1515
      %2158 = vmatmul.mubr.bf16.gmra.mrb[0].mxu0 %v1496
      %v2159 = vpop.f32.mrb[0].mxu0
      %v2160 = vadd.f32 %v2089, %v2159
      %v2161 = vpop.f32.mrb[0].mxu0
      %v2162 = vadd.f32 %v2091, %v2161
      %v2163 = vpop.f32.mrb[0].mxu0
      %v2164 = vpop.f32.mrb[0].mxu0
      %2165 = vdwg.mxu0
      %2166 = vmatprep.subr.bf16.mxu0 %v1929
      %2167 = vmatpush1.bf16.msra.mxu0 %v1928
      %2168 = vmatprep.subr.bf16.mxu0 %v1931
      %2169 = vmatpush1.bf16.msra.mxu0 %v1930
      %2170 = vmatprep.subr.bf16.mxu0 %v1933
      %2171 = vmatpush1.bf16.msra.mxu0 %v1932
      %2172 = vmatprep.subr.bf16.mxu0 %v1935
      %2173 = vmatpush1.bf16.msra.mxu0 %v1934
      %2174 = vmatprep.subr.bf16.mxu0 %v1937
      %2175 = vmatpush1.bf16.msra.mxu0 %v1936
      %2176 = vmatprep.subr.bf16.mxu0 %v1939
      %2177 = vmatpush1.bf16.msra.mxu0 %v1938
      %2178 = vmatprep.subr.bf16.mxu0 %v1941
      %2179 = vmatpush1.bf16.msra.mxu0 %v1940
      %2180 = vmatprep.subr.bf16.mxu0 %v1943
      %2181 = vmatpush1.bf16.msra.mxu0 %v1942
      %2182 = vmatprep.subr.bf16.mxu0 0
      %2183 = vmatpush1.bf16.msra.mxu0 0
      %2184 = vmatprep.subr.bf16.mxu0 0
      %2185 = vmatpush1.bf16.msra.mxu0 0
      %2186 = vmatprep.subr.bf16.mxu0 0
      %2187 = vmatpush1.bf16.msra.mxu0 0
      %2188 = vmatprep.subr.bf16.mxu0 0
      %2189 = vmatpush1.bf16.msra.mxu0 0
      %2190 = vmatprep.subr.bf16.mxu0 0
      %2191 = vmatpush1.bf16.msra.mxu0 0
      %2192 = vmatprep.subr.bf16.mxu0 0
      %2193 = vmatpush1.bf16.msra.mxu0 0
      %2194 = vmatprep.subr.bf16.mxu0 0
      %2195 = vmatpush1.bf16.msra.mxu0 0
      %2196 = vmatprep.subr.bf16.mxu0 0
      %2197 = vmatpush1.bf16.msra.mxu0 0
      %2198 = vmatprep.mubr.bf16.mxu0 0
      %2199 = vmatmul.mubr.bf16.gmra.mrb[0].mxu0 %v1523
      %v2200 = vpop.f32.mrb[0].mxu0
      %v2201 = vadd.f32 %v2130, %v2200
      %v2202 = vpop.f32.mrb[0].mxu0
      %v2203 = vadd.f32 %v2132, %v2202
      %v2204 = vpop.f32.mrb[0].mxu0
      %v2205 = vadd.f32 %v2134, %v2204
      %v2206 = vpop.f32.mrb[0].mxu0
      %v2207 = vadd.f32 %v2136, %v2206
      %2208 = vmatprep.mubr.bf16.mxu0 0
      %2209 = vmatmul.mubr.bf16.gmra.mrb[0].mxu0 %v1525
      %v2210 = vpop.f32.mrb[0].mxu0
      %v2211 = vadd.f32 %v2140, %v2210
      %v2212 = vpop.f32.mrb[0].mxu0
      %v2213 = vadd.f32 %v2142, %v2212
      %v2214 = vpop.f32.mrb[0].mxu0
      %v2215 = vadd.f32 %v2144, %v2214
      %v2216 = vpop.f32.mrb[0].mxu0
      %v2217 = vadd.f32 %v2146, %v2216
      %2218 = vmatprep.mubr.bf16.mxu0 0
      %2219 = vmatmul.mubr.bf16.gmra.mrb[0].mxu0 %v1527
      %v2220 = vpop.f32.mrb[0].mxu0
      %v2221 = vadd.f32 %v2150, %v2220
      %v2222 = vpop.f32.mrb[0].mxu0
      %v2223 = vadd.f32 %v2152, %v2222
      %v2224 = vpop.f32.mrb[0].mxu0
      %v2225 = vadd.f32 %v2154, %v2224
      %v2226 = vpop.f32.mrb[0].mxu0
      %v2227 = vadd.f32 %v2156, %v2226
      %2228 = vmatprep.mubr.bf16.mxu0 0
      %2229 = vmatmul.mubr.bf16.gmra.mrb[0].mxu0 %v1526
      %v2230 = vpop.f32.mrb[0].mxu0
      %v2231 = vadd.f32 %v2160, %v2230
      %v2232 = vpop.f32.mrb[0].mxu0
      %v2233 = vadd.f32 %v2162, %v2232
      %v2234 = vpop.f32.mrb[0].mxu0
      %v2235 = vpop.f32.mrb[0].mxu0
      %2236 = vdwg.mxu0
      %vm2237 = vcmp.ge.f32.partialorder %v2201, 0.0
      %vm2238 = vcmp.ge.f32.partialorder %v2203, 0.0
      %vm2239 = vcmp.ge.f32.partialorder %v2205, 0.0
      %vm2240 = vcmp.ge.f32.partialorder %v2207, 0.0
      %vm2241 = vcmp.ge.f32.partialorder %v2211, 0.0
      %vm2242 = vcmp.ge.f32.partialorder %v2213, 0.0
      %vm2243 = vcmp.ge.f32.partialorder %v2215, 0.0
      %vm2244 = vcmp.ge.f32.partialorder %v2217, 0.0
      %vm2245 = vcmp.ge.f32.partialorder %v2221, 0.0
      %vm2246 = vcmp.ge.f32.partialorder %v2223, 0.0
      %vm2247 = vcmp.ge.f32.partialorder %v2225, 0.0
      %vm2248 = vcmp.ge.f32.partialorder %v2227, 0.0
      %vm2249 = vcmp.ge.f32.partialorder %v2231, 0.0
      %vm2250 = vcmp.ge.f32.partialorder %v2233, 0.0
      %v2251 = vmul.f32 %v2201, 0.1
      %v2252 = vmul.f32 %v2203, 0.1
      %v2253 = vmul.f32 %v2205, 0.1
      %v2254 = vmul.f32 %v2207, 0.1
      %v2255 = vmul.f32 %v2211, 0.1
      %v2256 = vmul.f32 %v2213, 0.1
      %v2257 = vmul.f32 %v2215, 0.1
      %v2258 = vmul.f32 %v2217, 0.1
      %v2259 = vmul.f32 %v2221, 0.1
      %v2260 = vmul.f32 %v2223, 0.1
      %v2261 = vmul.f32 %v2225, 0.1
      %v2262 = vmul.f32 %v2227, 0.1
      %v2263 = vmul.f32 %v2231, 0.1
      %v2264 = vmul.f32 %v2233, 0.1
      %v2265 = vsel %vm2237, %v2201, %v2251
      %v2266 = vsel %vm2238, %v2203, %v2252
      %v2267 = vsel %vm2239, %v2205, %v2253
      %v2268 = vsel %vm2240, %v2207, %v2254
      %v2269 = vsel %vm2241, %v2211, %v2255
      %v2270 = vsel %vm2242, %v2213, %v2256
      %v2271 = vsel %vm2243, %v2215, %v2257
      %v2272 = vsel %vm2244, %v2217, %v2258
      %v2273 = vsel %vm2245, %v2221, %v2259
      %v2274 = vsel %vm2246, %v2223, %v2260
      %v2275 = vsel %vm2247, %v2225, %v2261
      %v2276 = vsel %vm2248, %v2227, %v2262
      %v2277 = vsel %vm2249, %v2231, %v2263
      %v2278 = vsel %vm2250, %v2233, %v2264
      %s2279 = sadd.s32 %s497, 4294967285
      %v2280 = vstv %s2279
      %v2281 = vadd.s32 %v2280, %v1383
      %v2282 = vadd.s32 %v2280, %v1384
      %v2283 = vadd.s32 %v2280, %v1385
      %v2284 = vadd.s32 %v2280, %v1386
      %v2285 = vadd.s32 %v2280, %v1387
      %v2286 = vadd.s32 %v2280, %v1388
      %v2287 = vadd.s32 %v2280, %v1389
      %vm2288 = vcmp.ge.s32.totalorder %v2281, 0
      %vm2289 = vcmp.ge.s32.totalorder %v2282, 0
      %vm2290 = vcmp.ge.s32.totalorder %v2283, 0
      %vm2291 = vcmp.ge.s32.totalorder %v2284, 0
      %vm2292 = vcmp.ge.s32.totalorder %v2285, 0
      %vm2293 = vcmp.ge.s32.totalorder %v2286, 0
      %vm2294 = vcmp.ge.s32.totalorder %v2287, 0
      %vm2295 = vcmp.lt.s32.totalorder %v2281, 64
      %vm2296 = vcmp.lt.s32.totalorder %v2282, 64
      %vm2297 = vcmp.lt.s32.totalorder %v2283, 64
      %vm2298 = vcmp.lt.s32.totalorder %v2284, 64
      %vm2299 = vcmp.lt.s32.totalorder %v2285, 64
      %vm2300 = vcmp.lt.s32.totalorder %v2286, 64
      %vm2301 = vcmp.lt.s32.totalorder %v2287, 64
      %vm2302 = vmand %vm2288, %vm2295
      %vm2303 = vmand %vm2289, %vm2296
      %vm2304 = vmand %vm2290, %vm2297
      %vm2305 = vmand %vm2291, %vm2298
      %vm2306 = vmand %vm2292, %vm2299
      %vm2307 = vmand %vm2293, %vm2300
      %vm2308 = vmand %vm2294, %vm2301
      %v2309 = vsel %vm2302, 1, 0
      %v2310 = vsel %vm2303, 1, 0
      %v2311 = vsel %vm2304, 1, 0
      %v2312 = vsel %vm2305, 1, 0
      %v2313 = vsel %vm2306, 1, 0
      %v2314 = vsel %vm2307, 1, 0
      %v2315 = vsel %vm2308, 1, 0
      %vm2316 = vcmp.eq.s32.totalorder %v2309, 1
      %vm2317 = vcmp.eq.s32.totalorder %v2310, 1
      %vm2318 = vcmp.eq.s32.totalorder %v2311, 1
      %vm2319 = vcmp.eq.s32.totalorder %v2312, 1
      %vm2320 = vcmp.eq.s32.totalorder %v2313, 1
      %vm2321 = vcmp.eq.s32.totalorder %v2314, 1
      %vm2322 = vcmp.eq.s32.totalorder %v2315, 1
      %v2323 = vsel %vm2316, %v2265, 0.0
      %v2324 = vsel %vm2316, %v2266, 0.0
      %v2325 = vsel %vm2317, %v2267, 0.0
      %v2326 = vsel %vm2317, %v2268, 0.0
      %v2327 = vsel %vm2318, %v2269, 0.0
      %v2328 = vsel %vm2318, %v2270, 0.0
      %v2329 = vsel %vm2319, %v2271, 0.0
      %v2330 = vsel %vm2319, %v2272, 0.0
      %v2331 = vsel %vm2320, %v2273, 0.0
      %v2332 = vsel %vm2320, %v2274, 0.0
      %v2333 = vsel %vm2321, %v2275, 0.0
      %v2334 = vsel %vm2321, %v2276, 0.0
      %v2335 = vsel %vm2322, %v2277, 0.0
      %v2336 = vsel %vm2322, %v2278, 0.0
      %v2337 = vpack.c.bf16 %v2325, %v2323
      %v2338 = vpack.c.bf16 %v2326, %v2324
      %v2339 = vpack.c.bf16 %v2329, %v2327
      %v2340 = vpack.c.bf16 %v2330, %v2328
      %v2341 = vpack.c.bf16 %v2333, %v2331
      %v2342 = vpack.c.bf16 %v2334, %v2332
      %v2343 = vpack.c.bf16 %v2335, %v2335
      %v2344 = vpack.c.bf16 %v2336, %v2336
      %v2346 = vshrl.u32 %v2337, 16
      %v2348 = vshll.u32 %v2337, 16
      %v2350 = vrot.slane %v2348, 1
      %v2351 = vor.u32 %v2346, %v2350
      %v2353 = vshll.u32 %v2339, 16
      %v2355 = vrot.slane %v2353, 1
      %v2356 = vsel %vm530, %v2351, %v2355
      %v2358 = vshrl.u32 %v2338, 16
      %v2360 = vshll.u32 %v2338, 16
      %v2362 = vrot.slane %v2360, 1
      %v2363 = vor.u32 %v2358, %v2362
      %v2365 = vshll.u32 %v2340, 16
      %v2367 = vrot.slane %v2365, 1
      %v2368 = vsel %vm530, %v2363, %v2367
      %v2369 = vshrl.u32 %v2339, 16
      %v2371 = vor.u32 %v2369, %v2355
      %v2373 = vshll.u32 %v2341, 16
      %v2375 = vrot.slane %v2373, 1
      %v2376 = vsel %vm530, %v2371, %v2375
      %v2377 = vshrl.u32 %v2340, 16
      %v2379 = vor.u32 %v2377, %v2367
      %v2381 = vshll.u32 %v2342, 16
      %v2383 = vrot.slane %v2381, 1
      %v2384 = vsel %vm530, %v2379, %v2383
      %v2385 = vshrl.u32 %v2341, 16
      %v2387 = vor.u32 %v2385, %v2375
      %v2389 = vshll.u32 %v2343, 16
      %v2391 = vrot.slane %v2389, 1
      %v2392 = vsel %vm530, %v2387, %v2391
      %v2393 = vshrl.u32 %v2342, 16
      %v2395 = vor.u32 %v2393, %v2383
      %v2397 = vshll.u32 %v2344, 16
      %v2399 = vrot.slane %v2397, 1
      %v2400 = vsel %vm530, %v2395, %v2399
      %v2401 = vshrl.u32 %v2343, 16
      %v2403 = vor.u32 %v2401, %v2391
      %v2404 = vshrl.u32 %v2344, 16
      %v2406 = vor.u32 %v2404, %v2399
      %v2423 = vrot.slane %v2337, 1
      %v2424 = vrot.slane %v2339, 1
      %v2425 = vsel %vm566, %v2423, %v2424
      %v2426 = vrot.slane %v2338, 1
      %v2427 = vrot.slane %v2340, 1
      %v2428 = vsel %vm566, %v2426, %v2427
      %v2429 = vrot.slane %v2341, 1
      %v2430 = vsel %vm566, %v2424, %v2429
      %v2431 = vrot.slane %v2342, 1
      %v2432 = vsel %vm566, %v2427, %v2431
      %v2433 = vrot.slane %v2343, 1
      %v2434 = vsel %vm566, %v2429, %v2433
      %v2435 = vrot.slane %v2344, 1
      %v2436 = vsel %vm566, %v2431, %v2435
      %v2445 = vld [vmem:[%s6] sm:$0xff]
      %v2446 = vld [vmem:[%s6 + $0x8] sm:$0xff]
      %v2447 = vld [vmem:[%s6 + $0x10] sm:$0xff]
      %v2448 = vld [vmem:[%s6 + $0x18] sm:$0xff]
      %v2449 = vld [vmem:[%s6 + $0x20] sm:$0xff]
      %v2450 = vld [vmem:[%s6 + $0x28] sm:$0xff]
      %v2451 = vld [vmem:[%s6 + $0x30] sm:$0xff]
      %v2452 = vld [vmem:[%s6 + $0x38] sm:$0xff]
      %v2453 = vld [vmem:[%s6 + $0x40] sm:$0xff]
      %v2454 = vld [vmem:[%s6 + $0x48] sm:$0xff]
      %v2455 = vld [vmem:[%s6 + $0x50] sm:$0xff]
      %v2456 = vld [vmem:[%s6 + $0x58] sm:$0xff]
      %v2457 = vld [vmem:[%s6 + $0x60] sm:$0xff]
      %v2458 = vld [vmem:[%s6 + $0x68] sm:$0xff]
      %v2459 = vld [vmem:[%s6 + $0x70] sm:$0xff]
      %v2460 = vld [vmem:[%s6 + $0x78] sm:$0xff]
      %v2461 = vld [vmem:[%s6 + $0x80] sm:$0xff]
      %v2462 = vld [vmem:[%s6 + $0x88] sm:$0xff]
      %v2463 = vld [vmem:[%s6 + $0x90] sm:$0xff]
      %v2464 = vld [vmem:[%s6 + $0x98] sm:$0xff]
      %v2465 = vld [vmem:[%s6 + $0xa0] sm:$0xff]
      %v2466 = vld [vmem:[%s6 + $0xa8] sm:$0xff]
      %v2467 = vld [vmem:[%s6 + $0xb0] sm:$0xff]
      %v2468 = vld [vmem:[%s6 + $0xb8] sm:$0xff]
      %v2469 = vld [vmem:[%s6 + $0xc0] sm:$0xff]
      %v2470 = vld [vmem:[%s6 + $0xc8] sm:$0xff]
      %v2471 = vld [vmem:[%s6 + $0xd0] sm:$0xff]
      %v2472 = vld [vmem:[%s6 + $0xd8] sm:$0xff]
      %v2473 = vld [vmem:[%s6 + $0xe0] sm:$0xff]
      %v2474 = vld [vmem:[%s6 + $0xe8] sm:$0xff]
      %v2475 = vld [vmem:[%s6 + $0xf0] sm:$0xff]
      %v2476 = vld [vmem:[%s6 + $0xf8] sm:$0xff]
      %v2477 = vld [vmem:[%s6 + $0x100] sm:$0xff]
      %v2478 = vld [vmem:[%s6 + $0x108] sm:$0xff]
      %v2479 = vld [vmem:[%s6 + $0x110] sm:$0xff]
      %v2480 = vld [vmem:[%s6 + $0x118] sm:$0xff]
      %v2481 = vld [vmem:[%s6 + $0x120] sm:$0xff]
      %v2482 = vld [vmem:[%s6 + $0x128] sm:$0xff]
      %v2483 = vld [vmem:[%s6 + $0x130] sm:$0xff]
      %v2484 = vld [vmem:[%s6 + $0x138] sm:$0xff]
      %v2485 = vld [vmem:[%s6 + $0x140] sm:$0xff]
      %v2486 = vld [vmem:[%s6 + $0x148] sm:$0xff]
      %v2487 = vld [vmem:[%s6 + $0x150] sm:$0xff]
      %v2488 = vld [vmem:[%s6 + $0x158] sm:$0xff]
      %v2489 = vld [vmem:[%s6 + $0x160] sm:$0xff]
      %v2490 = vld [vmem:[%s6 + $0x168] sm:$0xff]
      %v2491 = vld [vmem:[%s6 + $0x170] sm:$0xff]
      %v2492 = vld [vmem:[%s6 + $0x178] sm:$0xff]
      %v2493 = vld [vmem:[%s6 + $0x180] sm:$0xff]
      %v2494 = vld [vmem:[%s6 + $0x188] sm:$0xff]
      %v2495 = vld [vmem:[%s6 + $0x190] sm:$0xff]
      %v2496 = vld [vmem:[%s6 + $0x198] sm:$0xff]
      %v2497 = vld [vmem:[%s6 + $0x1a0] sm:$0xff]
      %v2498 = vld [vmem:[%s6 + $0x1a8] sm:$0xff]
      %v2499 = vld [vmem:[%s6 + $0x1b0] sm:$0xff]
      %v2500 = vld [vmem:[%s6 + $0x1b8] sm:$0xff]
      %v2501 = vld [vmem:[%s6 + $0x1c0] sm:$0xff]
      %v2502 = vld [vmem:[%s6 + $0x1c8] sm:$0xff]
      %v2503 = vld [vmem:[%s6 + $0x1d0] sm:$0xff]
      %v2504 = vld [vmem:[%s6 + $0x1d8] sm:$0xff]
      %v2505 = vld [vmem:[%s6 + $0x1e0] sm:$0xff]
      %v2506 = vld [vmem:[%s6 + $0x1e8] sm:$0xff]
      %v2507 = vld [vmem:[%s6 + $0x1f0] sm:$0xff]
      %v2508 = vld [vmem:[%s6 + $0x1f8] sm:$0xff]
      %v2509 = vld [vmem:[%s6 + $0x200] sm:$0xff]
      %v2510 = vld [vmem:[%s6 + $0x208] sm:$0xff]
      %v2511 = vld [vmem:[%s6 + $0x210] sm:$0xff]
      %v2512 = vld [vmem:[%s6 + $0x218] sm:$0xff]
      %v2513 = vld [vmem:[%s6 + $0x220] sm:$0xff]
      %v2514 = vld [vmem:[%s6 + $0x228] sm:$0xff]
      %v2515 = vld [vmem:[%s6 + $0x230] sm:$0xff]
      %v2516 = vld [vmem:[%s6 + $0x238] sm:$0xff]
      %v2517 = vld [vmem:[%s6 + $0x240] sm:$0xff]
      %v2518 = vld [vmem:[%s6 + $0x248] sm:$0xff]
      %v2519 = vld [vmem:[%s6 + $0x250] sm:$0xff]
      %v2520 = vld [vmem:[%s6 + $0x258] sm:$0xff]
      %v2521 = vld [vmem:[%s6 + $0x260] sm:$0xff]
      %v2522 = vld [vmem:[%s6 + $0x268] sm:$0xff]
      %v2523 = vld [vmem:[%s6 + $0x270] sm:$0xff]
      %v2524 = vld [vmem:[%s6 + $0x278] sm:$0xff]
      %v2525 = vld [vmem:[%s6 + $0x280] sm:$0xff]
      %v2526 = vld [vmem:[%s6 + $0x288] sm:$0xff]
      %v2527 = vld [vmem:[%s6 + $0x290] sm:$0xff]
      %v2528 = vld [vmem:[%s6 + $0x298] sm:$0xff]
      %v2529 = vld [vmem:[%s6 + $0x2a0] sm:$0xff]
      %v2530 = vld [vmem:[%s6 + $0x2a8] sm:$0xff]
      %v2531 = vld [vmem:[%s6 + $0x2b0] sm:$0xff]
      %v2532 = vld [vmem:[%s6 + $0x2b8] sm:$0xff]
      %v2533 = vld [vmem:[%s6 + $0x2c0] sm:$0xff]
      %v2534 = vld [vmem:[%s6 + $0x2c8] sm:$0xff]
      %v2535 = vld [vmem:[%s6 + $0x2d0] sm:$0xff]
      %v2536 = vld [vmem:[%s6 + $0x2d8] sm:$0xff]
      %v2537 = vld [vmem:[%s6 + $0x2e0] sm:$0xff]
      %v2538 = vld [vmem:[%s6 + $0x2e8] sm:$0xff]
      %v2539 = vld [vmem:[%s6 + $0x2f0] sm:$0xff]
      %v2540 = vld [vmem:[%s6 + $0x2f8] sm:$0xff]
      %v2541 = vld [vmem:[%s7] sm:$0x3]
      %v2543 = vlaneseq
      %v2544 = vshrl.u32 %v2543, 7
      %v2545 = vsub.s32 0, %v2544
      %v2546 = vrot.slane %v2541, %v2545
      %v2547 = vlaneseq
      %v2548 = vshrl.u32 %v2547, 7
      %v2549 = vsub.s32 1, %v2548
      %v2550 = vrot.slane %v2541, %v2549
      %v2649 = vunpack.c.l.b16 %v2445
      %v2650 = vunpack.c.h.b16 %v2445
      %v2651 = vunpack.c.l.b16 %v2446
      %v2652 = vunpack.c.h.b16 %v2446
      %v2653 = vunpack.c.l.b16 %v2447
      %v2654 = vunpack.c.h.b16 %v2447
      %v2655 = vunpack.c.l.b16 %v2448
      %v2656 = vunpack.c.h.b16 %v2448
      %v2657 = vunpack.c.l.b16 %v2449
      %v2658 = vunpack.c.h.b16 %v2449
      %v2659 = vunpack.c.l.b16 %v2450
      %v2660 = vunpack.c.h.b16 %v2450
      %v2661 = vunpack.c.l.b16 %v2451
      %v2662 = vunpack.c.h.b16 %v2451
      %v2663 = vunpack.c.l.b16 %v2452
      %v2664 = vunpack.c.h.b16 %v2452
      %v2665 = vunpack.c.l.b16 %v2453
      %v2666 = vunpack.c.h.b16 %v2453
      %v2667 = vunpack.c.l.b16 %v2454
      %v2668 = vunpack.c.h.b16 %v2454
      %v2669 = vunpack.c.l.b16 %v2455
      %v2670 = vunpack.c.h.b16 %v2455
      %v2671 = vunpack.c.l.b16 %v2456
      %v2672 = vunpack.c.h.b16 %v2456
      %v2673 = vunpack.c.l.b16 %v2457
      %v2674 = vunpack.c.h.b16 %v2457
      %v2675 = vunpack.c.l.b16 %v2458
      %v2676 = vunpack.c.h.b16 %v2458
      %v2677 = vunpack.c.l.b16 %v2459
      %v2678 = vunpack.c.h.b16 %v2459
      %v2679 = vunpack.c.l.b16 %v2460
      %v2680 = vunpack.c.h.b16 %v2460
      %v2681 = vunpack.c.l.b16 %v2461
      %v2682 = vunpack.c.h.b16 %v2461
      %v2683 = vunpack.c.l.b16 %v2462
      %v2684 = vunpack.c.h.b16 %v2462
      %v2685 = vunpack.c.l.b16 %v2463
      %v2686 = vunpack.c.h.b16 %v2463
      %v2687 = vunpack.c.l.b16 %v2464
      %v2688 = vunpack.c.h.b16 %v2464
      %v2689 = vunpack.c.l.b16 %v2465
      %v2690 = vunpack.c.h.b16 %v2465
      %v2691 = vunpack.c.l.b16 %v2466
      %v2692 = vunpack.c.h.b16 %v2466
      %v2693 = vunpack.c.l.b16 %v2467
      %v2694 = vunpack.c.h.b16 %v2467
      %v2695 = vunpack.c.l.b16 %v2468
      %v2696 = vunpack.c.h.b16 %v2468
      %v2697 = vunpack.c.l.b16 %v2469
      %v2698 = vunpack.c.h.b16 %v2469
      %v2699 = vunpack.c.l.b16 %v2470
      %v2700 = vunpack.c.h.b16 %v2470
      %v2701 = vunpack.c.l.b16 %v2471
      %v2702 = vunpack.c.h.b16 %v2471
      %v2703 = vunpack.c.l.b16 %v2472
      %v2704 = vunpack.c.h.b16 %v2472
      %v2705 = vunpack.c.l.b16 %v2473
      %v2706 = vunpack.c.h.b16 %v2473
      %v2707 = vunpack.c.l.b16 %v2474
      %v2708 = vunpack.c.h.b16 %v2474
      %v2709 = vunpack.c.l.b16 %v2475
      %v2710 = vunpack.c.h.b16 %v2475
      %v2711 = vunpack.c.l.b16 %v2476
      %v2712 = vunpack.c.h.b16 %v2476
      %v2713 = vunpack.c.l.b16 %v2477
      %v2714 = vunpack.c.h.b16 %v2477
      %v2715 = vunpack.c.l.b16 %v2478
      %v2716 = vunpack.c.h.b16 %v2478
      %v2717 = vunpack.c.l.b16 %v2479
      %v2718 = vunpack.c.h.b16 %v2479
      %v2719 = vunpack.c.l.b16 %v2480
      %v2720 = vunpack.c.h.b16 %v2480
      %v2721 = vunpack.c.l.b16 %v2481
      %v2722 = vunpack.c.h.b16 %v2481
      %v2723 = vunpack.c.l.b16 %v2482
      %v2724 = vunpack.c.h.b16 %v2482
      %v2725 = vunpack.c.l.b16 %v2483
      %v2726 = vunpack.c.h.b16 %v2483
      %v2727 = vunpack.c.l.b16 %v2484
      %v2728 = vunpack.c.h.b16 %v2484
      %v2729 = vunpack.c.l.b16 %v2485
      %v2730 = vunpack.c.h.b16 %v2485
      %v2731 = vunpack.c.l.b16 %v2486
      %v2732 = vunpack.c.h.b16 %v2486
      %v2733 = vunpack.c.l.b16 %v2487
      %v2734 = vunpack.c.h.b16 %v2487
      %v2735 = vunpack.c.l.b16 %v2488
      %v2736 = vunpack.c.h.b16 %v2488
      %v2737 = vunpack.c.l.b16 %v2489
      %v2738 = vunpack.c.h.b16 %v2489
      %v2739 = vunpack.c.l.b16 %v2490
      %v2740 = vunpack.c.h.b16 %v2490
      %v2741 = vunpack.c.l.b16 %v2491
      %v2742 = vunpack.c.h.b16 %v2491
      %v2743 = vunpack.c.l.b16 %v2492
      %v2744 = vunpack.c.h.b16 %v2492
      %v2745 = vunpack.c.l.b16 %v2493
      %v2746 = vunpack.c.h.b16 %v2493
      %v2747 = vunpack.c.l.b16 %v2494
      %v2748 = vunpack.c.h.b16 %v2494
      %v2749 = vunpack.c.l.b16 %v2495
      %v2750 = vunpack.c.h.b16 %v2495
      %v2751 = vunpack.c.l.b16 %v2496
      %v2752 = vunpack.c.h.b16 %v2496
      %v2753 = vunpack.c.l.b16 %v2497
      %v2754 = vunpack.c.h.b16 %v2497
      %v2755 = vunpack.c.l.b16 %v2498
      %v2756 = vunpack.c.h.b16 %v2498
      %v2757 = vunpack.c.l.b16 %v2499
      %v2758 = vunpack.c.h.b16 %v2499
      %v2759 = vunpack.c.l.b16 %v2500
      %v2760 = vunpack.c.h.b16 %v2500
      %v2761 = vunpack.c.l.b16 %v2501
      %v2762 = vunpack.c.h.b16 %v2501
      %v2763 = vunpack.c.l.b16 %v2502
      %v2764 = vunpack.c.h.b16 %v2502
      %v2765 = vunpack.c.l.b16 %v2503
      %v2766 = vunpack.c.h.b16 %v2503
      %v2767 = vunpack.c.l.b16 %v2504
      %v2768 = vunpack.c.h.b16 %v2504
      %v2769 = vunpack.c.l.b16 %v2505
      %v2770 = vunpack.c.h.b16 %v2505
      %v2771 = vunpack.c.l.b16 %v2506
      %v2772 = vunpack.c.h.b16 %v2506
      %v2773 = vunpack.c.l.b16 %v2507
      %v2774 = vunpack.c.h.b16 %v2507
      %v2775 = vunpack.c.l.b16 %v2508
      %v2776 = vunpack.c.h.b16 %v2508
      %v2777 = vunpack.c.l.b16 %v2509
      %v2778 = vunpack.c.h.b16 %v2509
      %v2779 = vunpack.c.l.b16 %v2510
      %v2780 = vunpack.c.h.b16 %v2510
      %v2781 = vunpack.c.l.b16 %v2511
      %v2782 = vunpack.c.h.b16 %v2511
      %v2783 = vunpack.c.l.b16 %v2512
      %v2784 = vunpack.c.h.b16 %v2512
      %v2785 = vunpack.c.l.b16 %v2513
      %v2786 = vunpack.c.h.b16 %v2513
      %v2787 = vunpack.c.l.b16 %v2514
      %v2788 = vunpack.c.h.b16 %v2514
      %v2789 = vunpack.c.l.b16 %v2515
      %v2790 = vunpack.c.h.b16 %v2515
      %v2791 = vunpack.c.l.b16 %v2516
      %v2792 = vunpack.c.h.b16 %v2516
      %v2793 = vunpack.c.l.b16 %v2517
      %v2794 = vunpack.c.h.b16 %v2517
      %v2795 = vunpack.c.l.b16 %v2518
      %v2796 = vunpack.c.h.b16 %v2518
      %v2797 = vunpack.c.l.b16 %v2519
      %v2798 = vunpack.c.h.b16 %v2519
      %v2799 = vunpack.c.l.b16 %v2520
      %v2800 = vunpack.c.h.b16 %v2520
      %v2801 = vunpack.c.l.b16 %v2521
      %v2802 = vunpack.c.h.b16 %v2521
      %v2803 = vunpack.c.l.b16 %v2522
      %v2804 = vunpack.c.h.b16 %v2522
      %v2805 = vunpack.c.l.b16 %v2523
      %v2806 = vunpack.c.h.b16 %v2523
      %v2807 = vunpack.c.l.b16 %v2524
      %v2808 = vunpack.c.h.b16 %v2524
      %v2809 = vunpack.c.l.b16 %v2525
      %v2810 = vunpack.c.h.b16 %v2525
      %v2811 = vunpack.c.l.b16 %v2526
      %v2812 = vunpack.c.h.b16 %v2526
      %v2813 = vunpack.c.l.b16 %v2527
      %v2814 = vunpack.c.h.b16 %v2527
      %v2815 = vunpack.c.l.b16 %v2528
      %v2816 = vunpack.c.h.b16 %v2528
      %v2817 = vunpack.c.l.b16 %v2529
      %v2818 = vunpack.c.h.b16 %v2529
      %v2819 = vunpack.c.l.b16 %v2530
      %v2820 = vunpack.c.h.b16 %v2530
      %v2821 = vunpack.c.l.b16 %v2531
      %v2822 = vunpack.c.h.b16 %v2531
      %v2823 = vunpack.c.l.b16 %v2532
      %v2824 = vunpack.c.h.b16 %v2532
      %v2825 = vunpack.c.l.b16 %v2533
      %v2826 = vunpack.c.h.b16 %v2533
      %v2827 = vunpack.c.l.b16 %v2534
      %v2828 = vunpack.c.h.b16 %v2534
      %v2829 = vunpack.c.l.b16 %v2535
      %v2830 = vunpack.c.h.b16 %v2535
      %v2831 = vunpack.c.l.b16 %v2536
      %v2832 = vunpack.c.h.b16 %v2536
      %v2833 = vunpack.c.l.b16 %v2537
      %v2834 = vunpack.c.h.b16 %v2537
      %v2835 = vunpack.c.l.b16 %v2538
      %v2836 = vunpack.c.h.b16 %v2538
      %v2837 = vunpack.c.l.b16 %v2539
      %v2838 = vunpack.c.h.b16 %v2539
      %v2839 = vunpack.c.l.b16 %v2540
      %v2840 = vunpack.c.h.b16 %v2540
      %v2841 = vpack.c.b16 %v2651, %v2649
      %v2842 = vpack.c.b16 %v2652, %v2650
      %v2843 = vpack.c.b16 %v2655, %v2653
      %v2844 = vpack.c.b16 %v2656, %v2654
      %v2845 = vpack.c.b16 %v2659, %v2657
      %v2846 = vpack.c.b16 %v2660, %v2658
      %v2847 = vpack.c.b16 %v2663, %v2661
      %v2848 = vpack.c.b16 %v2664, %v2662
      %v2849 = vpack.c.b16 %v2667, %v2665
      %v2850 = vpack.c.b16 %v2668, %v2666
      %v2851 = vpack.c.b16 %v2671, %v2669
      %v2852 = vpack.c.b16 %v2672, %v2670
      %v2853 = vpack.c.b16 %v2675, %v2673
      %v2854 = vpack.c.b16 %v2676, %v2674
      %v2855 = vpack.c.b16 %v2679, %v2677
      %v2856 = vpack.c.b16 %v2680, %v2678
      %v2857 = vpack.c.b16 %v2683, %v2681
      %v2858 = vpack.c.b16 %v2684, %v2682
      %v2859 = vpack.c.b16 %v2687, %v2685
      %v2860 = vpack.c.b16 %v2688, %v2686
      %v2861 = vpack.c.b16 %v2691, %v2689
      %v2862 = vpack.c.b16 %v2692, %v2690
      %v2863 = vpack.c.b16 %v2695, %v2693
      %v2864 = vpack.c.b16 %v2696, %v2694
      %v2865 = vpack.c.b16 %v2699, %v2697
      %v2866 = vpack.c.b16 %v2700, %v2698
      %v2867 = vpack.c.b16 %v2703, %v2701
      %v2868 = vpack.c.b16 %v2704, %v2702
      %v2869 = vpack.c.b16 %v2707, %v2705
      %v2870 = vpack.c.b16 %v2708, %v2706
      %v2871 = vpack.c.b16 %v2711, %v2709
      %v2872 = vpack.c.b16 %v2712, %v2710
      %v2873 = vpack.c.b16 %v2715, %v2713
      %v2874 = vpack.c.b16 %v2716, %v2714
      %v2875 = vpack.c.b16 %v2719, %v2717
      %v2876 = vpack.c.b16 %v2720, %v2718
      %v2877 = vpack.c.b16 %v2723, %v2721
      %v2878 = vpack.c.b16 %v2724, %v2722
      %v2879 = vpack.c.b16 %v2727, %v2725
      %v2880 = vpack.c.b16 %v2728, %v2726
      %v2881 = vpack.c.b16 %v2731, %v2729
      %v2882 = vpack.c.b16 %v2732, %v2730
      %v2883 = vpack.c.b16 %v2735, %v2733
      %v2884 = vpack.c.b16 %v2736, %v2734
      %v2885 = vpack.c.b16 %v2739, %v2737
      %v2886 = vpack.c.b16 %v2740, %v2738
      %v2887 = vpack.c.b16 %v2743, %v2741
      %v2888 = vpack.c.b16 %v2744, %v2742
      %v2889 = vpack.c.b16 %v2747, %v2745
      %v2890 = vpack.c.b16 %v2748, %v2746
      %v2891 = vpack.c.b16 %v2751, %v2749
      %v2892 = vpack.c.b16 %v2752, %v2750
      %v2893 = vpack.c.b16 %v2755, %v2753
      %v2894 = vpack.c.b16 %v2756, %v2754
      %v2895 = vpack.c.b16 %v2759, %v2757
      %v2896 = vpack.c.b16 %v2760, %v2758
      %v2897 = vpack.c.b16 %v2763, %v2761
      %v2898 = vpack.c.b16 %v2764, %v2762
      %v2899 = vpack.c.b16 %v2767, %v2765
      %v2900 = vpack.c.b16 %v2768, %v2766
      %v2901 = vpack.c.b16 %v2771, %v2769
      %v2902 = vpack.c.b16 %v2772, %v2770
      %v2903 = vpack.c.b16 %v2775, %v2773
      %v2904 = vpack.c.b16 %v2776, %v2774
      %v2905 = vpack.c.b16 %v2779, %v2777
      %v2906 = vpack.c.b16 %v2780, %v2778
      %v2907 = vpack.c.b16 %v2783, %v2781
      %v2908 = vpack.c.b16 %v2784, %v2782
      %v2909 = vpack.c.b16 %v2787, %v2785
      %v2910 = vpack.c.b16 %v2788, %v2786
      %v2911 = vpack.c.b16 %v2791, %v2789
      %v2912 = vpack.c.b16 %v2792, %v2790
      %v2913 = vpack.c.b16 %v2795, %v2793
      %v2914 = vpack.c.b16 %v2796, %v2794
      %v2915 = vpack.c.b16 %v2799, %v2797
      %v2916 = vpack.c.b16 %v2800, %v2798
      %v2917 = vpack.c.b16 %v2803, %v2801
      %v2918 = vpack.c.b16 %v2804, %v2802
      %v2919 = vpack.c.b16 %v2807, %v2805
      %v2920 = vpack.c.b16 %v2808, %v2806
      %v2921 = vpack.c.b16 %v2811, %v2809
      %v2922 = vpack.c.b16 %v2812, %v2810
      %v2923 = vpack.c.b16 %v2815, %v2813
      %v2924 = vpack.c.b16 %v2816, %v2814
      %v2925 = vpack.c.b16 %v2819, %v2817
      %v2926 = vpack.c.b16 %v2820, %v2818
      %v2927 = vpack.c.b16 %v2823, %v2821
      %v2928 = vpack.c.b16 %v2824, %v2822
      %v2929 = vpack.c.b16 %v2827, %v2825
      %v2930 = vpack.c.b16 %v2828, %v2826
      %v2931 = vpack.c.b16 %v2831, %v2829
      %v2932 = vpack.c.b16 %v2832, %v2830
      %v2933 = vpack.c.b16 %v2835, %v2833
      %v2934 = vpack.c.b16 %v2836, %v2834
      %v2935 = vpack.c.b16 %v2839, %v2837
      %v2936 = vpack.c.b16 %v2840, %v2838
      %3033 = vmatprep.subr.bf16.mxu0 %v2842
      %3034 = vmatpush1.bf16.msra.mxu0 %v2841
      %3035 = vmatprep.subr.bf16.mxu0 %v2844
      %3036 = vmatpush1.bf16.msra.mxu0 %v2843
      %3037 = vmatprep.subr.bf16.mxu0 %v2846
      %3038 = vmatpush1.bf16.msra.mxu0 %v2845
      %3039 = vmatprep.subr.bf16.mxu0 %v2848
      %3040 = vmatpush1.bf16.msra.mxu0 %v2847
      %3041 = vmatprep.subr.bf16.mxu0 %v2850
      %3042 = vmatpush1.bf16.msra.mxu0 %v2849
      %3043 = vmatprep.subr.bf16.mxu0 %v2852
      %3044 = vmatpush1.bf16.msra.mxu0 %v2851
      %3045 = vmatprep.subr.bf16.mxu0 %v2854
      %3046 = vmatpush1.bf16.msra.mxu0 %v2853
      %3047 = vmatprep.subr.bf16.mxu0 %v2856
      %3048 = vmatpush1.bf16.msra.mxu0 %v2855
      %3049 = vmatprep.subr.bf16.mxu0 %v2858
      %3050 = vmatpush1.bf16.msra.mxu0 %v2857
      %3051 = vmatprep.subr.bf16.mxu0 %v2860
      %3052 = vmatpush1.bf16.msra.mxu0 %v2859
      %3053 = vmatprep.subr.bf16.mxu0 %v2862
      %3054 = vmatpush1.bf16.msra.mxu0 %v2861
      %3055 = vmatprep.subr.bf16.mxu0 %v2864
      %3056 = vmatpush1.bf16.msra.mxu0 %v2863
      %3057 = vmatprep.subr.bf16.mxu0 %v2866
      %3058 = vmatpush1.bf16.msra.mxu0 %v2865
      %3059 = vmatprep.subr.bf16.mxu0 %v2868
      %3060 = vmatpush1.bf16.msra.mxu0 %v2867
      %3061 = vmatprep.subr.bf16.mxu0 %v2870
      %3062 = vmatpush1.bf16.msra.mxu0 %v2869
      %3063 = vmatprep.subr.bf16.mxu0 %v2872
      %3064 = vmatpush1.bf16.msra.mxu0 %v2871
      %3065 = vmatprep.mubr.bf16.mxu0 %v2338
      %3066 = vmatmul.mubr.bf16.gmra.mrb[0].mxu0 %v2337
      %v3067 = vpop.f32.mrb[0].mxu0
      %v3068 = vadd.f32 %v2546, %v3067
      %v3069 = vpop.f32.mrb[0].mxu0
      %v3070 = vadd.f32 %v2550, %v3069
      %v3071 = vpop.f32.mrb[0].mxu0
      %v3072 = vadd.f32 %v2546, %v3071
      %v3073 = vpop.f32.mrb[0].mxu0
      %v3074 = vadd.f32 %v2550, %v3073
      %3075 = vmatprep.mubr.bf16.mxu0 %v2340
      %3076 = vmatmul.mubr.bf16.gmra.mrb[0].mxu0 %v2339
      %v3077 = vpop.f32.mrb[0].mxu0
      %v3078 = vadd.f32 %v2546, %v3077
      %v3079 = vpop.f32.mrb[0].mxu0
      %v3080 = vadd.f32 %v2550, %v3079
      %v3081 = vpop.f32.mrb[0].mxu0
      %v3082 = vadd.f32 %v2546, %v3081
      %v3083 = vpop.f32.mrb[0].mxu0
      %v3084 = vadd.f32 %v2550, %v3083
      %3085 = vmatprep.mubr.bf16.mxu0 %v2342
      %3086 = vmatmul.mubr.bf16.gmra.mrb[0].mxu0 %v2341
      %v3087 = vpop.f32.mrb[0].mxu0
      %v3088 = vadd.f32 %v2546, %v3087
      %v3089 = vpop.f32.mrb[0].mxu0
      %v3090 = vadd.f32 %v2550, %v3089
      %v3091 = vpop.f32.mrb[0].mxu0
      %v3092 = vadd.f32 %v2546, %v3091
      %v3093 = vpop.f32.mrb[0].mxu0
      %v3094 = vadd.f32 %v2550, %v3093
      %3095 = vmatprep.mubr.bf16.mxu0 %v2344
      %3096 = vmatmul.mubr.bf16.gmra.mrb[0].mxu0 %v2343
      %v3097 = vpop.f32.mrb[0].mxu0
      %v3098 = vadd.f32 %v2546, %v3097
      %v3099 = vpop.f32.mrb[0].mxu0
      %v3100 = vadd.f32 %v2550, %v3099
      %v3101 = vpop.f32.mrb[0].mxu0
      %v3102 = vpop.f32.mrb[0].mxu0
      %3103 = vdwg.mxu0
      %3104 = vmatprep.subr.bf16.mxu0 %v2874
      %3105 = vmatpush1.bf16.msra.mxu0 %v2873
      %3106 = vmatprep.subr.bf16.mxu0 %v2876
      %3107 = vmatpush1.bf16.msra.mxu0 %v2875
      %3108 = vmatprep.subr.bf16.mxu0 %v2878
      %3109 = vmatpush1.bf16.msra.mxu0 %v2877
      %3110 = vmatprep.subr.bf16.mxu0 %v2880
      %3111 = vmatpush1.bf16.msra.mxu0 %v2879
      %3112 = vmatprep.subr.bf16.mxu0 %v2882
      %3113 = vmatpush1.bf16.msra.mxu0 %v2881
      %3114 = vmatprep.subr.bf16.mxu0 %v2884
      %3115 = vmatpush1.bf16.msra.mxu0 %v2883
      %3116 = vmatprep.subr.bf16.mxu0 %v2886
      %3117 = vmatpush1.bf16.msra.mxu0 %v2885
      %3118 = vmatprep.subr.bf16.mxu0 %v2888
      %3119 = vmatpush1.bf16.msra.mxu0 %v2887
      %3120 = vmatprep.subr.bf16.mxu0 %v2890
      %3121 = vmatpush1.bf16.msra.mxu0 %v2889
      %3122 = vmatprep.subr.bf16.mxu0 %v2892
      %3123 = vmatpush1.bf16.msra.mxu0 %v2891
      %3124 = vmatprep.subr.bf16.mxu0 %v2894
      %3125 = vmatpush1.bf16.msra.mxu0 %v2893
      %3126 = vmatprep.subr.bf16.mxu0 %v2896
      %3127 = vmatpush1.bf16.msra.mxu0 %v2895
      %3128 = vmatprep.subr.bf16.mxu0 %v2898
      %3129 = vmatpush1.bf16.msra.mxu0 %v2897
      %3130 = vmatprep.subr.bf16.mxu0 %v2900
      %3131 = vmatpush1.bf16.msra.mxu0 %v2899
      %3132 = vmatprep.subr.bf16.mxu0 %v2902
      %3133 = vmatpush1.bf16.msra.mxu0 %v2901
      %3134 = vmatprep.subr.bf16.mxu0 %v2904
      %3135 = vmatpush1.bf16.msra.mxu0 %v2903
      %3136 = vmatprep.mubr.bf16.mxu0 %v2368
      %3137 = vmatmul.mubr.bf16.gmra.mrb[0].mxu0 %v2356
      %v3138 = vpop.f32.mrb[0].mxu0
      %v3139 = vadd.f32 %v3068, %v3138
      %v3140 = vpop.f32.mrb[0].mxu0
      %v3141 = vadd.f32 %v3070, %v3140
      %v3142 = vpop.f32.mrb[0].mxu0
      %v3143 = vadd.f32 %v3072, %v3142
      %v3144 = vpop.f32.mrb[0].mxu0
      %v3145 = vadd.f32 %v3074, %v3144
      %3146 = vmatprep.mubr.bf16.mxu0 %v2384
      %3147 = vmatmul.mubr.bf16.gmra.mrb[0].mxu0 %v2376
      %v3148 = vpop.f32.mrb[0].mxu0
      %v3149 = vadd.f32 %v3078, %v3148
      %v3150 = vpop.f32.mrb[0].mxu0
      %v3151 = vadd.f32 %v3080, %v3150
      %v3152 = vpop.f32.mrb[0].mxu0
      %v3153 = vadd.f32 %v3082, %v3152
      %v3154 = vpop.f32.mrb[0].mxu0
      %v3155 = vadd.f32 %v3084, %v3154
      %3156 = vmatprep.mubr.bf16.mxu0 %v2400
      %3157 = vmatmul.mubr.bf16.gmra.mrb[0].mxu0 %v2392
      %v3158 = vpop.f32.mrb[0].mxu0
      %v3159 = vadd.f32 %v3088, %v3158
      %v3160 = vpop.f32.mrb[0].mxu0
      %v3161 = vadd.f32 %v3090, %v3160
      %v3162 = vpop.f32.mrb[0].mxu0
      %v3163 = vadd.f32 %v3092, %v3162
      %v3164 = vpop.f32.mrb[0].mxu0
      %v3165 = vadd.f32 %v3094, %v3164
      %3166 = vmatprep.mubr.bf16.mxu0 %v2406
      %3167 = vmatmul.mubr.bf16.gmra.mrb[0].mxu0 %v2403
      %v3168 = vpop.f32.mrb[0].mxu0
      %v3169 = vadd.f32 %v3098, %v3168
      %v3170 = vpop.f32.mrb[0].mxu0
      %v3171 = vadd.f32 %v3100, %v3170
      %v3172 = vpop.f32.mrb[0].mxu0
      %v3173 = vpop.f32.mrb[0].mxu0
      %3174 = vdwg.mxu0
      %3175 = vmatprep.subr.bf16.mxu0 %v2906
      %3176 = vmatpush1.bf16.msra.mxu0 %v2905
      %3177 = vmatprep.subr.bf16.mxu0 %v2908
      %3178 = vmatpush1.bf16.msra.mxu0 %v2907
      %3179 = vmatprep.subr.bf16.mxu0 %v2910
      %3180 = vmatpush1.bf16.msra.mxu0 %v2909
      %3181 = vmatprep.subr.bf16.mxu0 %v2912
      %3182 = vmatpush1.bf16.msra.mxu0 %v2911
      %3183 = vmatprep.subr.bf16.mxu0 %v2914
      %3184 = vmatpush1.bf16.msra.mxu0 %v2913
      %3185 = vmatprep.subr.bf16.mxu0 %v2916
      %3186 = vmatpush1.bf16.msra.mxu0 %v2915
      %3187 = vmatprep.subr.bf16.mxu0 %v2918
      %3188 = vmatpush1.bf16.msra.mxu0 %v2917
      %3189 = vmatprep.subr.bf16.mxu0 %v2920
      %3190 = vmatpush1.bf16.msra.mxu0 %v2919
      %3191 = vmatprep.subr.bf16.mxu0 %v2922
      %3192 = vmatpush1.bf16.msra.mxu0 %v2921
      %3193 = vmatprep.subr.bf16.mxu0 %v2924
      %3194 = vmatpush1.bf16.msra.mxu0 %v2923
      %3195 = vmatprep.subr.bf16.mxu0 %v2926
      %3196 = vmatpush1.bf16.msra.mxu0 %v2925
      %3197 = vmatprep.subr.bf16.mxu0 %v2928
      %3198 = vmatpush1.bf16.msra.mxu0 %v2927
      %3199 = vmatprep.subr.bf16.mxu0 %v2930
      %3200 = vmatpush1.bf16.msra.mxu0 %v2929
      %3201 = vmatprep.subr.bf16.mxu0 %v2932
      %3202 = vmatpush1.bf16.msra.mxu0 %v2931
      %3203 = vmatprep.subr.bf16.mxu0 %v2934
      %3204 = vmatpush1.bf16.msra.mxu0 %v2933
      %3205 = vmatprep.subr.bf16.mxu0 %v2936
      %3206 = vmatpush1.bf16.msra.mxu0 %v2935
      %3207 = vmatprep.mubr.bf16.mxu0 %v2428
      %3208 = vmatmul.mubr.bf16.gmra.mrb[0].mxu0 %v2425
      %v3209 = vpop.f32.mrb[0].mxu0
      %v3210 = vadd.f32 %v3139, %v3209
      %v3211 = vpop.f32.mrb[0].mxu0
      %v3212 = vadd.f32 %v3141, %v3211
      %v3213 = vpop.f32.mrb[0].mxu0
      %v3214 = vadd.f32 %v3143, %v3213
      %v3215 = vpop.f32.mrb[0].mxu0
      %v3216 = vadd.f32 %v3145, %v3215
      %3217 = vmatprep.mubr.bf16.mxu0 %v2432
      %3218 = vmatmul.mubr.bf16.gmra.mrb[0].mxu0 %v2430
      %v3219 = vpop.f32.mrb[0].mxu0
      %v3220 = vadd.f32 %v3149, %v3219
      %v3221 = vpop.f32.mrb[0].mxu0
      %v3222 = vadd.f32 %v3151, %v3221
      %v3223 = vpop.f32.mrb[0].mxu0
      %v3224 = vadd.f32 %v3153, %v3223
      %v3225 = vpop.f32.mrb[0].mxu0
      %v3226 = vadd.f32 %v3155, %v3225
      %3227 = vmatprep.mubr.bf16.mxu0 %v2436
      %3228 = vmatmul.mubr.bf16.gmra.mrb[0].mxu0 %v2434
      %v3229 = vpop.f32.mrb[0].mxu0
      %v3230 = vadd.f32 %v3159, %v3229
      %v3231 = vpop.f32.mrb[0].mxu0
      %v3232 = vadd.f32 %v3161, %v3231
      %v3233 = vpop.f32.mrb[0].mxu0
      %v3234 = vadd.f32 %v3163, %v3233
      %v3235 = vpop.f32.mrb[0].mxu0
      %v3236 = vadd.f32 %v3165, %v3235
      %3237 = vmatprep.mubr.bf16.mxu0 %v2435
      %3238 = vmatmul.mubr.bf16.gmra.mrb[0].mxu0 %v2433
      %v3239 = vpop.f32.mrb[0].mxu0
      %v3240 = vadd.f32 %v3169, %v3239
      %v3241 = vpop.f32.mrb[0].mxu0
      %v3242 = vadd.f32 %v3171, %v3241
      %v3243 = vpop.f32.mrb[0].mxu0
      %v3244 = vpop.f32.mrb[0].mxu0
      %3245 = vdwg.mxu0
      %vm3246 = vcmp.ge.f32.partialorder %v3210, 0.0
      %vm3247 = vcmp.ge.f32.partialorder %v3212, 0.0
      %vm3248 = vcmp.ge.f32.partialorder %v3214, 0.0
      %vm3249 = vcmp.ge.f32.partialorder %v3216, 0.0
      %vm3250 = vcmp.ge.f32.partialorder %v3220, 0.0
      %vm3251 = vcmp.ge.f32.partialorder %v3222, 0.0
      %vm3252 = vcmp.ge.f32.partialorder %v3224, 0.0
      %vm3253 = vcmp.ge.f32.partialorder %v3226, 0.0
      %vm3254 = vcmp.ge.f32.partialorder %v3230, 0.0
      %vm3255 = vcmp.ge.f32.partialorder %v3232, 0.0
      %vm3256 = vcmp.ge.f32.partialorder %v3234, 0.0
      %vm3257 = vcmp.ge.f32.partialorder %v3236, 0.0
      %vm3258 = vcmp.ge.f32.partialorder %v3240, 0.0
      %vm3259 = vcmp.ge.f32.partialorder %v3242, 0.0
      %v3260 = vmul.f32 %v3210, 0.1
      %v3261 = vmul.f32 %v3212, 0.1
      %v3262 = vmul.f32 %v3214, 0.1
      %v3263 = vmul.f32 %v3216, 0.1
      %v3264 = vmul.f32 %v3220, 0.1
      %v3265 = vmul.f32 %v3222, 0.1
      %v3266 = vmul.f32 %v3224, 0.1
      %v3267 = vmul.f32 %v3226, 0.1
      %v3268 = vmul.f32 %v3230, 0.1
      %v3269 = vmul.f32 %v3232, 0.1
      %v3270 = vmul.f32 %v3234, 0.1
      %v3271 = vmul.f32 %v3236, 0.1
      %v3272 = vmul.f32 %v3240, 0.1
      %v3273 = vmul.f32 %v3242, 0.1
      %v3274 = vsel %vm3246, %v3210, %v3260
      %v3275 = vsel %vm3247, %v3212, %v3261
      %v3276 = vsel %vm3248, %v3214, %v3262
      %v3277 = vsel %vm3249, %v3216, %v3263
      %v3278 = vsel %vm3250, %v3220, %v3264
      %v3279 = vsel %vm3251, %v3222, %v3265
      %v3280 = vsel %vm3252, %v3224, %v3266
      %v3281 = vsel %vm3253, %v3226, %v3267
      %v3282 = vsel %vm3254, %v3230, %v3268
      %v3283 = vsel %vm3255, %v3232, %v3269
      %v3284 = vsel %vm3256, %v3234, %v3270
      %v3285 = vsel %vm3257, %v3236, %v3271
      %v3286 = vsel %vm3258, %v3240, %v3272
      %v3287 = vsel %vm3259, %v3242, %v3273
      %s3288 = sadd.s32 %s497, 4294967286
      %v3289 = vstv %s3288
      %v3290 = vadd.s32 %v3289, %v1383
      %v3291 = vadd.s32 %v3289, %v1384
      %v3292 = vadd.s32 %v3289, %v1385
      %v3293 = vadd.s32 %v3289, %v1386
      %v3294 = vadd.s32 %v3289, %v1387
      %v3295 = vadd.s32 %v3289, %v1388
      %v3296 = vadd.s32 %v3289, %v1389
      %vm3297 = vcmp.ge.s32.totalorder %v3290, 0
      %vm3298 = vcmp.ge.s32.totalorder %v3291, 0
      %vm3299 = vcmp.ge.s32.totalorder %v3292, 0
      %vm3300 = vcmp.ge.s32.totalorder %v3293, 0
      %vm3301 = vcmp.ge.s32.totalorder %v3294, 0
      %vm3302 = vcmp.ge.s32.totalorder %v3295, 0
      %vm3303 = vcmp.ge.s32.totalorder %v3296, 0
      %vm3304 = vcmp.lt.s32.totalorder %v3290, 64
      %vm3305 = vcmp.lt.s32.totalorder %v3291, 64
      %vm3306 = vcmp.lt.s32.totalorder %v3292, 64
      %vm3307 = vcmp.lt.s32.totalorder %v3293, 64
      %vm3308 = vcmp.lt.s32.totalorder %v3294, 64
      %vm3309 = vcmp.lt.s32.totalorder %v3295, 64
      %vm3310 = vcmp.lt.s32.totalorder %v3296, 64
      %vm3311 = vmand %vm3297, %vm3304
      %vm3312 = vmand %vm3298, %vm3305
      %vm3313 = vmand %vm3299, %vm3306
      %vm3314 = vmand %vm3300, %vm3307
      %vm3315 = vmand %vm3301, %vm3308
      %vm3316 = vmand %vm3302, %vm3309
      %vm3317 = vmand %vm3303, %vm3310
      %v3318 = vsel %vm3311, 1, 0
      %v3319 = vsel %vm3312, 1, 0
      %v3320 = vsel %vm3313, 1, 0
      %v3321 = vsel %vm3314, 1, 0
      %v3322 = vsel %vm3315, 1, 0
      %v3323 = vsel %vm3316, 1, 0
      %v3324 = vsel %vm3317, 1, 0
      %vm3325 = vcmp.eq.s32.totalorder %v3318, 1
      %vm3326 = vcmp.eq.s32.totalorder %v3319, 1
      %vm3327 = vcmp.eq.s32.totalorder %v3320, 1
      %vm3328 = vcmp.eq.s32.totalorder %v3321, 1
      %vm3329 = vcmp.eq.s32.totalorder %v3322, 1
      %vm3330 = vcmp.eq.s32.totalorder %v3323, 1
      %vm3331 = vcmp.eq.s32.totalorder %v3324, 1
      %v3332 = vsel %vm3325, %v3274, 0.0
      %v3333 = vsel %vm3325, %v3275, 0.0
      %v3334 = vsel %vm3326, %v3276, 0.0
      %v3335 = vsel %vm3326, %v3277, 0.0
      %v3336 = vsel %vm3327, %v3278, 0.0
      %v3337 = vsel %vm3327, %v3279, 0.0
      %v3338 = vsel %vm3328, %v3280, 0.0
      %v3339 = vsel %vm3328, %v3281, 0.0
      %v3340 = vsel %vm3329, %v3282, 0.0
      %v3341 = vsel %vm3329, %v3283, 0.0
      %v3342 = vsel %vm3330, %v3284, 0.0
      %v3343 = vsel %vm3330, %v3285, 0.0
      %v3344 = vsel %vm3331, %v3286, 0.0
      %v3345 = vsel %vm3331, %v3287, 0.0
      %v3346 = vpack.c.bf16 %v3334, %v3332
      %v3347 = vpack.c.bf16 %v3335, %v3333
      %v3348 = vpack.c.bf16 %v3338, %v3336
      %v3349 = vpack.c.bf16 %v3339, %v3337
      %v3350 = vpack.c.bf16 %v3342, %v3340
      %v3351 = vpack.c.bf16 %v3343, %v3341
      %v3352 = vpack.c.bf16 %v3344, %v3344
      %v3353 = vpack.c.bf16 %v3345, %v3345
      %v3355 = vshrl.u32 %v3346, 16
      %v3357 = vshll.u32 %v3346, 16
      %v3359 = vrot.slane %v3357, 1
      %v3360 = vor.u32 %v3355, %v3359
      %v3362 = vshll.u32 %v3348, 16
      %v3364 = vrot.slane %v3362, 1
      %v3365 = vsel %vm530, %v3360, %v3364
      %v3367 = vshrl.u32 %v3347, 16
      %v3369 = vshll.u32 %v3347, 16
      %v3371 = vrot.slane %v3369, 1
      %v3372 = vor.u32 %v3367, %v3371
      %v3374 = vshll.u32 %v3349, 16
      %v3376 = vrot.slane %v3374, 1
      %v3377 = vsel %vm530, %v3372, %v3376
      %v3378 = vshrl.u32 %v3348, 16
      %v3380 = vor.u32 %v3378, %v3364
      %v3382 = vshll.u32 %v3350, 16
      %v3384 = vrot.slane %v3382, 1
      %v3385 = vsel %vm530, %v3380, %v3384
      %v3386 = vshrl.u32 %v3349, 16
      %v3388 = vor.u32 %v3386, %v3376
      %v3390 = vshll.u32 %v3351, 16
      %v3392 = vrot.slane %v3390, 1
      %v3393 = vsel %vm530, %v3388, %v3392
      %v3394 = vshrl.u32 %v3350, 16
      %v3396 = vor.u32 %v3394, %v3384
      %v3398 = vshll.u32 %v3352, 16
      %v3400 = vrot.slane %v3398, 1
      %v3401 = vsel %vm530, %v3396, %v3400
      %v3402 = vshrl.u32 %v3351, 16
      %v3404 = vor.u32 %v3402, %v3392
      %v3406 = vshll.u32 %v3353, 16
      %v3408 = vrot.slane %v3406, 1
      %v3409 = vsel %vm530, %v3404, %v3408
      %v3410 = vshrl.u32 %v3352, 16
      %v3412 = vor.u32 %v3410, %v3400
      %v3413 = vshrl.u32 %v3353, 16
      %v3415 = vor.u32 %v3413, %v3408
      %v3432 = vrot.slane %v3346, 1
      %v3433 = vrot.slane %v3348, 1
      %v3434 = vsel %vm566, %v3432, %v3433
      %v3435 = vrot.slane %v3347, 1
      %v3436 = vrot.slane %v3349, 1
      %v3437 = vsel %vm566, %v3435, %v3436
      %v3438 = vrot.slane %v3350, 1
      %v3439 = vsel %vm566, %v3433, %v3438
      %v3440 = vrot.slane %v3351, 1
      %v3441 = vsel %vm566, %v3436, %v3440
      %v3442 = vrot.slane %v3352, 1
      %v3443 = vsel %vm566, %v3438, %v3442
      %v3444 = vrot.slane %v3353, 1
      %v3445 = vsel %vm566, %v3440, %v3444
      %v3454 = vld [vmem:[%s8] sm:$0xff]
      %v3455 = vld [vmem:[%s8 + $0x8] sm:$0xff]
      %v3456 = vld [vmem:[%s8 + $0x10] sm:$0xff]
      %v3457 = vld [vmem:[%s8 + $0x18] sm:$0xff]
      %v3458 = vld [vmem:[%s8 + $0x20] sm:$0xff]
      %v3459 = vld [vmem:[%s8 + $0x28] sm:$0xff]
      %v3460 = vld [vmem:[%s8 + $0x30] sm:$0xff]
      %v3461 = vld [vmem:[%s8 + $0x38] sm:$0xff]
      %v3462 = vld [vmem:[%s8 + $0x40] sm:$0xff]
      %v3463 = vld [vmem:[%s8 + $0x48] sm:$0xff]
      %v3464 = vld [vmem:[%s8 + $0x50] sm:$0xff]
      %v3465 = vld [vmem:[%s8 + $0x58] sm:$0xff]
      %v3466 = vld [vmem:[%s8 + $0x60] sm:$0xff]
      %v3467 = vld [vmem:[%s8 + $0x68] sm:$0xff]
      %v3468 = vld [vmem:[%s8 + $0x70] sm:$0xff]
      %v3469 = vld [vmem:[%s8 + $0x78] sm:$0xff]
      %v3470 = vld [vmem:[%s8 + $0x80] sm:$0xff]
      %v3471 = vld [vmem:[%s8 + $0x88] sm:$0xff]
      %v3472 = vld [vmem:[%s8 + $0x90] sm:$0xff]
      %v3473 = vld [vmem:[%s8 + $0x98] sm:$0xff]
      %v3474 = vld [vmem:[%s8 + $0xa0] sm:$0xff]
      %v3475 = vld [vmem:[%s8 + $0xa8] sm:$0xff]
      %v3476 = vld [vmem:[%s8 + $0xb0] sm:$0xff]
      %v3477 = vld [vmem:[%s8 + $0xb8] sm:$0xff]
      %v3478 = vld [vmem:[%s8 + $0xc0] sm:$0xff]
      %v3479 = vld [vmem:[%s8 + $0xc8] sm:$0xff]
      %v3480 = vld [vmem:[%s8 + $0xd0] sm:$0xff]
      %v3481 = vld [vmem:[%s8 + $0xd8] sm:$0xff]
      %v3482 = vld [vmem:[%s8 + $0xe0] sm:$0xff]
      %v3483 = vld [vmem:[%s8 + $0xe8] sm:$0xff]
      %v3484 = vld [vmem:[%s8 + $0xf0] sm:$0xff]
      %v3485 = vld [vmem:[%s8 + $0xf8] sm:$0xff]
      %v3486 = vld [vmem:[%s8 + $0x100] sm:$0xff]
      %v3487 = vld [vmem:[%s8 + $0x108] sm:$0xff]
      %v3488 = vld [vmem:[%s8 + $0x110] sm:$0xff]
      %v3489 = vld [vmem:[%s8 + $0x118] sm:$0xff]
      %v3490 = vld [vmem:[%s8 + $0x120] sm:$0xff]
      %v3491 = vld [vmem:[%s8 + $0x128] sm:$0xff]
      %v3492 = vld [vmem:[%s8 + $0x130] sm:$0xff]
      %v3493 = vld [vmem:[%s8 + $0x138] sm:$0xff]
      %v3494 = vld [vmem:[%s8 + $0x140] sm:$0xff]
      %v3495 = vld [vmem:[%s8 + $0x148] sm:$0xff]
      %v3496 = vld [vmem:[%s8 + $0x150] sm:$0xff]
      %v3497 = vld [vmem:[%s8 + $0x158] sm:$0xff]
      %v3498 = vld [vmem:[%s8 + $0x160] sm:$0xff]
      %v3499 = vld [vmem:[%s8 + $0x168] sm:$0xff]
      %v3500 = vld [vmem:[%s8 + $0x170] sm:$0xff]
      %v3501 = vld [vmem:[%s8 + $0x178] sm:$0xff]
      %v3502 = vld [vmem:[%s8 + $0x180] sm:$0xff]
      %v3503 = vld [vmem:[%s8 + $0x188] sm:$0xff]
      %v3504 = vld [vmem:[%s8 + $0x190] sm:$0xff]
      %v3505 = vld [vmem:[%s8 + $0x198] sm:$0xff]
      %v3506 = vld [vmem:[%s8 + $0x1a0] sm:$0xff]
      %v3507 = vld [vmem:[%s8 + $0x1a8] sm:$0xff]
      %v3508 = vld [vmem:[%s8 + $0x1b0] sm:$0xff]
      %v3509 = vld [vmem:[%s8 + $0x1b8] sm:$0xff]
      %v3510 = vld [vmem:[%s8 + $0x1c0] sm:$0xff]
      %v3511 = vld [vmem:[%s8 + $0x1c8] sm:$0xff]
      %v3512 = vld [vmem:[%s8 + $0x1d0] sm:$0xff]
      %v3513 = vld [vmem:[%s8 + $0x1d8] sm:$0xff]
      %v3514 = vld [vmem:[%s8 + $0x1e0] sm:$0xff]
      %v3515 = vld [vmem:[%s8 + $0x1e8] sm:$0xff]
      %v3516 = vld [vmem:[%s8 + $0x1f0] sm:$0xff]
      %v3517 = vld [vmem:[%s8 + $0x1f8] sm:$0xff]
      %v3518 = vld [vmem:[%s8 + $0x200] sm:$0xff]
      %v3519 = vld [vmem:[%s8 + $0x208] sm:$0xff]
      %v3520 = vld [vmem:[%s8 + $0x210] sm:$0xff]
      %v3521 = vld [vmem:[%s8 + $0x218] sm:$0xff]
      %v3522 = vld [vmem:[%s8 + $0x220] sm:$0xff]
      %v3523 = vld [vmem:[%s8 + $0x228] sm:$0xff]
      %v3524 = vld [vmem:[%s8 + $0x230] sm:$0xff]
      %v3525 = vld [vmem:[%s8 + $0x238] sm:$0xff]
      %v3526 = vld [vmem:[%s8 + $0x240] sm:$0xff]
      %v3527 = vld [vmem:[%s8 + $0x248] sm:$0xff]
      %v3528 = vld [vmem:[%s8 + $0x250] sm:$0xff]
      %v3529 = vld [vmem:[%s8 + $0x258] sm:$0xff]
      %v3530 = vld [vmem:[%s8 + $0x260] sm:$0xff]
      %v3531 = vld [vmem:[%s8 + $0x268] sm:$0xff]
      %v3532 = vld [vmem:[%s8 + $0x270] sm:$0xff]
      %v3533 = vld [vmem:[%s8 + $0x278] sm:$0xff]
      %v3534 = vld [vmem:[%s8 + $0x280] sm:$0xff]
      %v3535 = vld [vmem:[%s8 + $0x288] sm:$0xff]
      %v3536 = vld [vmem:[%s8 + $0x290] sm:$0xff]
      %v3537 = vld [vmem:[%s8 + $0x298] sm:$0xff]
      %v3538 = vld [vmem:[%s8 + $0x2a0] sm:$0xff]
      %v3539 = vld [vmem:[%s8 + $0x2a8] sm:$0xff]
      %v3540 = vld [vmem:[%s8 + $0x2b0] sm:$0xff]
      %v3541 = vld [vmem:[%s8 + $0x2b8] sm:$0xff]
      %v3542 = vld [vmem:[%s8 + $0x2c0] sm:$0xff]
      %v3543 = vld [vmem:[%s8 + $0x2c8] sm:$0xff]
      %v3544 = vld [vmem:[%s8 + $0x2d0] sm:$0xff]
      %v3545 = vld [vmem:[%s8 + $0x2d8] sm:$0xff]
      %v3546 = vld [vmem:[%s8 + $0x2e0] sm:$0xff]
      %v3547 = vld [vmem:[%s8 + $0x2e8] sm:$0xff]
      %v3548 = vld [vmem:[%s8 + $0x2f0] sm:$0xff]
      %v3549 = vld [vmem:[%s8 + $0x2f8] sm:$0xff]
      %v3550 = vld [vmem:[%s9] sm:$0x3]
      %v3552 = vlaneseq
      %v3553 = vshrl.u32 %v3552, 7
      %v3554 = vsub.s32 0, %v3553
      %v3555 = vrot.slane %v3550, %v3554
      %v3556 = vlaneseq
      %v3557 = vshrl.u32 %v3556, 7
      %v3558 = vsub.s32 1, %v3557
      %v3559 = vrot.slane %v3550, %v3558
      %v3658 = vunpack.c.l.b16 %v3454
      %v3659 = vunpack.c.h.b16 %v3454
      %v3660 = vunpack.c.l.b16 %v3455
      %v3661 = vunpack.c.h.b16 %v3455
      %v3662 = vunpack.c.l.b16 %v3456
      %v3663 = vunpack.c.h.b16 %v3456
      %v3664 = vunpack.c.l.b16 %v3457
      %v3665 = vunpack.c.h.b16 %v3457
      %v3666 = vunpack.c.l.b16 %v3458
      %v3667 = vunpack.c.h.b16 %v3458
      %v3668 = vunpack.c.l.b16 %v3459
      %v3669 = vunpack.c.h.b16 %v3459
      %v3670 = vunpack.c.l.b16 %v3460
      %v3671 = vunpack.c.h.b16 %v3460
      %v3672 = vunpack.c.l.b16 %v3461
      %v3673 = vunpack.c.h.b16 %v3461
      %v3674 = vunpack.c.l.b16 %v3462
      %v3675 = vunpack.c.h.b16 %v3462
      %v3676 = vunpack.c.l.b16 %v3463
      %v3677 = vunpack.c.h.b16 %v3463
      %v3678 = vunpack.c.l.b16 %v3464
      %v3679 = vunpack.c.h.b16 %v3464
      %v3680 = vunpack.c.l.b16 %v3465
      %v3681 = vunpack.c.h.b16 %v3465
      %v3682 = vunpack.c.l.b16 %v3466
      %v3683 = vunpack.c.h.b16 %v3466
      %v3684 = vunpack.c.l.b16 %v3467
      %v3685 = vunpack.c.h.b16 %v3467
      %v3686 = vunpack.c.l.b16 %v3468
      %v3687 = vunpack.c.h.b16 %v3468
      %v3688 = vunpack.c.l.b16 %v3469
      %v3689 = vunpack.c.h.b16 %v3469
      %v3690 = vunpack.c.l.b16 %v3470
      %v3691 = vunpack.c.h.b16 %v3470
      %v3692 = vunpack.c.l.b16 %v3471
      %v3693 = vunpack.c.h.b16 %v3471
      %v3694 = vunpack.c.l.b16 %v3472
      %v3695 = vunpack.c.h.b16 %v3472
      %v3696 = vunpack.c.l.b16 %v3473
      %v3697 = vunpack.c.h.b16 %v3473
      %v3698 = vunpack.c.l.b16 %v3474
      %v3699 = vunpack.c.h.b16 %v3474
      %v3700 = vunpack.c.l.b16 %v3475
      %v3701 = vunpack.c.h.b16 %v3475
      %v3702 = vunpack.c.l.b16 %v3476
      %v3703 = vunpack.c.h.b16 %v3476
      %v3704 = vunpack.c.l.b16 %v3477
      %v3705 = vunpack.c.h.b16 %v3477
      %v3706 = vunpack.c.l.b16 %v3478
      %v3707 = vunpack.c.h.b16 %v3478
      %v3708 = vunpack.c.l.b16 %v3479
      %v3709 = vunpack.c.h.b16 %v3479
      %v3710 = vunpack.c.l.b16 %v3480
      %v3711 = vunpack.c.h.b16 %v3480
      %v3712 = vunpack.c.l.b16 %v3481
      %v3713 = vunpack.c.h.b16 %v3481
      %v3714 = vunpack.c.l.b16 %v3482
      %v3715 = vunpack.c.h.b16 %v3482
      %v3716 = vunpack.c.l.b16 %v3483
      %v3717 = vunpack.c.h.b16 %v3483
      %v3718 = vunpack.c.l.b16 %v3484
      %v3719 = vunpack.c.h.b16 %v3484
      %v3720 = vunpack.c.l.b16 %v3485
      %v3721 = vunpack.c.h.b16 %v3485
      %v3722 = vunpack.c.l.b16 %v3486
      %v3723 = vunpack.c.h.b16 %v3486
      %v3724 = vunpack.c.l.b16 %v3487
      %v3725 = vunpack.c.h.b16 %v3487
      %v3726 = vunpack.c.l.b16 %v3488
      %v3727 = vunpack.c.h.b16 %v3488
      %v3728 = vunpack.c.l.b16 %v3489
      %v3729 = vunpack.c.h.b16 %v3489
      %v3730 = vunpack.c.l.b16 %v3490
      %v3731 = vunpack.c.h.b16 %v3490
      %v3732 = vunpack.c.l.b16 %v3491
      %v3733 = vunpack.c.h.b16 %v3491
      %v3734 = vunpack.c.l.b16 %v3492
      %v3735 = vunpack.c.h.b16 %v3492
      %v3736 = vunpack.c.l.b16 %v3493
      %v3737 = vunpack.c.h.b16 %v3493
      %v3738 = vunpack.c.l.b16 %v3494
      %v3739 = vunpack.c.h.b16 %v3494
      %v3740 = vunpack.c.l.b16 %v3495
      %v3741 = vunpack.c.h.b16 %v3495
      %v3742 = vunpack.c.l.b16 %v3496
      %v3743 = vunpack.c.h.b16 %v3496
      %v3744 = vunpack.c.l.b16 %v3497
      %v3745 = vunpack.c.h.b16 %v3497
      %v3746 = vunpack.c.l.b16 %v3498
      %v3747 = vunpack.c.h.b16 %v3498
      %v3748 = vunpack.c.l.b16 %v3499
      %v3749 = vunpack.c.h.b16 %v3499
      %v3750 = vunpack.c.l.b16 %v3500
      %v3751 = vunpack.c.h.b16 %v3500
      %v3752 = vunpack.c.l.b16 %v3501
      %v3753 = vunpack.c.h.b16 %v3501
      %v3754 = vunpack.c.l.b16 %v3502
      %v3755 = vunpack.c.h.b16 %v3502
      %v3756 = vunpack.c.l.b16 %v3503
      %v3757 = vunpack.c.h.b16 %v3503
      %v3758 = vunpack.c.l.b16 %v3504
      %v3759 = vunpack.c.h.b16 %v3504
      %v3760 = vunpack.c.l.b16 %v3505
      %v3761 = vunpack.c.h.b16 %v3505
      %v3762 = vunpack.c.l.b16 %v3506
      %v3763 = vunpack.c.h.b16 %v3506
      %v3764 = vunpack.c.l.b16 %v3507
      %v3765 = vunpack.c.h.b16 %v3507
      %v3766 = vunpack.c.l.b16 %v3508
      %v3767 = vunpack.c.h.b16 %v3508
      %v3768 = vunpack.c.l.b16 %v3509
      %v3769 = vunpack.c.h.b16 %v3509
      %v3770 = vunpack.c.l.b16 %v3510
      %v3771 = vunpack.c.h.b16 %v3510
      %v3772 = vunpack.c.l.b16 %v3511
      %v3773 = vunpack.c.h.b16 %v3511
      %v3774 = vunpack.c.l.b16 %v3512
      %v3775 = vunpack.c.h.b16 %v3512
      %v3776 = vunpack.c.l.b16 %v3513
      %v3777 = vunpack.c.h.b16 %v3513
      %v3778 = vunpack.c.l.b16 %v3514
      %v3779 = vunpack.c.h.b16 %v3514
      %v3780 = vunpack.c.l.b16 %v3515
      %v3781 = vunpack.c.h.b16 %v3515
      %v3782 = vunpack.c.l.b16 %v3516
      %v3783 = vunpack.c.h.b16 %v3516
      %v3784 = vunpack.c.l.b16 %v3517
      %v3785 = vunpack.c.h.b16 %v3517
      %v3786 = vunpack.c.l.b16 %v3518
      %v3787 = vunpack.c.h.b16 %v3518
      %v3788 = vunpack.c.l.b16 %v3519
      %v3789 = vunpack.c.h.b16 %v3519
      %v3790 = vunpack.c.l.b16 %v3520
      %v3791 = vunpack.c.h.b16 %v3520
      %v3792 = vunpack.c.l.b16 %v3521
      %v3793 = vunpack.c.h.b16 %v3521
      %v3794 = vunpack.c.l.b16 %v3522
      %v3795 = vunpack.c.h.b16 %v3522
      %v3796 = vunpack.c.l.b16 %v3523
      %v3797 = vunpack.c.h.b16 %v3523
      %v3798 = vunpack.c.l.b16 %v3524
      %v3799 = vunpack.c.h.b16 %v3524
      %v3800 = vunpack.c.l.b16 %v3525
      %v3801 = vunpack.c.h.b16 %v3525
      %v3802 = vunpack.c.l.b16 %v3526
      %v3803 = vunpack.c.h.b16 %v3526
      %v3804 = vunpack.c.l.b16 %v3527
      %v3805 = vunpack.c.h.b16 %v3527
      %v3806 = vunpack.c.l.b16 %v3528
      %v3807 = vunpack.c.h.b16 %v3528
      %v3808 = vunpack.c.l.b16 %v3529
      %v3809 = vunpack.c.h.b16 %v3529
      %v3810 = vunpack.c.l.b16 %v3530
      %v3811 = vunpack.c.h.b16 %v3530
      %v3812 = vunpack.c.l.b16 %v3531
      %v3813 = vunpack.c.h.b16 %v3531
      %v3814 = vunpack.c.l.b16 %v3532
      %v3815 = vunpack.c.h.b16 %v3532
      %v3816 = vunpack.c.l.b16 %v3533
      %v3817 = vunpack.c.h.b16 %v3533
      %v3818 = vunpack.c.l.b16 %v3534
      %v3819 = vunpack.c.h.b16 %v3534
      %v3820 = vunpack.c.l.b16 %v3535
      %v3821 = vunpack.c.h.b16 %v3535
      %v3822 = vunpack.c.l.b16 %v3536
      %v3823 = vunpack.c.h.b16 %v3536
      %v3824 = vunpack.c.l.b16 %v3537
      %v3825 = vunpack.c.h.b16 %v3537
      %v3826 = vunpack.c.l.b16 %v3538
      %v3827 = vunpack.c.h.b16 %v3538
      %v3828 = vunpack.c.l.b16 %v3539
      %v3829 = vunpack.c.h.b16 %v3539
      %v3830 = vunpack.c.l.b16 %v3540
      %v3831 = vunpack.c.h.b16 %v3540
      %v3832 = vunpack.c.l.b16 %v3541
      %v3833 = vunpack.c.h.b16 %v3541
      %v3834 = vunpack.c.l.b16 %v3542
      %v3835 = vunpack.c.h.b16 %v3542
      %v3836 = vunpack.c.l.b16 %v3543
      %v3837 = vunpack.c.h.b16 %v3543
      %v3838 = vunpack.c.l.b16 %v3544
      %v3839 = vunpack.c.h.b16 %v3544
      %v3840 = vunpack.c.l.b16 %v3545
      %v3841 = vunpack.c.h.b16 %v3545
      %v3842 = vunpack.c.l.b16 %v3546
      %v3843 = vunpack.c.h.b16 %v3546
      %v3844 = vunpack.c.l.b16 %v3547
      %v3845 = vunpack.c.h.b16 %v3547
      %v3846 = vunpack.c.l.b16 %v3548
      %v3847 = vunpack.c.h.b16 %v3548
      %v3848 = vunpack.c.l.b16 %v3549
      %v3849 = vunpack.c.h.b16 %v3549
      %v3850 = vpack.c.b16 %v3660, %v3658
      %v3851 = vpack.c.b16 %v3661, %v3659
      %v3852 = vpack.c.b16 %v3664, %v3662
      %v3853 = vpack.c.b16 %v3665, %v3663
      %v3854 = vpack.c.b16 %v3668, %v3666
      %v3855 = vpack.c.b16 %v3669, %v3667
      %v3856 = vpack.c.b16 %v3672, %v3670
      %v3857 = vpack.c.b16 %v3673, %v3671
      %v3858 = vpack.c.b16 %v3676, %v3674
      %v3859 = vpack.c.b16 %v3677, %v3675
      %v3860 = vpack.c.b16 %v3680, %v3678
      %v3861 = vpack.c.b16 %v3681, %v3679
      %v3862 = vpack.c.b16 %v3684, %v3682
      %v3863 = vpack.c.b16 %v3685, %v3683
      %v3864 = vpack.c.b16 %v3688, %v3686
      %v3865 = vpack.c.b16 %v3689, %v3687
      %v3866 = vpack.c.b16 %v3692, %v3690
      %v3867 = vpack.c.b16 %v3693, %v3691
      %v3868 = vpack.c.b16 %v3696, %v3694
      %v3869 = vpack.c.b16 %v3697, %v3695
      %v3870 = vpack.c.b16 %v3700, %v3698
      %v3871 = vpack.c.b16 %v3701, %v3699
      %v3872 = vpack.c.b16 %v3704, %v3702
      %v3873 = vpack.c.b16 %v3705, %v3703
      %v3874 = vpack.c.b16 %v3708, %v3706
      %v3875 = vpack.c.b16 %v3709, %v3707
      %v3876 = vpack.c.b16 %v3712, %v3710
      %v3877 = vpack.c.b16 %v3713, %v3711
      %v3878 = vpack.c.b16 %v3716, %v3714
      %v3879 = vpack.c.b16 %v3717, %v3715
      %v3880 = vpack.c.b16 %v3720, %v3718
      %v3881 = vpack.c.b16 %v3721, %v3719
      %v3882 = vpack.c.b16 %v3724, %v3722
      %v3883 = vpack.c.b16 %v3725, %v3723
      %v3884 = vpack.c.b16 %v3728, %v3726
      %v3885 = vpack.c.b16 %v3729, %v3727
      %v3886 = vpack.c.b16 %v3732, %v3730
      %v3887 = vpack.c.b16 %v3733, %v3731
      %v3888 = vpack.c.b16 %v3736, %v3734
      %v3889 = vpack.c.b16 %v3737, %v3735
      %v3890 = vpack.c.b16 %v3740, %v3738
      %v3891 = vpack.c.b16 %v3741, %v3739
      %v3892 = vpack.c.b16 %v3744, %v3742
      %v3893 = vpack.c.b16 %v3745, %v3743
      %v3894 = vpack.c.b16 %v3748, %v3746
      %v3895 = vpack.c.b16 %v3749, %v3747
      %v3896 = vpack.c.b16 %v3752, %v3750
      %v3897 = vpack.c.b16 %v3753, %v3751
      %v3898 = vpack.c.b16 %v3756, %v3754
      %v3899 = vpack.c.b16 %v3757, %v3755
      %v3900 = vpack.c.b16 %v3760, %v3758
      %v3901 = vpack.c.b16 %v3761, %v3759
      %v3902 = vpack.c.b16 %v3764, %v3762
      %v3903 = vpack.c.b16 %v3765, %v3763
      %v3904 = vpack.c.b16 %v3768, %v3766
      %v3905 = vpack.c.b16 %v3769, %v3767
      %v3906 = vpack.c.b16 %v3772, %v3770
      %v3907 = vpack.c.b16 %v3773, %v3771
      %v3908 = vpack.c.b16 %v3776, %v3774
      %v3909 = vpack.c.b16 %v3777, %v3775
      %v3910 = vpack.c.b16 %v3780, %v3778
      %v3911 = vpack.c.b16 %v3781, %v3779
      %v3912 = vpack.c.b16 %v3784, %v3782
      %v3913 = vpack.c.b16 %v3785, %v3783
      %v3914 = vpack.c.b16 %v3788, %v3786
      %v3915 = vpack.c.b16 %v3789, %v3787
      %v3916 = vpack.c.b16 %v3792, %v3790
      %v3917 = vpack.c.b16 %v3793, %v3791
      %v3918 = vpack.c.b16 %v3796, %v3794
      %v3919 = vpack.c.b16 %v3797, %v3795
      %v3920 = vpack.c.b16 %v3800, %v3798
      %v3921 = vpack.c.b16 %v3801, %v3799
      %v3922 = vpack.c.b16 %v3804, %v3802
      %v3923 = vpack.c.b16 %v3805, %v3803
      %v3924 = vpack.c.b16 %v3808, %v3806
      %v3925 = vpack.c.b16 %v3809, %v3807
      %v3926 = vpack.c.b16 %v3812, %v3810
      %v3927 = vpack.c.b16 %v3813, %v3811
      %v3928 = vpack.c.b16 %v3816, %v3814
      %v3929 = vpack.c.b16 %v3817, %v3815
      %v3930 = vpack.c.b16 %v3820, %v3818
      %v3931 = vpack.c.b16 %v3821, %v3819
      %v3932 = vpack.c.b16 %v3824, %v3822
      %v3933 = vpack.c.b16 %v3825, %v3823
      %v3934 = vpack.c.b16 %v3828, %v3826
      %v3935 = vpack.c.b16 %v3829, %v3827
      %v3936 = vpack.c.b16 %v3832, %v3830
      %v3937 = vpack.c.b16 %v3833, %v3831
      %v3938 = vpack.c.b16 %v3836, %v3834
      %v3939 = vpack.c.b16 %v3837, %v3835
      %v3940 = vpack.c.b16 %v3840, %v3838
      %v3941 = vpack.c.b16 %v3841, %v3839
      %v3942 = vpack.c.b16 %v3844, %v3842
      %v3943 = vpack.c.b16 %v3845, %v3843
      %v3944 = vpack.c.b16 %v3848, %v3846
      %v3945 = vpack.c.b16 %v3849, %v3847
      %4042 = vmatprep.subr.bf16.mxu0 %v3851
      %4043 = vmatpush1.bf16.msra.mxu0 %v3850
      %4044 = vmatprep.subr.bf16.mxu0 %v3853
      %4045 = vmatpush1.bf16.msra.mxu0 %v3852
      %4046 = vmatprep.subr.bf16.mxu0 %v3855
      %4047 = vmatpush1.bf16.msra.mxu0 %v3854
      %4048 = vmatprep.subr.bf16.mxu0 %v3857
      %4049 = vmatpush1.bf16.msra.mxu0 %v3856
      %4050 = vmatprep.subr.bf16.mxu0 %v3859
      %4051 = vmatpush1.bf16.msra.mxu0 %v3858
      %4052 = vmatprep.subr.bf16.mxu0 %v3861
      %4053 = vmatpush1.bf16.msra.mxu0 %v3860
      %4054 = vmatprep.subr.bf16.mxu0 %v3863
      %4055 = vmatpush1.bf16.msra.mxu0 %v3862
      %4056 = vmatprep.subr.bf16.mxu0 %v3865
      %4057 = vmatpush1.bf16.msra.mxu0 %v3864
      %4058 = vmatprep.subr.bf16.mxu0 %v3867
      %4059 = vmatpush1.bf16.msra.mxu0 %v3866
      %4060 = vmatprep.subr.bf16.mxu0 %v3869
      %4061 = vmatpush1.bf16.msra.mxu0 %v3868
      %4062 = vmatprep.subr.bf16.mxu0 %v3871
      %4063 = vmatpush1.bf16.msra.mxu0 %v3870
      %4064 = vmatprep.subr.bf16.mxu0 %v3873
      %4065 = vmatpush1.bf16.msra.mxu0 %v3872
      %4066 = vmatprep.subr.bf16.mxu0 %v3875
      %4067 = vmatpush1.bf16.msra.mxu0 %v3874
      %4068 = vmatprep.subr.bf16.mxu0 %v3877
      %4069 = vmatpush1.bf16.msra.mxu0 %v3876
      %4070 = vmatprep.subr.bf16.mxu0 %v3879
      %4071 = vmatpush1.bf16.msra.mxu0 %v3878
      %4072 = vmatprep.subr.bf16.mxu0 %v3881
      %4073 = vmatpush1.bf16.msra.mxu0 %v3880
      %4074 = vmatprep.mubr.bf16.mxu0 %v3347
      %4075 = vmatmul.mubr.bf16.gmra.mrb[0].mxu0 %v3346
      %v4076 = vpop.f32.mrb[0].mxu0
      %v4077 = vadd.f32 %v3555, %v4076
      %v4078 = vpop.f32.mrb[0].mxu0
      %v4079 = vadd.f32 %v3559, %v4078
      %v4080 = vpop.f32.mrb[0].mxu0
      %v4081 = vadd.f32 %v3555, %v4080
      %v4082 = vpop.f32.mrb[0].mxu0
      %v4083 = vadd.f32 %v3559, %v4082
      %4084 = vmatprep.mubr.bf16.mxu0 %v3349
      %4085 = vmatmul.mubr.bf16.gmra.mrb[0].mxu0 %v3348
      %v4086 = vpop.f32.mrb[0].mxu0
      %v4087 = vadd.f32 %v3555, %v4086
      %v4088 = vpop.f32.mrb[0].mxu0
      %v4089 = vadd.f32 %v3559, %v4088
      %v4090 = vpop.f32.mrb[0].mxu0
      %v4091 = vadd.f32 %v3555, %v4090
      %v4092 = vpop.f32.mrb[0].mxu0
      %v4093 = vadd.f32 %v3559, %v4092
      %4094 = vmatprep.mubr.bf16.mxu0 %v3351
      %4095 = vmatmul.mubr.bf16.gmra.mrb[0].mxu0 %v3350
      %v4096 = vpop.f32.mrb[0].mxu0
      %v4097 = vadd.f32 %v3555, %v4096
      %v4098 = vpop.f32.mrb[0].mxu0
      %v4099 = vadd.f32 %v3559, %v4098
      %v4100 = vpop.f32.mrb[0].mxu0
      %v4101 = vadd.f32 %v3555, %v4100
      %v4102 = vpop.f32.mrb[0].mxu0
      %v4103 = vadd.f32 %v3559, %v4102
      %4104 = vmatprep.mubr.bf16.mxu0 %v3353
      %4105 = vmatmul.mubr.bf16.gmra.mrb[0].mxu0 %v3352
      %v4106 = vpop.f32.mrb[0].mxu0
      %v4107 = vadd.f32 %v3555, %v4106
      %v4108 = vpop.f32.mrb[0].mxu0
      %v4109 = vadd.f32 %v3559, %v4108
      %v4110 = vpop.f32.mrb[0].mxu0
      %v4111 = vpop.f32.mrb[0].mxu0
      %4112 = vdwg.mxu0
      %4113 = vmatprep.subr.bf16.mxu0 %v3883
      %4114 = vmatpush1.bf16.msra.mxu0 %v3882
      %4115 = vmatprep.subr.bf16.mxu0 %v3885
      %4116 = vmatpush1.bf16.msra.mxu0 %v3884
      %4117 = vmatprep.subr.bf16.mxu0 %v3887
      %4118 = vmatpush1.bf16.msra.mxu0 %v3886
      %4119 = vmatprep.subr.bf16.mxu0 %v3889
      %4120 = vmatpush1.bf16.msra.mxu0 %v3888
      %4121 = vmatprep.subr.bf16.mxu0 %v3891
      %4122 = vmatpush1.bf16.msra.mxu0 %v3890
      %4123 = vmatprep.subr.bf16.mxu0 %v3893
      %4124 = vmatpush1.bf16.msra.mxu0 %v3892
      %4125 = vmatprep.subr.bf16.mxu0 %v3895
      %4126 = vmatpush1.bf16.msra.mxu0 %v3894
      %4127 = vmatprep.subr.bf16.mxu0 %v3897
      %4128 = vmatpush1.bf16.msra.mxu0 %v3896
      %4129 = vmatprep.subr.bf16.mxu0 %v3899
      %4130 = vmatpush1.bf16.msra.mxu0 %v3898
      %4131 = vmatprep.subr.bf16.mxu0 %v3901
      %4132 = vmatpush1.bf16.msra.mxu0 %v3900
      %4133 = vmatprep.subr.bf16.mxu0 %v3903
      %4134 = vmatpush1.bf16.msra.mxu0 %v3902
      %4135 = vmatprep.subr.bf16.mxu0 %v3905
      %4136 = vmatpush1.bf16.msra.mxu0 %v3904
      %4137 = vmatprep.subr.bf16.mxu0 %v3907
      %4138 = vmatpush1.bf16.msra.mxu0 %v3906
      %4139 = vmatprep.subr.bf16.mxu0 %v3909
      %4140 = vmatpush1.bf16.msra.mxu0 %v3908
      %4141 = vmatprep.subr.bf16.mxu0 %v3911
      %4142 = vmatpush1.bf16.msra.mxu0 %v3910
      %4143 = vmatprep.subr.bf16.mxu0 %v3913
      %4144 = vmatpush1.bf16.msra.mxu0 %v3912
      %4145 = vmatprep.mubr.bf16.mxu0 %v3377
      %4146 = vmatmul.mubr.bf16.gmra.mrb[0].mxu0 %v3365
      %v4147 = vpop.f32.mrb[0].mxu0
      %v4148 = vadd.f32 %v4077, %v4147
      %v4149 = vpop.f32.mrb[0].mxu0
      %v4150 = vadd.f32 %v4079, %v4149
      %v4151 = vpop.f32.mrb[0].mxu0
      %v4152 = vadd.f32 %v4081, %v4151
      %v4153 = vpop.f32.mrb[0].mxu0
      %v4154 = vadd.f32 %v4083, %v4153
      %4155 = vmatprep.mubr.bf16.mxu0 %v3393
      %4156 = vmatmul.mubr.bf16.gmra.mrb[0].mxu0 %v3385
      %v4157 = vpop.f32.mrb[0].mxu0
      %v4158 = vadd.f32 %v4087, %v4157
      %v4159 = vpop.f32.mrb[0].mxu0
      %v4160 = vadd.f32 %v4089, %v4159
      %v4161 = vpop.f32.mrb[0].mxu0
      %v4162 = vadd.f32 %v4091, %v4161
      %v4163 = vpop.f32.mrb[0].mxu0
      %v4164 = vadd.f32 %v4093, %v4163
      %4165 = vmatprep.mubr.bf16.mxu0 %v3409
      %4166 = vmatmul.mubr.bf16.gmra.mrb[0].mxu0 %v3401
      %v4167 = vpop.f32.mrb[0].mxu0
      %v4168 = vadd.f32 %v4097, %v4167
      %v4169 = vpop.f32.mrb[0].mxu0
      %v4170 = vadd.f32 %v4099, %v4169
      %v4171 = vpop.f32.mrb[0].mxu0
      %v4172 = vadd.f32 %v4101, %v4171
      %v4173 = vpop.f32.mrb[0].mxu0
      %v4174 = vadd.f32 %v4103, %v4173
      %4175 = vmatprep.mubr.bf16.mxu0 %v3415
      %4176 = vmatmul.mubr.bf16.gmra.mrb[0].mxu0 %v3412
      %v4177 = vpop.f32.mrb[0].mxu0
      %v4178 = vadd.f32 %v4107, %v4177
      %v4179 = vpop.f32.mrb[0].mxu0
      %v4180 = vadd.f32 %v4109, %v4179
      %v4181 = vpop.f32.mrb[0].mxu0
      %v4182 = vpop.f32.mrb[0].mxu0
      %4183 = vdwg.mxu0
      %4184 = vmatprep.subr.bf16.mxu0 %v3915
      %4185 = vmatpush1.bf16.msra.mxu0 %v3914
      %4186 = vmatprep.subr.bf16.mxu0 %v3917
      %4187 = vmatpush1.bf16.msra.mxu0 %v3916
      %4188 = vmatprep.subr.bf16.mxu0 %v3919
      %4189 = vmatpush1.bf16.msra.mxu0 %v3918
      %4190 = vmatprep.subr.bf16.mxu0 %v3921
      %4191 = vmatpush1.bf16.msra.mxu0 %v3920
      %4192 = vmatprep.subr.bf16.mxu0 %v3923
      %4193 = vmatpush1.bf16.msra.mxu0 %v3922
      %4194 = vmatprep.subr.bf16.mxu0 %v3925
      %4195 = vmatpush1.bf16.msra.mxu0 %v3924
      %4196 = vmatprep.subr.bf16.mxu0 %v3927
      %4197 = vmatpush1.bf16.msra.mxu0 %v3926
      %4198 = vmatprep.subr.bf16.mxu0 %v3929
      %4199 = vmatpush1.bf16.msra.mxu0 %v3928
      %4200 = vmatprep.subr.bf16.mxu0 %v3931
      %4201 = vmatpush1.bf16.msra.mxu0 %v3930
      %4202 = vmatprep.subr.bf16.mxu0 %v3933
      %4203 = vmatpush1.bf16.msra.mxu0 %v3932
      %4204 = vmatprep.subr.bf16.mxu0 %v3935
      %4205 = vmatpush1.bf16.msra.mxu0 %v3934
      %4206 = vmatprep.subr.bf16.mxu0 %v3937
      %4207 = vmatpush1.bf16.msra.mxu0 %v3936
      %4208 = vmatprep.subr.bf16.mxu0 %v3939
      %4209 = vmatpush1.bf16.msra.mxu0 %v3938
      %4210 = vmatprep.subr.bf16.mxu0 %v3941
      %4211 = vmatpush1.bf16.msra.mxu0 %v3940
      %4212 = vmatprep.subr.bf16.mxu0 %v3943
      %4213 = vmatpush1.bf16.msra.mxu0 %v3942
      %4214 = vmatprep.subr.bf16.mxu0 %v3945
      %4215 = vmatpush1.bf16.msra.mxu0 %v3944
      %4216 = vmatprep.mubr.bf16.mxu0 %v3437
      %4217 = vmatmul.mubr.bf16.gmra.mrb[0].mxu0 %v3434
      %v4218 = vpop.f32.mrb[0].mxu0
      %v4219 = vadd.f32 %v4148, %v4218
      %v4220 = vpop.f32.mrb[0].mxu0
      %v4221 = vadd.f32 %v4150, %v4220
      %v4222 = vpop.f32.mrb[0].mxu0
      %v4223 = vadd.f32 %v4152, %v4222
      %v4224 = vpop.f32.mrb[0].mxu0
      %v4225 = vadd.f32 %v4154, %v4224
      %4226 = vmatprep.mubr.bf16.mxu0 %v3441
      %4227 = vmatmul.mubr.bf16.gmra.mrb[0].mxu0 %v3439
      %v4228 = vpop.f32.mrb[0].mxu0
      %v4229 = vadd.f32 %v4158, %v4228
      %v4230 = vpop.f32.mrb[0].mxu0
      %v4231 = vadd.f32 %v4160, %v4230
      %v4232 = vpop.f32.mrb[0].mxu0
      %v4233 = vadd.f32 %v4162, %v4232
      %v4234 = vpop.f32.mrb[0].mxu0
      %v4235 = vadd.f32 %v4164, %v4234
      %4236 = vmatprep.mubr.bf16.mxu0 %v3445
      %4237 = vmatmul.mubr.bf16.gmra.mrb[0].mxu0 %v3443
      %v4238 = vpop.f32.mrb[0].mxu0
      %v4239 = vadd.f32 %v4168, %v4238
      %v4240 = vpop.f32.mrb[0].mxu0
      %v4241 = vadd.f32 %v4170, %v4240
      %v4242 = vpop.f32.mrb[0].mxu0
      %v4243 = vadd.f32 %v4172, %v4242
      %v4244 = vpop.f32.mrb[0].mxu0
      %v4245 = vadd.f32 %v4174, %v4244
      %4246 = vmatprep.mubr.bf16.mxu0 %v3444
      %4247 = vmatmul.mubr.bf16.gmra.mrb[0].mxu0 %v3442
      %v4248 = vpop.f32.mrb[0].mxu0
      %v4249 = vadd.f32 %v4178, %v4248
      %v4250 = vpop.f32.mrb[0].mxu0
      %v4251 = vadd.f32 %v4180, %v4250
      %v4252 = vpop.f32.mrb[0].mxu0
      %v4253 = vpop.f32.mrb[0].mxu0
      %4254 = vdwg.mxu0
      %v4255 = vunpack.c.l.bf16 %v2337
      %v4256 = vunpack.c.l.bf16 %v2338
      %v4257 = vunpack.c.h.bf16 %v2337
      %v4258 = vunpack.c.h.bf16 %v2338
      %v4259 = vunpack.c.l.bf16 %v2339
      %v4260 = vunpack.c.l.bf16 %v2340
      %v4261 = vunpack.c.h.bf16 %v2339
      %v4262 = vunpack.c.h.bf16 %v2340
      %v4263 = vunpack.c.l.bf16 %v2341
      %v4264 = vunpack.c.l.bf16 %v2342
      %v4265 = vunpack.c.h.bf16 %v2341
      %v4266 = vunpack.c.h.bf16 %v2342
      %v4267 = vunpack.c.l.bf16 %v2343
      %v4268 = vunpack.c.l.bf16 %v2344
      %vm4283 = vcmask 1041408
      %v4284 = vrot.slane %v4219, 6
      %v4285 = vrot.slane %v4221, 6
      %v4286 = vrot.slane %v4223, 6
      %v4287 = vsel %vm4283, %v4284, %v4286
      %v4288 = vrot.slane %v4225, 6
      %v4289 = vsel %vm4283, %v4285, %v4288
      %v4290 = vrot.slane %v4229, 6
      %v4291 = vsel %vm4283, %v4286, %v4290
      %v4292 = vrot.slane %v4231, 6
      %v4293 = vsel %vm4283, %v4288, %v4292
      %v4294 = vrot.slane %v4233, 6
      %v4295 = vsel %vm4283, %v4290, %v4294
      %v4296 = vrot.slane %v4235, 6
      %v4297 = vsel %vm4283, %v4292, %v4296
      %v4298 = vrot.slane %v4239, 6
      %v4299 = vsel %vm4283, %v4294, %v4298
      %v4300 = vrot.slane %v4241, 6
      %v4301 = vsel %vm4283, %v4296, %v4300
      %v4302 = vrot.slane %v4243, 6
      %v4303 = vsel %vm4283, %v4298, %v4302
      %v4304 = vrot.slane %v4245, 6
      %v4305 = vsel %vm4283, %v4300, %v4304
      %v4306 = vrot.slane %v4249, 6
      %v4307 = vsel %vm4283, %v4302, %v4306
      %v4308 = vrot.slane %v4251, 6
      %v4309 = vsel %vm4283, %v4304, %v4308
      %v4324 = vadd.f32 %v4255, %v4284
      %v4325 = vadd.f32 %v4256, %v4285
      %v4326 = vadd.f32 %v4257, %v4287
      %v4327 = vadd.f32 %v4258, %v4289
      %v4328 = vadd.f32 %v4259, %v4291
      %v4329 = vadd.f32 %v4260, %v4293
      %v4330 = vadd.f32 %v4261, %v4295
      %v4331 = vadd.f32 %v4262, %v4297
      %v4332 = vadd.f32 %v4263, %v4299
      %v4333 = vadd.f32 %v4264, %v4301
      %v4334 = vadd.f32 %v4265, %v4303
      %v4335 = vadd.f32 %v4266, %v4305
      %v4336 = vadd.f32 %v4267, %v4307
      %v4337 = vadd.f32 %v4268, %v4309
      %vm4338 = vcmp.ge.f32.partialorder %v4324, 0.0
      %vm4339 = vcmp.ge.f32.partialorder %v4325, 0.0
      %vm4340 = vcmp.ge.f32.partialorder %v4326, 0.0
      %vm4341 = vcmp.ge.f32.partialorder %v4327, 0.0
      %vm4342 = vcmp.ge.f32.partialorder %v4328, 0.0
      %vm4343 = vcmp.ge.f32.partialorder %v4329, 0.0
      %vm4344 = vcmp.ge.f32.partialorder %v4330, 0.0
      %vm4345 = vcmp.ge.f32.partialorder %v4331, 0.0
      %vm4346 = vcmp.ge.f32.partialorder %v4332, 0.0
      %vm4347 = vcmp.ge.f32.partialorder %v4333, 0.0
      %vm4348 = vcmp.ge.f32.partialorder %v4334, 0.0
      %vm4349 = vcmp.ge.f32.partialorder %v4335, 0.0
      %vm4350 = vcmp.ge.f32.partialorder %v4336, 0.0
      %vm4351 = vcmp.ge.f32.partialorder %v4337, 0.0
      %v4352 = vmul.f32 %v4324, 0.1
      %v4353 = vmul.f32 %v4325, 0.1
      %v4354 = vmul.f32 %v4326, 0.1
      %v4355 = vmul.f32 %v4327, 0.1
      %v4356 = vmul.f32 %v4328, 0.1
      %v4357 = vmul.f32 %v4329, 0.1
      %v4358 = vmul.f32 %v4330, 0.1
      %v4359 = vmul.f32 %v4331, 0.1
      %v4360 = vmul.f32 %v4332, 0.1
      %v4361 = vmul.f32 %v4333, 0.1
      %v4362 = vmul.f32 %v4334, 0.1
      %v4363 = vmul.f32 %v4335, 0.1
      %v4364 = vmul.f32 %v4336, 0.1
      %v4365 = vmul.f32 %v4337, 0.1
      %v4366 = vsel %vm4338, %v4324, %v4352
      %v4367 = vsel %vm4339, %v4325, %v4353
      %v4368 = vsel %vm4340, %v4326, %v4354
      %v4369 = vsel %vm4341, %v4327, %v4355
      %v4370 = vsel %vm4342, %v4328, %v4356
      %v4371 = vsel %vm4343, %v4329, %v4357
      %v4372 = vsel %vm4344, %v4330, %v4358
      %v4373 = vsel %vm4345, %v4331, %v4359
      %v4374 = vsel %vm4346, %v4332, %v4360
      %v4375 = vsel %vm4347, %v4333, %v4361
      %v4376 = vsel %vm4348, %v4334, %v4362
      %v4377 = vsel %vm4349, %v4335, %v4363
      %v4378 = vsel %vm4350, %v4336, %v4364
      %v4379 = vsel %vm4351, %v4337, %v4365
      %s4380 = sadd.s32 %s497, 4294967287
      %v4381 = vstv %s4380
      %v4382 = vadd.s32 %v4381, %v1383
      %v4383 = vadd.s32 %v4381, %v1384
      %v4384 = vadd.s32 %v4381, %v1385
      %v4385 = vadd.s32 %v4381, %v1386
      %v4386 = vadd.s32 %v4381, %v1387
      %v4387 = vadd.s32 %v4381, %v1388
      %v4388 = vadd.s32 %v4381, %v1389
      %vm4389 = vcmp.ge.s32.totalorder %v4382, 0
      %vm4390 = vcmp.ge.s32.totalorder %v4383, 0
      %vm4391 = vcmp.ge.s32.totalorder %v4384, 0
      %vm4392 = vcmp.ge.s32.totalorder %v4385, 0
      %vm4393 = vcmp.ge.s32.totalorder %v4386, 0
      %vm4394 = vcmp.ge.s32.totalorder %v4387, 0
      %vm4395 = vcmp.ge.s32.totalorder %v4388, 0
      %vm4396 = vcmp.lt.s32.totalorder %v4382, 64
      %vm4397 = vcmp.lt.s32.totalorder %v4383, 64
      %vm4398 = vcmp.lt.s32.totalorder %v4384, 64
      %vm4399 = vcmp.lt.s32.totalorder %v4385, 64
      %vm4400 = vcmp.lt.s32.totalorder %v4386, 64
      %vm4401 = vcmp.lt.s32.totalorder %v4387, 64
      %vm4402 = vcmp.lt.s32.totalorder %v4388, 64
      %vm4403 = vmand %vm4389, %vm4396
      %vm4404 = vmand %vm4390, %vm4397
      %vm4405 = vmand %vm4391, %vm4398
      %vm4406 = vmand %vm4392, %vm4399
      %vm4407 = vmand %vm4393, %vm4400
      %vm4408 = vmand %vm4394, %vm4401
      %vm4409 = vmand %vm4395, %vm4402
      %v4410 = vsel %vm4403, 1, 0
      %v4411 = vsel %vm4404, 1, 0
      %v4412 = vsel %vm4405, 1, 0
      %v4413 = vsel %vm4406, 1, 0
      %v4414 = vsel %vm4407, 1, 0
      %v4415 = vsel %vm4408, 1, 0
      %v4416 = vsel %vm4409, 1, 0
      %vm4417 = vcmp.eq.s32.totalorder %v4410, 1
      %vm4418 = vcmp.eq.s32.totalorder %v4411, 1
      %vm4419 = vcmp.eq.s32.totalorder %v4412, 1
      %vm4420 = vcmp.eq.s32.totalorder %v4413, 1
      %vm4421 = vcmp.eq.s32.totalorder %v4414, 1
      %vm4422 = vcmp.eq.s32.totalorder %v4415, 1
      %vm4423 = vcmp.eq.s32.totalorder %v4416, 1
      %vm4438 = vcmask 1045504
      %v4439 = vrot.slane %v4366, 2
      %v4440 = vrot.slane %v4368, 2
      %v4441 = vsel %vm4438, %v4439, %v4440
      %v4442 = vrot.slane %v4367, 2
      %v4443 = vrot.slane %v4369, 2
      %v4444 = vsel %vm4438, %v4442, %v4443
      %v4445 = vrot.slane %v4370, 2
      %v4446 = vsel %vm4438, %v4440, %v4445
      %v4447 = vrot.slane %v4371, 2
      %v4448 = vsel %vm4438, %v4443, %v4447
      %v4449 = vrot.slane %v4372, 2
      %v4450 = vsel %vm4438, %v4445, %v4449
      %v4451 = vrot.slane %v4373, 2
      %v4452 = vsel %vm4438, %v4447, %v4451
      %v4453 = vrot.slane %v4374, 2
      %v4454 = vsel %vm4438, %v4449, %v4453
      %v4455 = vrot.slane %v4375, 2
      %v4456 = vsel %vm4438, %v4451, %v4455
      %v4457 = vrot.slane %v4376, 2
      %v4458 = vsel %vm4438, %v4453, %v4457
      %v4459 = vrot.slane %v4377, 2
      %v4460 = vsel %vm4438, %v4455, %v4459
      %v4461 = vrot.slane %v4378, 2
      %v4462 = vsel %vm4438, %v4457, %v4461
      %v4463 = vrot.slane %v4379, 2
      %v4464 = vsel %vm4438, %v4459, %v4463
      %v4479 = vsel %vm4417, %v4441, 0.0
      %v4480 = vsel %vm4417, %v4444, 0.0
      %v4481 = vsel %vm4418, %v4446, 0.0
      %v4482 = vsel %vm4418, %v4448, 0.0
      %v4483 = vsel %vm4419, %v4450, 0.0
      %v4484 = vsel %vm4419, %v4452, 0.0
      %v4485 = vsel %vm4420, %v4454, 0.0
      %v4486 = vsel %vm4420, %v4456, 0.0
      %v4487 = vsel %vm4421, %v4458, 0.0
      %v4488 = vsel %vm4421, %v4460, 0.0
      %v4489 = vsel %vm4422, %v4462, 0.0
      %v4490 = vsel %vm4422, %v4464, 0.0
      %v4491 = vsel %vm4423, %v4461, 0.0
      %v4492 = vsel %vm4423, %v4463, 0.0
      %v4493 = vpack.c.bf16 %v4481, %v4479
      %v4494 = vpack.c.bf16 %v4482, %v4480
      %v4495 = vpack.c.bf16 %v4485, %v4483
      %v4496 = vpack.c.bf16 %v4486, %v4484
      %v4497 = vpack.c.bf16 %v4489, %v4487
      %v4498 = vpack.c.bf16 %v4490, %v4488
      %v4499 = vpack.c.bf16 %v4491, %v4491
      %v4500 = vpack.c.bf16 %v4492, %v4492
      %v4502 = vshrl.u32 %v4493, 16
      %v4504 = vshll.u32 %v4493, 16
      %v4506 = vrot.slane %v4504, 1
      %v4507 = vor.u32 %v4502, %v4506
      %v4509 = vshll.u32 %v4495, 16
      %v4511 = vrot.slane %v4509, 1
      %v4512 = vsel %vm530, %v4507, %v4511
      %v4514 = vshrl.u32 %v4494, 16
      %v4516 = vshll.u32 %v4494, 16
      %v4518 = vrot.slane %v4516, 1
      %v4519 = vor.u32 %v4514, %v4518
      %v4521 = vshll.u32 %v4496, 16
      %v4523 = vrot.slane %v4521, 1
      %v4524 = vsel %vm530, %v4519, %v4523
      %v4525 = vshrl.u32 %v4495, 16
      %v4527 = vor.u32 %v4525, %v4511
      %v4529 = vshll.u32 %v4497, 16
      %v4531 = vrot.slane %v4529, 1
      %v4532 = vsel %vm530, %v4527, %v4531
      %v4533 = vshrl.u32 %v4496, 16
      %v4535 = vor.u32 %v4533, %v4523
      %v4537 = vshll.u32 %v4498, 16
      %v4539 = vrot.slane %v4537, 1
      %v4540 = vsel %vm530, %v4535, %v4539
      %v4541 = vshrl.u32 %v4497, 16
      %v4543 = vor.u32 %v4541, %v4531
      %v4544 = vshrl.u32 %v4498, 16
      %v4546 = vor.u32 %v4544, %v4539
      %v4559 = vrot.slane %v4493, 1
      %v4560 = vrot.slane %v4495, 1
      %v4561 = vsel %vm566, %v4559, %v4560
      %v4562 = vrot.slane %v4494, 1
      %v4563 = vrot.slane %v4496, 1
      %v4564 = vsel %vm566, %v4562, %v4563
      %v4565 = vrot.slane %v4497, 1
      %v4566 = vsel %vm566, %v4560, %v4565
      %v4567 = vrot.slane %v4498, 1
      %v4568 = vsel %vm566, %v4563, %v4567
      %v4575 = vrot.slane %v4502, 1
      %v4576 = vrot.slane %v4504, 2
      %v4577 = vor.u32 %v4575, %v4576
      %v4578 = vrot.slane %v4525, 1
      %v4579 = vrot.slane %v4509, 2
      %v4580 = vor.u32 %v4578, %v4579
      %v4581 = vsel %vm578, %v4577, %v4580
      %v4582 = vrot.slane %v4514, 1
      %v4583 = vrot.slane %v4516, 2
      %v4584 = vor.u32 %v4582, %v4583
      %v4585 = vrot.slane %v4533, 1
      %v4586 = vrot.slane %v4521, 2
      %v4587 = vor.u32 %v4585, %v4586
      %v4588 = vsel %vm578, %v4584, %v4587
      %v4589 = vrot.slane %v4541, 1
      %v4590 = vrot.slane %v4529, 2
      %v4591 = vor.u32 %v4589, %v4590
      %v4592 = vsel %vm578, %v4580, %v4591
      %v4593 = vrot.slane %v4544, 1
      %v4594 = vrot.slane %v4537, 2
      %v4595 = vor.u32 %v4593, %v4594
      %v4596 = vsel %vm578, %v4587, %v4595
      %v4598 = vshll.u32 %v4499, 16
      %v4600 = vrot.slane %v4598, 2
      %v4601 = vsel %vm578, %v4591, %v4600
      %v4603 = vshll.u32 %v4500, 16
      %v4605 = vrot.slane %v4603, 2
      %v4606 = vsel %vm578, %v4595, %v4605
      %v4615 = vrot.slane %v4493, 2
      %v4616 = vrot.slane %v4495, 2
      %v4617 = vsel %vm598, %v4615, %v4616
      %v4618 = vrot.slane %v4494, 2
      %v4619 = vrot.slane %v4496, 2
      %v4620 = vsel %vm598, %v4618, %v4619
      %v4621 = vrot.slane %v4497, 2
      %v4622 = vsel %vm598, %v4616, %v4621
      %v4623 = vrot.slane %v4498, 2
      %v4624 = vsel %vm598, %v4619, %v4623
      %v4625 = vrot.slane %v4499, 2
      %v4626 = vsel %vm598, %v4621, %v4625
      %v4627 = vrot.slane %v4500, 2
      %v4628 = vsel %vm598, %v4623, %v4627
      %v4635 = vld [vmem:[%s10] sm:$0xf]
      %v4636 = vld [vmem:[%s10 + $0x4] sm:$0xf]
      %v4637 = vld [vmem:[%s10 + $0x8] sm:$0xf]
      %v4638 = vld [vmem:[%s10 + $0xc] sm:$0xf]
      %v4639 = vld [vmem:[%s10 + $0x10] sm:$0xf]
      %v4640 = vld [vmem:[%s10 + $0x14] sm:$0xf]
      %v4641 = vld [vmem:[%s10 + $0x18] sm:$0xf]
      %v4642 = vld [vmem:[%s10 + $0x1c] sm:$0xf]
      %v4643 = vld [vmem:[%s10 + $0x20] sm:$0xf]
      %v4644 = vld [vmem:[%s10 + $0x24] sm:$0xf]
      %v4645 = vld [vmem:[%s10 + $0x28] sm:$0xf]
      %v4646 = vld [vmem:[%s10 + $0x2c] sm:$0xf]
      %v4647 = vld [vmem:[%s10 + $0x30] sm:$0xf]
      %v4648 = vld [vmem:[%s10 + $0x34] sm:$0xf]
      %v4649 = vld [vmem:[%s10 + $0x38] sm:$0xf]
      %v4650 = vld [vmem:[%s10 + $0x3c] sm:$0xf]
      %v4651 = vld [vmem:[%s10 + $0x40] sm:$0xf]
      %v4652 = vld [vmem:[%s10 + $0x44] sm:$0xf]
      %v4653 = vld [vmem:[%s10 + $0x48] sm:$0xf]
      %v4654 = vld [vmem:[%s10 + $0x4c] sm:$0xf]
      %v4655 = vld [vmem:[%s10 + $0x50] sm:$0xf]
      %v4656 = vld [vmem:[%s10 + $0x54] sm:$0xf]
      %v4657 = vld [vmem:[%s10 + $0x58] sm:$0xf]
      %v4658 = vld [vmem:[%s10 + $0x5c] sm:$0xf]
      %v4659 = vld [vmem:[%s10 + $0x60] sm:$0xf]
      %v4660 = vld [vmem:[%s10 + $0x64] sm:$0xf]
      %v4661 = vld [vmem:[%s10 + $0x68] sm:$0xf]
      %v4662 = vld [vmem:[%s10 + $0x6c] sm:$0xf]
      %v4663 = vld [vmem:[%s10 + $0x70] sm:$0xf]
      %v4664 = vld [vmem:[%s10 + $0x74] sm:$0xf]
      %v4665 = vld [vmem:[%s10 + $0x78] sm:$0xf]
      %v4666 = vld [vmem:[%s10 + $0x7c] sm:$0xf]
      %v4667 = vld [vmem:[%s10 + $0x80] sm:$0xf]
      %v4668 = vld [vmem:[%s10 + $0x84] sm:$0xf]
      %v4669 = vld [vmem:[%s10 + $0x88] sm:$0xf]
      %v4670 = vld [vmem:[%s10 + $0x8c] sm:$0xf]
      %v4671 = vld [vmem:[%s10 + $0x90] sm:$0xf]
      %v4672 = vld [vmem:[%s10 + $0x94] sm:$0xf]
      %v4673 = vld [vmem:[%s10 + $0x98] sm:$0xf]
      %v4674 = vld [vmem:[%s10 + $0x9c] sm:$0xf]
      %v4675 = vld [vmem:[%s10 + $0xa0] sm:$0xf]
      %v4676 = vld [vmem:[%s10 + $0xa4] sm:$0xf]
      %v4677 = vld [vmem:[%s10 + $0xa8] sm:$0xf]
      %v4678 = vld [vmem:[%s10 + $0xac] sm:$0xf]
      %v4679 = vld [vmem:[%s10 + $0xb0] sm:$0xf]
      %v4680 = vld [vmem:[%s10 + $0xb4] sm:$0xf]
      %v4681 = vld [vmem:[%s10 + $0xb8] sm:$0xf]
      %v4682 = vld [vmem:[%s10 + $0xbc] sm:$0xf]
      %v4683 = vld [vmem:[%s10 + $0xc0] sm:$0xf]
      %v4684 = vld [vmem:[%s10 + $0xc4] sm:$0xf]
      %v4685 = vld [vmem:[%s10 + $0xc8] sm:$0xf]
      %v4686 = vld [vmem:[%s10 + $0xcc] sm:$0xf]
      %v4687 = vld [vmem:[%s10 + $0xd0] sm:$0xf]
      %v4688 = vld [vmem:[%s10 + $0xd4] sm:$0xf]
      %v4689 = vld [vmem:[%s10 + $0xd8] sm:$0xf]
      %v4690 = vld [vmem:[%s10 + $0xdc] sm:$0xf]
      %v4691 = vld [vmem:[%s10 + $0xe0] sm:$0xf]
      %v4692 = vld [vmem:[%s10 + $0xe4] sm:$0xf]
      %v4693 = vld [vmem:[%s10 + $0xe8] sm:$0xf]
      %v4694 = vld [vmem:[%s10 + $0xec] sm:$0xf]
      %v4695 = vld [vmem:[%s10 + $0xf0] sm:$0xf]
      %v4696 = vld [vmem:[%s10 + $0xf4] sm:$0xf]
      %v4697 = vld [vmem:[%s10 + $0xf8] sm:$0xf]
      %v4698 = vld [vmem:[%s10 + $0xfc] sm:$0xf]
      %v4699 = vld [vmem:[%s10 + $0x100] sm:$0xf]
      %v4700 = vld [vmem:[%s10 + $0x104] sm:$0xf]
      %v4701 = vld [vmem:[%s10 + $0x108] sm:$0xf]
      %v4702 = vld [vmem:[%s10 + $0x10c] sm:$0xf]
      %v4703 = vld [vmem:[%s10 + $0x110] sm:$0xf]
      %v4704 = vld [vmem:[%s10 + $0x114] sm:$0xf]
      %v4705 = vld [vmem:[%s10 + $0x118] sm:$0xf]
      %v4706 = vld [vmem:[%s10 + $0x11c] sm:$0xf]
      %v4707 = vld [vmem:[%s10 + $0x120] sm:$0xf]
      %v4708 = vld [vmem:[%s10 + $0x124] sm:$0xf]
      %v4709 = vld [vmem:[%s10 + $0x128] sm:$0xf]
      %v4710 = vld [vmem:[%s10 + $0x12c] sm:$0xf]
      %v4711 = vld [vmem:[%s10 + $0x130] sm:$0xf]
      %v4712 = vld [vmem:[%s10 + $0x134] sm:$0xf]
      %v4713 = vld [vmem:[%s10 + $0x138] sm:$0xf]
      %v4714 = vld [vmem:[%s10 + $0x13c] sm:$0xf]
      %v4715 = vld [vmem:[%s10 + $0x140] sm:$0xf]
      %v4716 = vld [vmem:[%s10 + $0x144] sm:$0xf]
      %v4717 = vld [vmem:[%s10 + $0x148] sm:$0xf]
      %v4718 = vld [vmem:[%s10 + $0x14c] sm:$0xf]
      %v4719 = vld [vmem:[%s10 + $0x150] sm:$0xf]
      %v4720 = vld [vmem:[%s10 + $0x154] sm:$0xf]
      %v4721 = vld [vmem:[%s10 + $0x158] sm:$0xf]
      %v4722 = vld [vmem:[%s10 + $0x15c] sm:$0xf]
      %v4723 = vld [vmem:[%s10 + $0x160] sm:$0xf]
      %v4724 = vld [vmem:[%s10 + $0x164] sm:$0xf]
      %v4725 = vld [vmem:[%s10 + $0x168] sm:$0xf]
      %v4726 = vld [vmem:[%s10 + $0x16c] sm:$0xf]
      %v4727 = vld [vmem:[%s10 + $0x170] sm:$0xf]
      %v4728 = vld [vmem:[%s10 + $0x174] sm:$0xf]
      %v4729 = vld [vmem:[%s10 + $0x178] sm:$0xf]
      %v4730 = vld [vmem:[%s10 + $0x17c] sm:$0xf]
      %v4731 = vld [vmem:[%s10 + $0x180] sm:$0xf]
      %v4732 = vld [vmem:[%s10 + $0x184] sm:$0xf]
      %v4733 = vld [vmem:[%s10 + $0x188] sm:$0xf]
      %v4734 = vld [vmem:[%s10 + $0x18c] sm:$0xf]
      %v4735 = vld [vmem:[%s10 + $0x190] sm:$0xf]
      %v4736 = vld [vmem:[%s10 + $0x194] sm:$0xf]
      %v4737 = vld [vmem:[%s10 + $0x198] sm:$0xf]
      %v4738 = vld [vmem:[%s10 + $0x19c] sm:$0xf]
      %v4739 = vld [vmem:[%s10 + $0x1a0] sm:$0xf]
      %v4740 = vld [vmem:[%s10 + $0x1a4] sm:$0xf]
      %v4741 = vld [vmem:[%s10 + $0x1a8] sm:$0xf]
      %v4742 = vld [vmem:[%s10 + $0x1ac] sm:$0xf]
      %v4743 = vld [vmem:[%s10 + $0x1b0] sm:$0xf]
      %v4744 = vld [vmem:[%s10 + $0x1b4] sm:$0xf]
      %v4745 = vld [vmem:[%s10 + $0x1b8] sm:$0xf]
      %v4746 = vld [vmem:[%s10 + $0x1bc] sm:$0xf]
      %v4747 = vld [vmem:[%s10 + $0x1c0] sm:$0xf]
      %v4748 = vld [vmem:[%s10 + $0x1c4] sm:$0xf]
      %v4749 = vld [vmem:[%s10 + $0x1c8] sm:$0xf]
      %v4750 = vld [vmem:[%s10 + $0x1cc] sm:$0xf]
      %v4751 = vld [vmem:[%s10 + $0x1d0] sm:$0xf]
      %v4752 = vld [vmem:[%s10 + $0x1d4] sm:$0xf]
      %v4753 = vld [vmem:[%s10 + $0x1d8] sm:$0xf]
      %v4754 = vld [vmem:[%s10 + $0x1dc] sm:$0xf]
      %v4755 = vld [vmem:[%s10 + $0x1e0] sm:$0xf]
      %v4756 = vld [vmem:[%s10 + $0x1e4] sm:$0xf]
      %v4757 = vld [vmem:[%s10 + $0x1e8] sm:$0xf]
      %v4758 = vld [vmem:[%s10 + $0x1ec] sm:$0xf]
      %v4759 = vld [vmem:[%s10 + $0x1f0] sm:$0xf]
      %v4760 = vld [vmem:[%s10 + $0x1f4] sm:$0xf]
      %v4761 = vld [vmem:[%s10 + $0x1f8] sm:$0xf]
      %v4762 = vld [vmem:[%s10 + $0x1fc] sm:$0xf]
      %v4763 = vld [vmem:[%s10 + $0x200] sm:$0xf]
      %v4764 = vld [vmem:[%s10 + $0x204] sm:$0xf]
      %v4765 = vld [vmem:[%s10 + $0x208] sm:$0xf]
      %v4766 = vld [vmem:[%s10 + $0x20c] sm:$0xf]
      %v4767 = vld [vmem:[%s10 + $0x210] sm:$0xf]
      %v4768 = vld [vmem:[%s10 + $0x214] sm:$0xf]
      %v4769 = vld [vmem:[%s10 + $0x218] sm:$0xf]
      %v4770 = vld [vmem:[%s10 + $0x21c] sm:$0xf]
      %v4771 = vld [vmem:[%s10 + $0x220] sm:$0xf]
      %v4772 = vld [vmem:[%s10 + $0x224] sm:$0xf]
      %v4773 = vld [vmem:[%s10 + $0x228] sm:$0xf]
      %v4774 = vld [vmem:[%s10 + $0x22c] sm:$0xf]
      %v4775 = vld [vmem:[%s10 + $0x230] sm:$0xf]
      %v4776 = vld [vmem:[%s10 + $0x234] sm:$0xf]
      %v4777 = vld [vmem:[%s10 + $0x238] sm:$0xf]
      %v4778 = vld [vmem:[%s10 + $0x23c] sm:$0xf]
      %v4779 = vld [vmem:[%s10 + $0x240] sm:$0xf]
      %v4780 = vld [vmem:[%s10 + $0x244] sm:$0xf]
      %v4781 = vld [vmem:[%s10 + $0x248] sm:$0xf]
      %v4782 = vld [vmem:[%s10 + $0x24c] sm:$0xf]
      %v4783 = vld [vmem:[%s10 + $0x250] sm:$0xf]
      %v4784 = vld [vmem:[%s10 + $0x254] sm:$0xf]
      %v4785 = vld [vmem:[%s10 + $0x258] sm:$0xf]
      %v4786 = vld [vmem:[%s10 + $0x25c] sm:$0xf]
      %v4787 = vld [vmem:[%s10 + $0x260] sm:$0xf]
      %v4788 = vld [vmem:[%s10 + $0x264] sm:$0xf]
      %v4789 = vld [vmem:[%s10 + $0x268] sm:$0xf]
      %v4790 = vld [vmem:[%s10 + $0x26c] sm:$0xf]
      %v4791 = vld [vmem:[%s10 + $0x270] sm:$0xf]
      %v4792 = vld [vmem:[%s10 + $0x274] sm:$0xf]
      %v4793 = vld [vmem:[%s10 + $0x278] sm:$0xf]
      %v4794 = vld [vmem:[%s10 + $0x27c] sm:$0xf]
      %v4795 = vld [vmem:[%s11] sm:$0x1]
      %v4797 = vlaneseq
      %v4798 = vshrl.u32 %v4797, 7
      %v4799 = vsub.s32 0, %v4798
      %v4800 = vrot.slane %v4795, %v4799
      %v4962 = vunpack.c.l.b16 %v4635
      %v4963 = vunpack.c.l.b16 %v4636
      %v4964 = vunpack.c.l.b16 %v4637
      %v4965 = vunpack.c.l.b16 %v4638
      %v4966 = vunpack.c.l.b16 %v4639
      %v4967 = vunpack.c.l.b16 %v4640
      %v4968 = vunpack.c.l.b16 %v4641
      %v4969 = vunpack.c.l.b16 %v4642
      %v4970 = vunpack.c.l.b16 %v4643
      %v4971 = vunpack.c.l.b16 %v4644
      %v4972 = vunpack.c.l.b16 %v4645
      %v4973 = vunpack.c.l.b16 %v4646
      %v4974 = vunpack.c.l.b16 %v4647
      %v4975 = vunpack.c.l.b16 %v4648
      %v4976 = vunpack.c.l.b16 %v4649
      %v4977 = vunpack.c.l.b16 %v4650
      %v4978 = vunpack.c.l.b16 %v4651
      %v4979 = vunpack.c.l.b16 %v4652
      %v4980 = vunpack.c.l.b16 %v4653
      %v4981 = vunpack.c.l.b16 %v4654
      %v4982 = vunpack.c.l.b16 %v4655
      %v4983 = vunpack.c.l.b16 %v4656
      %v4984 = vunpack.c.l.b16 %v4657
      %v4985 = vunpack.c.l.b16 %v4658
      %v4986 = vunpack.c.l.b16 %v4659
      %v4987 = vunpack.c.l.b16 %v4660
      %v4988 = vunpack.c.l.b16 %v4661
      %v4989 = vunpack.c.l.b16 %v4662
      %v4990 = vunpack.c.l.b16 %v4663
      %v4991 = vunpack.c.l.b16 %v4664
      %v4992 = vunpack.c.l.b16 %v4665
      %v4993 = vunpack.c.l.b16 %v4666
      %v4994 = vunpack.c.l.b16 %v4667
      %v4995 = vunpack.c.l.b16 %v4668
      %v4996 = vunpack.c.l.b16 %v4669
      %v4997 = vunpack.c.l.b16 %v4670
      %v4998 = vunpack.c.l.b16 %v4671
      %v4999 = vunpack.c.l.b16 %v4672
      %v5000 = vunpack.c.l.b16 %v4673
      %v5001 = vunpack.c.l.b16 %v4674
      %v5002 = vunpack.c.l.b16 %v4675
      %v5003 = vunpack.c.l.b16 %v4676
      %v5004 = vunpack.c.l.b16 %v4677
      %v5005 = vunpack.c.l.b16 %v4678
      %v5006 = vunpack.c.l.b16 %v4679
      %v5007 = vunpack.c.l.b16 %v4680
      %v5008 = vunpack.c.l.b16 %v4681
      %v5009 = vunpack.c.l.b16 %v4682
      %v5010 = vunpack.c.l.b16 %v4683
      %v5011 = vunpack.c.l.b16 %v4684
      %v5012 = vunpack.c.l.b16 %v4685
      %v5013 = vunpack.c.l.b16 %v4686
      %v5014 = vunpack.c.l.b16 %v4687
      %v5015 = vunpack.c.l.b16 %v4688
      %v5016 = vunpack.c.l.b16 %v4689
      %v5017 = vunpack.c.l.b16 %v4690
      %v5018 = vunpack.c.l.b16 %v4691
      %v5019 = vunpack.c.l.b16 %v4692
      %v5020 = vunpack.c.l.b16 %v4693
      %v5021 = vunpack.c.l.b16 %v4694
      %v5022 = vunpack.c.l.b16 %v4695
      %v5023 = vunpack.c.l.b16 %v4696
      %v5024 = vunpack.c.l.b16 %v4697
      %v5025 = vunpack.c.l.b16 %v4698
      %v5026 = vunpack.c.l.b16 %v4699
      %v5027 = vunpack.c.l.b16 %v4700
      %v5028 = vunpack.c.l.b16 %v4701
      %v5029 = vunpack.c.l.b16 %v4702
      %v5030 = vunpack.c.l.b16 %v4703
      %v5031 = vunpack.c.l.b16 %v4704
      %v5032 = vunpack.c.l.b16 %v4705
      %v5033 = vunpack.c.l.b16 %v4706
      %v5034 = vunpack.c.l.b16 %v4707
      %v5035 = vunpack.c.l.b16 %v4708
      %v5036 = vunpack.c.l.b16 %v4709
      %v5037 = vunpack.c.l.b16 %v4710
      %v5038 = vunpack.c.l.b16 %v4711
      %v5039 = vunpack.c.l.b16 %v4712
      %v5040 = vunpack.c.l.b16 %v4713
      %v5041 = vunpack.c.l.b16 %v4714
      %v5042 = vunpack.c.l.b16 %v4715
      %v5043 = vunpack.c.l.b16 %v4716
      %v5044 = vunpack.c.l.b16 %v4717
      %v5045 = vunpack.c.l.b16 %v4718
      %v5046 = vunpack.c.l.b16 %v4719
      %v5047 = vunpack.c.l.b16 %v4720
      %v5048 = vunpack.c.l.b16 %v4721
      %v5049 = vunpack.c.l.b16 %v4722
      %v5050 = vunpack.c.l.b16 %v4723
      %v5051 = vunpack.c.l.b16 %v4724
      %v5052 = vunpack.c.l.b16 %v4725
      %v5053 = vunpack.c.l.b16 %v4726
      %v5054 = vunpack.c.l.b16 %v4727
      %v5055 = vunpack.c.l.b16 %v4728
      %v5056 = vunpack.c.l.b16 %v4729
      %v5057 = vunpack.c.l.b16 %v4730
      %v5058 = vunpack.c.l.b16 %v4731
      %v5059 = vunpack.c.l.b16 %v4732
      %v5060 = vunpack.c.l.b16 %v4733
      %v5061 = vunpack.c.l.b16 %v4734
      %v5062 = vunpack.c.l.b16 %v4735
      %v5063 = vunpack.c.l.b16 %v4736
      %v5064 = vunpack.c.l.b16 %v4737
      %v5065 = vunpack.c.l.b16 %v4738
      %v5066 = vunpack.c.l.b16 %v4739
      %v5067 = vunpack.c.l.b16 %v4740
      %v5068 = vunpack.c.l.b16 %v4741
      %v5069 = vunpack.c.l.b16 %v4742
      %v5070 = vunpack.c.l.b16 %v4743
      %v5071 = vunpack.c.l.b16 %v4744
      %v5072 = vunpack.c.l.b16 %v4745
      %v5073 = vunpack.c.l.b16 %v4746
      %v5074 = vunpack.c.l.b16 %v4747
      %v5075 = vunpack.c.l.b16 %v4748
      %v5076 = vunpack.c.l.b16 %v4749
      %v5077 = vunpack.c.l.b16 %v4750
      %v5078 = vunpack.c.l.b16 %v4751
      %v5079 = vunpack.c.l.b16 %v4752
      %v5080 = vunpack.c.l.b16 %v4753
      %v5081 = vunpack.c.l.b16 %v4754
      %v5082 = vunpack.c.l.b16 %v4755
      %v5083 = vunpack.c.l.b16 %v4756
      %v5084 = vunpack.c.l.b16 %v4757
      %v5085 = vunpack.c.l.b16 %v4758
      %v5086 = vunpack.c.l.b16 %v4759
      %v5087 = vunpack.c.l.b16 %v4760
      %v5088 = vunpack.c.l.b16 %v4761
      %v5089 = vunpack.c.l.b16 %v4762
      %v5090 = vunpack.c.l.b16 %v4763
      %v5091 = vunpack.c.l.b16 %v4764
      %v5092 = vunpack.c.l.b16 %v4765
      %v5093 = vunpack.c.l.b16 %v4766
      %v5094 = vunpack.c.l.b16 %v4767
      %v5095 = vunpack.c.l.b16 %v4768
      %v5096 = vunpack.c.l.b16 %v4769
      %v5097 = vunpack.c.l.b16 %v4770
      %v5098 = vunpack.c.l.b16 %v4771
      %v5099 = vunpack.c.l.b16 %v4772
      %v5100 = vunpack.c.l.b16 %v4773
      %v5101 = vunpack.c.l.b16 %v4774
      %v5102 = vunpack.c.l.b16 %v4775
      %v5103 = vunpack.c.l.b16 %v4776
      %v5104 = vunpack.c.l.b16 %v4777
      %v5105 = vunpack.c.l.b16 %v4778
      %v5106 = vunpack.c.l.b16 %v4779
      %v5107 = vunpack.c.l.b16 %v4780
      %v5108 = vunpack.c.l.b16 %v4781
      %v5109 = vunpack.c.l.b16 %v4782
      %v5110 = vunpack.c.l.b16 %v4783
      %v5111 = vunpack.c.l.b16 %v4784
      %v5112 = vunpack.c.l.b16 %v4785
      %v5113 = vunpack.c.l.b16 %v4786
      %v5114 = vunpack.c.l.b16 %v4787
      %v5115 = vunpack.c.l.b16 %v4788
      %v5116 = vunpack.c.l.b16 %v4789
      %v5117 = vunpack.c.l.b16 %v4790
      %v5118 = vunpack.c.l.b16 %v4791
      %v5119 = vunpack.c.l.b16 %v4792
      %v5120 = vunpack.c.l.b16 %v4793
      %v5121 = vunpack.c.l.b16 %v4794
      %v5122 = vpack.c.b16 %v4963, %v4962
      %v5123 = vpack.c.b16 %v4965, %v4964
      %v5124 = vpack.c.b16 %v4967, %v4966
      %v5125 = vpack.c.b16 %v4969, %v4968
      %v5126 = vpack.c.b16 %v4971, %v4970
      %v5127 = vpack.c.b16 %v4973, %v4972
      %v5128 = vpack.c.b16 %v4975, %v4974
      %v5129 = vpack.c.b16 %v4977, %v4976
      %v5130 = vpack.c.b16 %v4979, %v4978
      %v5131 = vpack.c.b16 %v4981, %v4980
      %v5132 = vpack.c.b16 %v4983, %v4982
      %v5133 = vpack.c.b16 %v4985, %v4984
      %v5134 = vpack.c.b16 %v4987, %v4986
      %v5135 = vpack.c.b16 %v4989, %v4988
      %v5136 = vpack.c.b16 %v4991, %v4990
      %v5137 = vpack.c.b16 %v4993, %v4992
      %v5138 = vpack.c.b16 %v4995, %v4994
      %v5139 = vpack.c.b16 %v4997, %v4996
      %v5140 = vpack.c.b16 %v4999, %v4998
      %v5141 = vpack.c.b16 %v5001, %v5000
      %v5142 = vpack.c.b16 %v5003, %v5002
      %v5143 = vpack.c.b16 %v5005, %v5004
      %v5144 = vpack.c.b16 %v5007, %v5006
      %v5145 = vpack.c.b16 %v5009, %v5008
      %v5146 = vpack.c.b16 %v5011, %v5010
      %v5147 = vpack.c.b16 %v5013, %v5012
      %v5148 = vpack.c.b16 %v5015, %v5014
      %v5149 = vpack.c.b16 %v5017, %v5016
      %v5150 = vpack.c.b16 %v5019, %v5018
      %v5151 = vpack.c.b16 %v5021, %v5020
      %v5152 = vpack.c.b16 %v5023, %v5022
      %v5153 = vpack.c.b16 %v5025, %v5024
      %v5154 = vpack.c.b16 %v5027, %v5026
      %v5155 = vpack.c.b16 %v5029, %v5028
      %v5156 = vpack.c.b16 %v5031, %v5030
      %v5157 = vpack.c.b16 %v5033, %v5032
      %v5158 = vpack.c.b16 %v5035, %v5034
      %v5159 = vpack.c.b16 %v5037, %v5036
      %v5160 = vpack.c.b16 %v5039, %v5038
      %v5161 = vpack.c.b16 %v5041, %v5040
      %v5162 = vpack.c.b16 %v5043, %v5042
      %v5163 = vpack.c.b16 %v5045, %v5044
      %v5164 = vpack.c.b16 %v5047, %v5046
      %v5165 = vpack.c.b16 %v5049, %v5048
      %v5166 = vpack.c.b16 %v5051, %v5050
      %v5167 = vpack.c.b16 %v5053, %v5052
      %v5168 = vpack.c.b16 %v5055, %v5054
      %v5169 = vpack.c.b16 %v5057, %v5056
      %v5170 = vpack.c.b16 %v5059, %v5058
      %v5171 = vpack.c.b16 %v5061, %v5060
      %v5172 = vpack.c.b16 %v5063, %v5062
      %v5173 = vpack.c.b16 %v5065, %v5064
      %v5174 = vpack.c.b16 %v5067, %v5066
      %v5175 = vpack.c.b16 %v5069, %v5068
      %v5176 = vpack.c.b16 %v5071, %v5070
      %v5177 = vpack.c.b16 %v5073, %v5072
      %v5178 = vpack.c.b16 %v5075, %v5074
      %v5179 = vpack.c.b16 %v5077, %v5076
      %v5180 = vpack.c.b16 %v5079, %v5078
      %v5181 = vpack.c.b16 %v5081, %v5080
      %v5182 = vpack.c.b16 %v5083, %v5082
      %v5183 = vpack.c.b16 %v5085, %v5084
      %v5184 = vpack.c.b16 %v5087, %v5086
      %v5185 = vpack.c.b16 %v5089, %v5088
      %v5186 = vpack.c.b16 %v5091, %v5090
      %v5187 = vpack.c.b16 %v5093, %v5092
      %v5188 = vpack.c.b16 %v5095, %v5094
      %v5189 = vpack.c.b16 %v5097, %v5096
      %v5190 = vpack.c.b16 %v5099, %v5098
      %v5191 = vpack.c.b16 %v5101, %v5100
      %v5192 = vpack.c.b16 %v5103, %v5102
      %v5193 = vpack.c.b16 %v5105, %v5104
      %v5194 = vpack.c.b16 %v5107, %v5106
      %v5195 = vpack.c.b16 %v5109, %v5108
      %v5196 = vpack.c.b16 %v5111, %v5110
      %v5197 = vpack.c.b16 %v5113, %v5112
      %v5198 = vpack.c.b16 %v5115, %v5114
      %v5199 = vpack.c.b16 %v5117, %v5116
      %v5200 = vpack.c.b16 %v5119, %v5118
      %v5201 = vpack.c.b16 %v5121, %v5120
      %5282 = vmatprep.subr.bf16.mxu0 0
      %5283 = vmatpush1.bf16.msra.mxu0 %v5122
      %5284 = vmatprep.subr.bf16.mxu0 0
      %5285 = vmatpush1.bf16.msra.mxu0 %v5123
      %5286 = vmatprep.subr.bf16.mxu0 0
      %5287 = vmatpush1.bf16.msra.mxu0 %v5124
      %5288 = vmatprep.subr.bf16.mxu0 0
      %5289 = vmatpush1.bf16.msra.mxu0 %v5125
      %5290 = vmatprep.subr.bf16.mxu0 0
      %5291 = vmatpush1.bf16.msra.mxu0 %v5126
      %5292 = vmatprep.subr.bf16.mxu0 0
      %5293 = vmatpush1.bf16.msra.mxu0 %v5127
      %5294 = vmatprep.subr.bf16.mxu0 0
      %5295 = vmatpush1.bf16.msra.mxu0 %v5128
      %5296 = vmatprep.subr.bf16.mxu0 0
      %5297 = vmatpush1.bf16.msra.mxu0 %v5129
      %5298 = vmatprep.subr.bf16.mxu0 0
      %5299 = vmatpush1.bf16.msra.mxu0 %v5130
      %5300 = vmatprep.subr.bf16.mxu0 0
      %5301 = vmatpush1.bf16.msra.mxu0 %v5131
      %5302 = vmatprep.subr.bf16.mxu0 0
      %5303 = vmatpush1.bf16.msra.mxu0 %v5132
      %5304 = vmatprep.subr.bf16.mxu0 0
      %5305 = vmatpush1.bf16.msra.mxu0 %v5133
      %5306 = vmatprep.subr.bf16.mxu0 0
      %5307 = vmatpush1.bf16.msra.mxu0 %v5134
      %5308 = vmatprep.subr.bf16.mxu0 0
      %5309 = vmatpush1.bf16.msra.mxu0 %v5135
      %5310 = vmatprep.subr.bf16.mxu0 0
      %5311 = vmatpush1.bf16.msra.mxu0 %v5136
      %5312 = vmatprep.subr.bf16.mxu0 0
      %5313 = vmatpush1.bf16.msra.mxu0 %v5137
      %5314 = vmatprep.mubr.bf16.mxu0 %v4494
      %5315 = vmatmul.mubr.bf16.gmra.mrb[0].mxu0 %v4493
      %v5316 = vpop.f32.mrb[0].mxu0
      %v5317 = vadd.f32 %v4800, %v5316
      %v5318 = vpop.f32.mrb[0].mxu0
      %v5319 = vpop.f32.mrb[0].mxu0
      %v5320 = vadd.f32 %v4800, %v5319
      %v5321 = vpop.f32.mrb[0].mxu0
      %5322 = vmatprep.mubr.bf16.mxu0 %v4496
      %5323 = vmatmul.mubr.bf16.gmra.mrb[0].mxu0 %v4495
      %v5324 = vpop.f32.mrb[0].mxu0
      %v5325 = vadd.f32 %v4800, %v5324
      %v5326 = vpop.f32.mrb[0].mxu0
      %v5327 = vpop.f32.mrb[0].mxu0
      %v5328 = vadd.f32 %v4800, %v5327
      %v5329 = vpop.f32.mrb[0].mxu0
      %5330 = vmatprep.mubr.bf16.mxu0 %v4498
      %5331 = vmatmul.mubr.bf16.gmra.mrb[0].mxu0 %v4497
      %v5332 = vpop.f32.mrb[0].mxu0
      %v5333 = vadd.f32 %v4800, %v5332
      %v5334 = vpop.f32.mrb[0].mxu0
      %v5335 = vpop.f32.mrb[0].mxu0
      %v5336 = vpop.f32.mrb[0].mxu0
      %5337 = vdwg.mxu0
      %5338 = vmatprep.subr.bf16.mxu0 0
      %5339 = vmatpush1.bf16.msra.mxu0 %v5138
      %5340 = vmatprep.subr.bf16.mxu0 0
      %5341 = vmatpush1.bf16.msra.mxu0 %v5139
      %5342 = vmatprep.subr.bf16.mxu0 0
      %5343 = vmatpush1.bf16.msra.mxu0 %v5140
      %5344 = vmatprep.subr.bf16.mxu0 0
      %5345 = vmatpush1.bf16.msra.mxu0 %v5141
      %5346 = vmatprep.subr.bf16.mxu0 0
      %5347 = vmatpush1.bf16.msra.mxu0 %v5142
      %5348 = vmatprep.subr.bf16.mxu0 0
      %5349 = vmatpush1.bf16.msra.mxu0 %v5143
      %5350 = vmatprep.subr.bf16.mxu0 0
      %5351 = vmatpush1.bf16.msra.mxu0 %v5144
      %5352 = vmatprep.subr.bf16.mxu0 0
      %5353 = vmatpush1.bf16.msra.mxu0 %v5145
      %5354 = vmatprep.subr.bf16.mxu0 0
      %5355 = vmatpush1.bf16.msra.mxu0 %v5146
      %5356 = vmatprep.subr.bf16.mxu0 0
      %5357 = vmatpush1.bf16.msra.mxu0 %v5147
      %5358 = vmatprep.subr.bf16.mxu0 0
      %5359 = vmatpush1.bf16.msra.mxu0 %v5148
      %5360 = vmatprep.subr.bf16.mxu0 0
      %5361 = vmatpush1.bf16.msra.mxu0 %v5149
      %5362 = vmatprep.subr.bf16.mxu0 0
      %5363 = vmatpush1.bf16.msra.mxu0 %v5150
      %5364 = vmatprep.subr.bf16.mxu0 0
      %5365 = vmatpush1.bf16.msra.mxu0 %v5151
      %5366 = vmatprep.subr.bf16.mxu0 0
      %5367 = vmatpush1.bf16.msra.mxu0 %v5152
      %5368 = vmatprep.subr.bf16.mxu0 0
      %5369 = vmatpush1.bf16.msra.mxu0 %v5153
      %5370 = vmatprep.mubr.bf16.mxu0 %v4524
      %5371 = vmatmul.mubr.bf16.gmra.mrb[0].mxu0 %v4512
      %v5372 = vpop.f32.mrb[0].mxu0
      %v5373 = vadd.f32 %v5317, %v5372
      %v5374 = vpop.f32.mrb[0].mxu0
      %v5375 = vpop.f32.mrb[0].mxu0
      %v5376 = vadd.f32 %v5320, %v5375
      %v5377 = vpop.f32.mrb[0].mxu0
      %5378 = vmatprep.mubr.bf16.mxu0 %v4540
      %5379 = vmatmul.mubr.bf16.gmra.mrb[0].mxu0 %v4532
      %v5380 = vpop.f32.mrb[0].mxu0
      %v5381 = vadd.f32 %v5325, %v5380
      %v5382 = vpop.f32.mrb[0].mxu0
      %v5383 = vpop.f32.mrb[0].mxu0
      %v5384 = vadd.f32 %v5328, %v5383
      %v5385 = vpop.f32.mrb[0].mxu0
      %5386 = vmatprep.mubr.bf16.mxu0 %v4546
      %5387 = vmatmul.mubr.bf16.gmra.mrb[0].mxu0 %v4543
      %v5388 = vpop.f32.mrb[0].mxu0
      %v5389 = vadd.f32 %v5333, %v5388
      %v5390 = vpop.f32.mrb[0].mxu0
      %v5391 = vpop.f32.mrb[0].mxu0
      %v5392 = vpop.f32.mrb[0].mxu0
      %5393 = vdwg.mxu0
      %5394 = vmatprep.subr.bf16.mxu0 0
      %5395 = vmatpush1.bf16.msra.mxu0 %v5154
      %5396 = vmatprep.subr.bf16.mxu0 0
      %5397 = vmatpush1.bf16.msra.mxu0 %v5155
      %5398 = vmatprep.subr.bf16.mxu0 0
      %5399 = vmatpush1.bf16.msra.mxu0 %v5156
      %5400 = vmatprep.subr.bf16.mxu0 0
      %5401 = vmatpush1.bf16.msra.mxu0 %v5157
      %5402 = vmatprep.subr.bf16.mxu0 0
      %5403 = vmatpush1.bf16.msra.mxu0 %v5158
      %5404 = vmatprep.subr.bf16.mxu0 0
      %5405 = vmatpush1.bf16.msra.mxu0 %v5159
      %5406 = vmatprep.subr.bf16.mxu0 0
      %5407 = vmatpush1.bf16.msra.mxu0 %v5160
      %5408 = vmatprep.subr.bf16.mxu0 0
      %5409 = vmatpush1.bf16.msra.mxu0 %v5161
      %5410 = vmatprep.subr.bf16.mxu0 0
      %5411 = vmatpush1.bf16.msra.mxu0 %v5162
      %5412 = vmatprep.subr.bf16.mxu0 0
      %5413 = vmatpush1.bf16.msra.mxu0 %v5163
      %5414 = vmatprep.subr.bf16.mxu0 0
      %5415 = vmatpush1.bf16.msra.mxu0 %v5164
      %5416 = vmatprep.subr.bf16.mxu0 0
      %5417 = vmatpush1.bf16.msra.mxu0 %v5165
      %5418 = vmatprep.subr.bf16.mxu0 0
      %5419 = vmatpush1.bf16.msra.mxu0 %v5166
      %5420 = vmatprep.subr.bf16.mxu0 0
      %5421 = vmatpush1.bf16.msra.mxu0 %v5167
      %5422 = vmatprep.subr.bf16.mxu0 0
      %5423 = vmatpush1.bf16.msra.mxu0 %v5168
      %5424 = vmatprep.subr.bf16.mxu0 0
      %5425 = vmatpush1.bf16.msra.mxu0 %v5169
      %5426 = vmatprep.mubr.bf16.mxu0 %v4564
      %5427 = vmatmul.mubr.bf16.gmra.mrb[0].mxu0 %v4561
      %v5428 = vpop.f32.mrb[0].mxu0
      %v5429 = vadd.f32 %v5373, %v5428
      %v5430 = vpop.f32.mrb[0].mxu0
      %v5431 = vpop.f32.mrb[0].mxu0
      %v5432 = vadd.f32 %v5376, %v5431
      %v5433 = vpop.f32.mrb[0].mxu0
      %5434 = vmatprep.mubr.bf16.mxu0 %v4568
      %5435 = vmatmul.mubr.bf16.gmra.mrb[0].mxu0 %v4566
      %v5436 = vpop.f32.mrb[0].mxu0
      %v5437 = vadd.f32 %v5381, %v5436
      %v5438 = vpop.f32.mrb[0].mxu0
      %v5439 = vpop.f32.mrb[0].mxu0
      %v5440 = vadd.f32 %v5384, %v5439
      %v5441 = vpop.f32.mrb[0].mxu0
      %5442 = vmatprep.mubr.bf16.mxu0 %v4567
      %5443 = vmatmul.mubr.bf16.gmra.mrb[0].mxu0 %v4565
      %v5444 = vpop.f32.mrb[0].mxu0
      %v5445 = vadd.f32 %v5389, %v5444
      %v5446 = vpop.f32.mrb[0].mxu0
      %v5447 = vpop.f32.mrb[0].mxu0
      %v5448 = vpop.f32.mrb[0].mxu0
      %5449 = vdwg.mxu0
      %5450 = vmatprep.subr.bf16.mxu0 0
      %5451 = vmatpush1.bf16.msra.mxu0 %v5170
      %5452 = vmatprep.subr.bf16.mxu0 0
      %5453 = vmatpush1.bf16.msra.mxu0 %v5171
      %5454 = vmatprep.subr.bf16.mxu0 0
      %5455 = vmatpush1.bf16.msra.mxu0 %v5172
      %5456 = vmatprep.subr.bf16.mxu0 0
      %5457 = vmatpush1.bf16.msra.mxu0 %v5173
      %5458 = vmatprep.subr.bf16.mxu0 0
      %5459 = vmatpush1.bf16.msra.mxu0 %v5174
      %5460 = vmatprep.subr.bf16.mxu0 0
      %5461 = vmatpush1.bf16.msra.mxu0 %v5175
      %5462 = vmatprep.subr.bf16.mxu0 0
      %5463 = vmatpush1.bf16.msra.mxu0 %v5176
      %5464 = vmatprep.subr.bf16.mxu0 0
      %5465 = vmatpush1.bf16.msra.mxu0 %v5177
      %5466 = vmatprep.subr.bf16.mxu0 0
      %5467 = vmatpush1.bf16.msra.mxu0 %v5178
      %5468 = vmatprep.subr.bf16.mxu0 0
      %5469 = vmatpush1.bf16.msra.mxu0 %v5179
      %5470 = vmatprep.subr.bf16.mxu0 0
      %5471 = vmatpush1.bf16.msra.mxu0 %v5180
      %5472 = vmatprep.subr.bf16.mxu0 0
      %5473 = vmatpush1.bf16.msra.mxu0 %v5181
      %5474 = vmatprep.subr.bf16.mxu0 0
      %5475 = vmatpush1.bf16.msra.mxu0 %v5182
      %5476 = vmatprep.subr.bf16.mxu0 0
      %5477 = vmatpush1.bf16.msra.mxu0 %v5183
      %5478 = vmatprep.subr.bf16.mxu0 0
      %5479 = vmatpush1.bf16.msra.mxu0 %v5184
      %5480 = vmatprep.subr.bf16.mxu0 0
      %5481 = vmatpush1.bf16.msra.mxu0 %v5185
      %5482 = vmatprep.mubr.bf16.mxu0 %v4588
      %5483 = vmatmul.mubr.bf16.gmra.mrb[0].mxu0 %v4581
      %v5484 = vpop.f32.mrb[0].mxu0
      %v5485 = vadd.f32 %v5429, %v5484
      %v5486 = vpop.f32.mrb[0].mxu0
      %v5487 = vpop.f32.mrb[0].mxu0
      %v5488 = vadd.f32 %v5432, %v5487
      %v5489 = vpop.f32.mrb[0].mxu0
      %5490 = vmatprep.mubr.bf16.mxu0 %v4596
      %5491 = vmatmul.mubr.bf16.gmra.mrb[0].mxu0 %v4592
      %v5492 = vpop.f32.mrb[0].mxu0
      %v5493 = vadd.f32 %v5437, %v5492
      %v5494 = vpop.f32.mrb[0].mxu0
      %v5495 = vpop.f32.mrb[0].mxu0
      %v5496 = vadd.f32 %v5440, %v5495
      %v5497 = vpop.f32.mrb[0].mxu0
      %5498 = vmatprep.mubr.bf16.mxu0 %v4606
      %5499 = vmatmul.mubr.bf16.gmra.mrb[0].mxu0 %v4601
      %v5500 = vpop.f32.mrb[0].mxu0
      %v5501 = vadd.f32 %v5445, %v5500
      %v5502 = vpop.f32.mrb[0].mxu0
      %v5503 = vpop.f32.mrb[0].mxu0
      %v5504 = vpop.f32.mrb[0].mxu0
      %5505 = vdwg.mxu0
      %5506 = vmatprep.subr.bf16.mxu0 0
      %5507 = vmatpush1.bf16.msra.mxu0 %v5186
      %5508 = vmatprep.subr.bf16.mxu0 0
      %5509 = vmatpush1.bf16.msra.mxu0 %v5187
      %5510 = vmatprep.subr.bf16.mxu0 0
      %5511 = vmatpush1.bf16.msra.mxu0 %v5188
      %5512 = vmatprep.subr.bf16.mxu0 0
      %5513 = vmatpush1.bf16.msra.mxu0 %v5189
      %5514 = vmatprep.subr.bf16.mxu0 0
      %5515 = vmatpush1.bf16.msra.mxu0 %v5190
      %5516 = vmatprep.subr.bf16.mxu0 0
      %5517 = vmatpush1.bf16.msra.mxu0 %v5191
      %5518 = vmatprep.subr.bf16.mxu0 0
      %5519 = vmatpush1.bf16.msra.mxu0 %v5192
      %5520 = vmatprep.subr.bf16.mxu0 0
      %5521 = vmatpush1.bf16.msra.mxu0 %v5193
      %5522 = vmatprep.subr.bf16.mxu0 0
      %5523 = vmatpush1.bf16.msra.mxu0 %v5194
      %5524 = vmatprep.subr.bf16.mxu0 0
      %5525 = vmatpush1.bf16.msra.mxu0 %v5195
      %5526 = vmatprep.subr.bf16.mxu0 0
      %5527 = vmatpush1.bf16.msra.mxu0 %v5196
      %5528 = vmatprep.subr.bf16.mxu0 0
      %5529 = vmatpush1.bf16.msra.mxu0 %v5197
      %5530 = vmatprep.subr.bf16.mxu0 0
      %5531 = vmatpush1.bf16.msra.mxu0 %v5198
      %5532 = vmatprep.subr.bf16.mxu0 0
      %5533 = vmatpush1.bf16.msra.mxu0 %v5199
      %5534 = vmatprep.subr.bf16.mxu0 0
      %5535 = vmatpush1.bf16.msra.mxu0 %v5200
      %5536 = vmatprep.subr.bf16.mxu0 0
      %5537 = vmatpush1.bf16.msra.mxu0 %v5201
      %5538 = vmatprep.mubr.bf16.mxu0 %v4620
      %5539 = vmatmul.mubr.bf16.gmra.mrb[0].mxu0 %v4617
      %v5540 = vpop.f32.mrb[0].mxu0
      %v5541 = vadd.f32 %v5485, %v5540
      %v5542 = vpop.f32.mrb[0].mxu0
      %v5543 = vpop.f32.mrb[0].mxu0
      %v5544 = vadd.f32 %v5488, %v5543
      %v5545 = vpop.f32.mrb[0].mxu0
      %5546 = vmatprep.mubr.bf16.mxu0 %v4624
      %5547 = vmatmul.mubr.bf16.gmra.mrb[0].mxu0 %v4622
      %v5548 = vpop.f32.mrb[0].mxu0
      %v5549 = vadd.f32 %v5493, %v5548
      %v5550 = vpop.f32.mrb[0].mxu0
      %v5551 = vpop.f32.mrb[0].mxu0
      %v5552 = vadd.f32 %v5496, %v5551
      %v5553 = vpop.f32.mrb[0].mxu0
      %5554 = vmatprep.mubr.bf16.mxu0 %v4628
      %5555 = vmatmul.mubr.bf16.gmra.mrb[0].mxu0 %v4626
      %v5556 = vpop.f32.mrb[0].mxu0
      %v5557 = vadd.f32 %v5501, %v5556
      %v5558 = vpop.f32.mrb[0].mxu0
      %v5559 = vpop.f32.mrb[0].mxu0
      %v5560 = vpop.f32.mrb[0].mxu0
      %5561 = vdwg.mxu0
      %v5562 = vtanh.pop %v5541
      %v5563 = vtanh.pop %v5544
      %v5564 = vtanh.pop %v5549
      %v5565 = vtanh.pop %v5552
      %v5566 = vtanh.pop %v5557
      %vm5567 = vcmask 15367
      %5568 = vst.msk [vmem:[%s494 - $0x7] sm:$0x80] %vm5567, %v5562
      %vm5569 = vcmask 15360
      %5570 = vst.msk [vmem:[%s494 + $0x1] sm:$0xff] %vm5569, %v5563
      %5571 = vst.msk [vmem:[%s494 + $0x9] sm:$0xff] %vm5569, %v5564
      %5572 = vst.msk [vmem:[%s494 + $0x11] sm:$0xff] %vm5569, %v5565
      %vm5573 = vcmask 14336
      %5574 = vst.msk [vmem:[%s494 + $0x19] sm:$0x7f] %vm5573, %v5566
      %s5575 = smul.u32 4, %s28
      %p5576 = scmp.lt.s32.totalorder %s27, 1
      %s5577 = scalar_select %p5576, %s27, 1
      %p5578 = scmp.lt.s32.totalorder %s5575, 7
      %s5579 = scalar_select %p5578, %s5575, 7
      %s5580 = smul.addr %s5577, 8
      %s5581 = sadd.s32 %s5579, %s5580
      %s5582 = smul.addr %s5581, 8
      %s5583 = scalar_lea.vmem %s12, %s5582
      // Predicated region
      $region69: #{evagan_forward.1} parent=67 // pred_check
        %p5584 = pneg %p323
      $region70: #{evagan_forward.1} parent=67 // pred_check_branch
        %5586 = sbr.rel (%p5584) target = $region72
      $region71: #{evagan_forward.1} parent=67 // pred_region
        %s5587 = smul.u32 4, %s28
      $region72: #{evagan_forward.1} parent=67 // pred_fallthru
        _
    $region68: #{evagan_forward.1} parent=5 // pred_fallthru
      _
    %p5588 = scmp.le.s32.totalorder 2, %s18
    // Predicated region
    $region73: #{evagan_forward.1} parent=5 // pred_check
      %p5589 = pneg %p5588
    $region74: #{evagan_forward.1} parent=5 // pred_check_branch
      %5591 = sbr.rel (%p5589) target = $region76
    $region75: #{evagan_forward.1} parent=5 // pred_region
      %s5592 = ssub.s32 %s18, 2
      // Predicated region
      $region77: #{evagan_forward.1} parent=75 // pred_check
        %p5593 = pneg %p329
      $region78: #{evagan_forward.1} parent=75 // pred_check_branch
        %5595 = sbr.rel (%p5593) target = $region80
      $region79: #{evagan_forward.1} parent=75 // pred_region
        %s5596 = smul.u32 4, %s30
        %p5597 = scmp.lt.s32.totalorder %s29, 1
        %s5598 = scalar_select %p5597, %s29, 1
        %p5599 = scmp.lt.s32.totalorder %s5596, 7
        %s5600 = scalar_select %p5599, %s5596, 7
        %s5601 = smul.addr %s5598, 8
        %s5602 = sadd.s32 %s5600, %s5601
        %s5603 = smul.addr %s5602, 8
        %s5604 = scalar_lea.vmem %s12, %s5603
      $region80: #{evagan_forward.1} parent=75 // pred_fallthru
        _
    $region76: #{evagan_forward.1} parent=5 // pred_fallthru
      _
  $region6: #{evagan_forward.1} parent=0 // loop_footer
    %s22 = sadd.s32 1, %s18
  $region7: #{evagan_forward.1} parent=0 // loop_footer_branch
    %17 = sbr.rel target = $region3
  $region8: #{evagan_forward.1} parent=0 // loop_exit
    _

</llo_original>
